<compile_context>
chip_gen: v7x
topology: tpu7x:2x2x1
jax: 0.10.0
libtpu: 0.0.40
codegen_flags: <defaults>
</compile_context>

<pallas_src>
import jax
import jax.numpy as jnp
import numpy as np
from jax import lax
from jax.experimental import pallas as pl
from jax.experimental.pallas import tpu as pltpu


def conv_rnn_kernel(emb_ref, len_ref,
                    w_in_f_ref, w_in_b_ref, b_in_f_ref, b_in_b_ref,
                    whh_f_ref, whh_b_ref, bhhn_f_ref, bhhn_b_ref,
                    cw_f_ref, cw_b_ref, conv_b_ref,
                    fc1_wf_ref, fc1_wb_ref, fc1_wp_ref, fc1_b_ref,
                    fc2_w_ref, fc2_b_ref,
                    out_ref,
                    gi_f, gi_b, seq_f, seq_b):
    TB, H3 = gi_f.shape
    H = H3 // 3
    Bp = len_ref.shape[0]
    T = TB // Bp
    F = cw_f_ref.shape[1]

    # ---------- (1) input projections: one bf16 matmul per direction, written
    # straight into per-direction gate scratch.  r/z recurrent biases were
    # pre-folded into b_in (the n-gate recurrent bias stays inside r*(.)).
    emb = emb_ref[...]                                            # bf16 [T*Bp, E]
    gi_f[...] = (jnp.dot(emb, w_in_f_ref[...],
                         preferred_element_type=jnp.float32) + b_in_f_ref[...])
    gi_b[...] = (jnp.dot(emb, w_in_b_ref[...],
                         preferred_element_type=jnp.float32) + b_in_b_ref[...])

    # ---------- hoist all loop-invariant loads ----------
    whh_f = whh_f_ref[...]                                        # bf16 [H, 3H]
    whh_b = whh_b_ref[...]
    bn_f = bhhn_f_ref[...]                                        # f32 [1, H]
    bn_b = bhhn_b_ref[...]
    lens = len_ref[...]                                           # f32 [Bp, 1]

    def gru_step(h, gi, whh, bn):
        # One fused [Bp,H]@[H,3H] MXU push per step; gi already holds
        # x@W_ih + b_ih (+ b_hr/b_hz for the r/z blocks).
        gh = jnp.dot(h.astype(jnp.bfloat16), whh,
                     preferred_element_type=jnp.float32)          # f32 [Bp, 3H]
        rz = jax.nn.sigmoid(gi[:, :2 * H] + gh[:, :2 * H])
        r, z = rz[:, :H], rz[:, H:]
        n = jnp.tanh(gi[:, 2 * H:] + r * (gh[:, 2 * H:] + bn))
        return n + z * (h - n)                                    # == (1-z)*n + z*h

    # ---------- (2) fused fwd+bwd recurrence (pack_padded via state freeze) ----------
    def body(t, carry):
        h_f, h_b = carry
        tb = T - 1 - t
        off_f = pl.multiple_of(t * Bp, Bp)
        off_b = pl.multiple_of(tb * Bp, Bp)

        hf_new = gru_step(h_f, gi_f[pl.ds(off_f, Bp), :], whh_f, bn_f)
        hb_new = gru_step(h_b, gi_b[pl.ds(off_b, Bp), :], whh_b, bn_b)

        h_f = jnp.where(lens > t, hf_new, h_f)     # freeze state past length
        h_b = jnp.where(lens > tb, hb_new, h_b)    # stays 0 until t < length

        seq_f[pl.ds(off_f, Bp), :] = h_f           # unmasked; zeroing hoisted to conv
        seq_b[pl.ds(off_b, Bp), :] = h_b
        return (h_f, h_b)

    h0 = jnp.zeros((Bp, H), jnp.float32)
    unroll = True if T <= 16 else 4
    h_fwd, h_bwd = lax.fori_loop(0, T, body, (h0, h0), unroll=unroll)

    # ---------- (3) Conv2d(1,F,(1,2H)) + ReLU + max_pool1d: flat bf16 matmuls.
    # pad_packed zeros applied to the conv rows: (m*x)@W == m*(x@W).
    conv = (jnp.dot(seq_f[...].astype(jnp.bfloat16), cw_f_ref[...],
                    preferred_element_type=jnp.float32)
            + jnp.dot(seq_b[...].astype(jnp.bfloat16), cw_b_ref[...],
                      preferred_element_type=jnp.float32)).reshape(T, Bp, F)
    tmask = (lax.broadcasted_iota(jnp.int32, (T, Bp, 1), 0).astype(jnp.float32)
             < lens)                                              # [T, Bp, 1]
    conv = jnp.maximum(jnp.where(tmask, conv, 0.0) + conv_b_ref[...], 0.0)
    pooled = jnp.max(conv, axis=0)                                # [Bp, F]

    # ---------- (4) cat([h_fwd, h_bwd, pooled]) -> fc1 -> ReLU -> fc2 ----------
    # fc1 weights pre-split by input block, so no in-kernel concat / slicing.
    hid = (jnp.dot(h_fwd.astype(jnp.bfloat16), fc1_wf_ref[...],
                   preferred_element_type=jnp.float32)
           + jnp.dot(h_bwd.astype(jnp.bfloat16), fc1_wb_ref[...],
                     preferred_element_type=jnp.float32)
           + jnp.dot(pooled.astype(jnp.bfloat16), fc1_wp_ref[...],
                     preferred_element_type=jnp.float32)
           + fc1_b_ref[...])
    hid = jnp.maximum(hid, 0.0)
    out_ref[...] = (jnp.dot(hid.astype(jnp.bfloat16), fc2_w_ref[...],
                            preferred_element_type=jnp.float32) + fc2_b_ref[...])


def conv_rnn_forward(indices, lengths, params):
    """Glue: embedding lookup, batch padding, weight re-formatting, kernel call."""
    emb_table = params["embedding"]
    B, T = indices.shape
    E = emb_table.shape[1]
    H = params["whh_f"].shape[0]
    n_labels = params["fc2_w"].shape[1]

    # Pad batch to a multiple of 8 sublanes; padded rows get length 0 (state
    # frozen at zero, conv rows masked), and are sliced off the output.
    Bp = max(8, -(-B // 8) * 8)
    pad = Bp - B
    idx_p = jnp.pad(indices, ((0, pad), (0, 0)))
    len_p = jnp.pad(lengths, (0, pad))

    emb = emb_table[idx_p].astype(jnp.bfloat16)                   # [Bp, T, E]
    emb = jnp.transpose(emb, (1, 0, 2)).reshape(T * Bp, E)        # time-major flat
    len_f = len_p.astype(jnp.float32).reshape(Bp, 1)

    bf = lambda a: a.astype(jnp.bfloat16)

    def fold_bias(bih, bhh):      # fold r/z recurrent biases into the input bias
        return jnp.concatenate([bih[:, :2 * H] + bhh[:, :2 * H],
                                bih[:, 2 * H:]], axis=1)          # [1, 3H]

    args = (
        emb, len_f,
        bf(params["wih_f"]), bf(params["wih_b"]),
        fold_bias(params["bih_f"], params["bhh_f"]),
        fold_bias(params["bih_b"], params["bhh_b"]),
        bf(params["whh_f"]), bf(params["whh_b"]),
        params["bhh_f"][:, 2 * H:], params["bhh_b"][:, 2 * H:],
        bf(params["conv_w"][:H]), bf(params["conv_w"][H:]), params["conv_b"],
        bf(params["fc1_w"][:H]), bf(params["fc1_w"][H:2 * H]), bf(params["fc1_w"][2 * H:]),
        params["fc1_b"], bf(params["fc2_w"]), params["fc2_b"],
    )

    scratch = [pltpu.VMEM((T * Bp, 3 * H), jnp.float32),   # gi_f
               pltpu.VMEM((T * Bp, 3 * H), jnp.float32),   # gi_b
               pltpu.VMEM((T * Bp, H), jnp.float32),       # seq_f
               pltpu.VMEM((T * Bp, H), jnp.float32)]       # seq_b

    # VMEM budget derived from actual residency (no grid: everything resident),
    # clamped to a value legal on every generation (v7x physical VMEM = 64 MiB).
    arg_bytes = sum(int(np.prod(a.shape)) * a.dtype.itemsize for a in args)
    scr_bytes = (2 * T * Bp * 3 * H + 2 * T * Bp * H) * 4
    vmem_bytes = int(min(max(4 * (arg_bytes + scr_bytes), 32 * 1024 * 1024),
                         60 * 1024 * 1024))

    vmem = pl.BlockSpec(memory_space=pltpu.MemorySpace.VMEM)
    out = pl.pallas_call(
        conv_rnn_kernel,
        out_shape=jax.ShapeDtypeStruct((Bp, n_labels), jnp.float32),
        in_specs=[vmem] * len(args),
        out_specs=vmem,
        scratch_shapes=scratch,
        compiler_params=pltpu.CompilerParams(vmem_limit_bytes=vmem_bytes),
    )(*args)
    return out[:B]


def init_params(key, vocab, E, H, F, FC, L):
    ks = jax.random.split(key, 16)

    def unif(k, shape, scale):
        return jax.random.uniform(k, shape, jnp.float32, -scale, scale)

    kH = 1.0 / np.sqrt(H)
    kC = 1.0 / np.sqrt(2 * H)
    k1 = 1.0 / np.sqrt(2 * H + F)
    k2 = 1.0 / np.sqrt(FC)
    return dict(
        embedding=0.1 * jax.random.normal(ks[0], (vocab, E), jnp.float32),
        # GRU weights stored transposed (x @ W), gate order (r, z, n).
        wih_f=unif(ks[1], (E, 3 * H), kH), whh_f=unif(ks[2], (H, 3 * H), kH),
        bih_f=unif(ks[3], (1, 3 * H), kH), bhh_f=unif(ks[4], (1, 3 * H), kH),
        wih_b=unif(ks[5], (E, 3 * H), kH), whh_b=unif(ks[6], (H, 3 * H), kH),
        bih_b=unif(ks[7], (1, 3 * H), kH), bhh_b=unif(ks[8], (1, 3 * H), kH),
        conv_w=unif(ks[9], (2 * H, F), kC), conv_b=unif(ks[10], (1, F), kC),
        fc1_w=unif(ks[11], (2 * H + F, FC), k1), fc1_b=unif(ks[12], (1, FC), k1),
        fc2_w=unif(ks[13], (FC, L), k2), fc2_b=unif(ks[14], (1, L), k2),
    )


def reference_forward(indices, lengths, p):
    """Pure numpy reference mirroring the PyTorch forward semantics."""
    indices = np.asarray(indices)
    lengths = np.asarray(lengths)
    emb = np.asarray(p["embedding"])[indices]          # [B, T, E]
    B, T, _ = emb.shape
    H = p["whh_f"].shape[0]

    def sigmoid(v):
        return 1.0 / (1.0 + np.exp(-v))

    def cell(x, h, wih, whh, bih, bhh):
        gi = x @ np.asarray(wih) + np.asarray(bih)
        gh = h @ np.asarray(whh) + np.asarray(bhh)
        r = sigmoid(gi[:, :H] + gh[:, :H])
        z = sigmoid(gi[:, H:2 * H] + gh[:, H:2 * H])
        n = np.tanh(gi[:, 2 * H:] + r * gh[:, 2 * H:])
        return (1.0 - z) * n + z * h

    mask = (np.arange(T)[:, None] < lengths[None, :]).astype(np.float32)  # [T, B]
    xT = np.transpose(emb, (1, 0, 2)).astype(np.float32)

    h = np.zeros((B, H), np.float32)
    seq_f = np.zeros((T, B, H), np.float32)
    for t in range(T):
        m = mask[t][:, None]
        hn = cell(xT[t], h, p["wih_f"], p["whh_f"], p["bih_f"], p["bhh_f"])
        h = m * hn + (1.0 - m) * h
        seq_f[t] = h * m
    h_fwd = h

    h = np.zeros((B, H), np.float32)
    seq_b = np.zeros((T, B, H), np.float32)
    for t in reversed(range(T)):
        m = mask[t][:, None]
        hn = cell(xT[t], h, p["wih_b"], p["whh_b"], p["bih_b"], p["bhh_b"])
        h = m * hn + (1.0 - m) * h
        seq_b[t] = h * m
    h_bwd = h

    conv_out = np.maximum(
        np.concatenate([seq_f, seq_b], -1) @ np.asarray(p["conv_w"])
        + np.asarray(p["conv_b"]), 0.0)                # [T, B, F]
    pooled = conv_out.max(axis=0)                      # [B, F]

    feat = np.concatenate([h_fwd, h_bwd, pooled], axis=1)
    hid = np.maximum(feat @ np.asarray(p["fc1_w"]) + np.asarray(p["fc1_b"]), 0.0)
    return hid @ np.asarray(p["fc2_w"]) + np.asarray(p["fc2_b"])


if __name__ == "__main__":
    # Small shapes consistent with the module's forward:
    #   indices x: [B=2, T=8] ints, lengths: [2] (descending, max == T),
    #   embedding_dim=16, hidden_size=32, n_feature_maps=8, fc_size=64, n_labels=4.
    B, T, E, H, F, FC, L = 2, 8, 16, 32, 8, 64, 4
    vocab = 50

    key = jax.random.PRNGKey(0)
    pkey, ikey = jax.random.split(key)
    params = init_params(pkey, vocab, E, H, F, FC, L)

    indices = jax.random.randint(ikey, (B, T), 1, vocab)
    lengths = jnp.array([T, 5], dtype=jnp.int32)   # sorted descending like pack_padded

    out = conv_rnn_forward(indices, lengths, params)
    out = jax.block_until_ready(out)

    ref = reference_forward(indices, lengths, params)
    np.testing.assert_allclose(np.asarray(out), ref, rtol=2e-2, atol=2e-2)

    print("KERNEL_OK")
</pallas_src>

<mosaic_0001>
module attributes {stable_mosaic.version = 11 : i64} {
  func.func @conv_rnn_kernel(%arg0: memref<64x16xbf16, #tpu.memory_space<vmem>>, %arg1: memref<8x1xf32, #tpu.memory_space<vmem>>, %arg2: memref<16x96xbf16, #tpu.memory_space<vmem>>, %arg3: memref<16x96xbf16, #tpu.memory_space<vmem>>, %arg4: memref<1x96xf32, #tpu.memory_space<vmem>>, %arg5: memref<1x96xf32, #tpu.memory_space<vmem>>, %arg6: memref<32x96xbf16, #tpu.memory_space<vmem>>, %arg7: memref<32x96xbf16, #tpu.memory_space<vmem>>, %arg8: memref<1x32xf32, #tpu.memory_space<vmem>>, %arg9: memref<1x32xf32, #tpu.memory_space<vmem>>, %arg10: memref<32x8xbf16, #tpu.memory_space<vmem>>, %arg11: memref<32x8xbf16, #tpu.memory_space<vmem>>, %arg12: memref<1x8xf32, #tpu.memory_space<vmem>>, %arg13: memref<32x64xbf16, #tpu.memory_space<vmem>>, %arg14: memref<32x64xbf16, #tpu.memory_space<vmem>>, %arg15: memref<8x64xbf16, #tpu.memory_space<vmem>>, %arg16: memref<1x64xf32, #tpu.memory_space<vmem>>, %arg17: memref<64x4xbf16, #tpu.memory_space<vmem>>, %arg18: memref<1x4xf32, #tpu.memory_space<vmem>>, %arg19: memref<8x4xf32, #tpu.memory_space<vmem>>, %arg20: memref<64x96xf32, #tpu.memory_space<vmem>>, %arg21: memref<64x96xf32, #tpu.memory_space<vmem>>, %arg22: memref<64x32xf32, #tpu.memory_space<vmem>>, %arg23: memref<64x32xf32, #tpu.memory_space<vmem>>) attributes {dimension_semantics = [], scalar_prefetch = 0 : i64, scratch_operands = 4 : i64, tpu.core_type = #tpu.core_type<tc>} {
    %c0 = arith.constant 0 : index
    %c0_0 = arith.constant 0 : index
    %0 = vector.load %arg0[%c0, %c0_0] : memref<64x16xbf16, #tpu.memory_space<vmem>>, vector<64x16xbf16>
    %c0_1 = arith.constant 0 : index
    %c0_2 = arith.constant 0 : index
    %1 = vector.load %arg2[%c0_1, %c0_2] : memref<16x96xbf16, #tpu.memory_space<vmem>>, vector<16x96xbf16>
    %cst = arith.constant dense<0.000000e+00> : vector<64x96xf32>
    %2 = tpu.matmul %0, %1, %cst {dimension_numbers = #tpu.dot_dimension_numbers<[1], [0], [0], [1], [0, 0, 1, 1], [], []>} : vector<64x16xbf16>, vector<16x96xbf16>, vector<64x96xf32> -> vector<64x96xf32>
    %c0_3 = arith.constant 0 : index
    %c0_4 = arith.constant 0 : index
    %3 = vector.load %arg4[%c0_3, %c0_4] : memref<1x96xf32, #tpu.memory_space<vmem>>, vector<1x96xf32>
    %4 = vector.broadcast %3 : vector<1x96xf32> to vector<64x96xf32>
    %5 = arith.addf %2, %4 : vector<64x96xf32>
    %c0_5 = arith.constant 0 : index
    %c0_6 = arith.constant 0 : index
    %6 = vector.load %arg20[%c0_5, %c0_6] : memref<64x96xf32, #tpu.memory_space<vmem>>, vector<64x96xf32>
    tpu.vector_store %arg20[%c0_5, %c0_6], %5 {strides = array<i32>} : memref<64x96xf32, #tpu.memory_space<vmem>>, vector<64x96xf32>,
    %c0_7 = arith.constant 0 : index
    %c0_8 = arith.constant 0 : index
    %7 = vector.load %arg3[%c0_7, %c0_8] : memref<16x96xbf16, #tpu.memory_space<vmem>>, vector<16x96xbf16>
    %cst_9 = arith.constant dense<0.000000e+00> : vector<64x96xf32>
    %8 = tpu.matmul %0, %7, %cst_9 {dimension_numbers = #tpu.dot_dimension_numbers<[1], [0], [0], [1], [0, 0, 1, 1], [], []>} : vector<64x16xbf16>, vector<16x96xbf16>, vector<64x96xf32> -> vector<64x96xf32>
    %c0_10 = arith.constant 0 : index
    %c0_11 = arith.constant 0 : index
    %9 = vector.load %arg5[%c0_10, %c0_11] : memref<1x96xf32, #tpu.memory_space<vmem>>, vector<1x96xf32>
    %10 = vector.broadcast %9 : vector<1x96xf32> to vector<64x96xf32>
    %11 = arith.addf %8, %10 : vector<64x96xf32>
    %c0_12 = arith.constant 0 : index
    %c0_13 = arith.constant 0 : index
    %12 = vector.load %arg21[%c0_12, %c0_13] : memref<64x96xf32, #tpu.memory_space<vmem>>, vector<64x96xf32>
    tpu.vector_store %arg21[%c0_12, %c0_13], %11 {strides = array<i32>} : memref<64x96xf32, #tpu.memory_space<vmem>>, vector<64x96xf32>,
    %c0_14 = arith.constant 0 : index
    %c0_15 = arith.constant 0 : index
    %13 = vector.load %arg6[%c0_14, %c0_15] : memref<32x96xbf16, #tpu.memory_space<vmem>>, vector<32x96xbf16>
    %c0_16 = arith.constant 0 : index
    %c0_17 = arith.constant 0 : index
    %14 = vector.load %arg7[%c0_16, %c0_17] : memref<32x96xbf16, #tpu.memory_space<vmem>>, vector<32x96xbf16>
    %c0_18 = arith.constant 0 : index
    %c0_19 = arith.constant 0 : index
    %15 = vector.load %arg8[%c0_18, %c0_19] : memref<1x32xf32, #tpu.memory_space<vmem>>, vector<1x32xf32>
    %c0_20 = arith.constant 0 : index
    %c0_21 = arith.constant 0 : index
    %16 = vector.load %arg9[%c0_20, %c0_21] : memref<1x32xf32, #tpu.memory_space<vmem>>, vector<1x32xf32>
    %c0_22 = arith.constant 0 : index
    %c0_23 = arith.constant 0 : index
    %17 = vector.load %arg1[%c0_22, %c0_23] : memref<8x1xf32, #tpu.memory_space<vmem>>, vector<8x1xf32>
    %cst_24 = arith.constant 0.000000e+00 : f32
    %18 = vector.broadcast %cst_24 : f32 to vector<8x32xf32>
    %c0_i32 = arith.constant 0 : i32
    %c7_i32 = arith.constant 7 : i32
    %19 = arith.subi %c7_i32, %c0_i32 : i32
    %c8_i32 = arith.constant 8 : i32
    %20 = arith.muli %c0_i32, %c8_i32 : i32
    %21 = tpu.assume_multiple %20, 8 : i32
    %c8_i32_25 = arith.constant 8 : i32
    %22 = arith.muli %19, %c8_i32_25 : i32
    %23 = tpu.assume_multiple %22, 8 : i32
    %24 = arith.index_cast %21 : i32 to index
    %c0_26 = arith.constant 0 : index
    %25 = vector.load %arg20[%24, %c0_26] : memref<64x96xf32, #tpu.memory_space<vmem>>, vector<8x96xf32>
    %26 = arith.truncf %18 : vector<8x32xf32> to vector<8x32xbf16>
    %cst_27 = arith.constant dense<0.000000e+00> : vector<8x96xf32>
    %27 = tpu.matmul %26, %13, %cst_27 {dimension_numbers = #tpu.dot_dimension_numbers<[1], [0], [0], [1], [0, 0, 1, 1], [], []>} : vector<8x32xbf16>, vector<32x96xbf16>, vector<8x96xf32> -> vector<8x96xf32>
    %28 = vector.extract_strided_slice %25 {offsets = [0, 0], sizes = [8, 64], strides = [1, 1]} : vector<8x96xf32> to vector<8x64xf32>
    %29 = vector.extract_strided_slice %27 {offsets = [0, 0], sizes = [8, 64], strides = [1, 1]} : vector<8x96xf32> to vector<8x64xf32>
    %30 = arith.addf %28, %29 : vector<8x64xf32>
    %31 = arith.negf %30 : vector<8x64xf32>
    %32 = math.exp %31 : vector<8x64xf32>
    %cst_28 = arith.constant 1.000000e+00 : f32
    %33 = vector.broadcast %cst_28 : f32 to vector<8x64xf32>
    %34 = arith.addf %33, %32 : vector<8x64xf32>
    %35 = arith.divf %33, %34 : vector<8x64xf32>
    %36 = vector.extract_strided_slice %35 {offsets = [0, 0], sizes = [8, 32], strides = [1, 1]} : vector<8x64xf32> to vector<8x32xf32>
    %37 = vector.extract_strided_slice %35 {offsets = [0, 32], sizes = [8, 32], strides = [1, 1]} : vector<8x64xf32> to vector<8x32xf32>
    %38 = vector.extract_strided_slice %25 {offsets = [0, 64], sizes = [8, 32], strides = [1, 1]} : vector<8x96xf32> to vector<8x32xf32>
    %39 = vector.extract_strided_slice %27 {offsets = [0, 64], sizes = [8, 32], strides = [1, 1]} : vector<8x96xf32> to vector<8x32xf32>
    %40 = vector.broadcast %15 : vector<1x32xf32> to vector<8x32xf32>
    %41 = arith.addf %39, %40 : vector<8x32xf32>
    %42 = arith.mulf %36, %41 : vector<8x32xf32>
    %43 = arith.addf %38, %42 : vector<8x32xf32>
    %44 = math.tanh %43 : vector<8x32xf32>
    %45 = arith.subf %18, %44 : vector<8x32xf32>
    %46 = arith.mulf %37, %45 : vector<8x32xf32>
    %47 = arith.addf %44, %46 : vector<8x32xf32>
    %48 = arith.index_cast %23 : i32 to index
    %c0_29 = arith.constant 0 : index
    %49 = vector.load %arg21[%48, %c0_29] : memref<64x96xf32, #tpu.memory_space<vmem>>, vector<8x96xf32>
    %50 = arith.truncf %18 : vector<8x32xf32> to vector<8x32xbf16>
    %cst_30 = arith.constant dense<0.000000e+00> : vector<8x96xf32>
    %51 = tpu.matmul %50, %14, %cst_30 {dimension_numbers = #tpu.dot_dimension_numbers<[1], [0], [0], [1], [0, 0, 1, 1], [], []>} : vector<8x32xbf16>, vector<32x96xbf16>, vector<8x96xf32> -> vector<8x96xf32>
    %52 = vector.extract_strided_slice %49 {offsets = [0, 0], sizes = [8, 64], strides = [1, 1]} : vector<8x96xf32> to vector<8x64xf32>
    %53 = vector.extract_strided_slice %51 {offsets = [0, 0], sizes = [8, 64], strides = [1, 1]} : vector<8x96xf32> to vector<8x64xf32>
    %54 = arith.addf %52, %53 : vector<8x64xf32>
    %55 = arith.negf %54 : vector<8x64xf32>
    %56 = math.exp %55 : vector<8x64xf32>
    %cst_31 = arith.constant 1.000000e+00 : f32
    %57 = vector.broadcast %cst_31 : f32 to vector<8x64xf32>
    %58 = arith.addf %57, %56 : vector<8x64xf32>
    %59 = arith.divf %57, %58 : vector<8x64xf32>
    %60 = vector.extract_strided_slice %59 {offsets = [0, 0], sizes = [8, 32], strides = [1, 1]} : vector<8x64xf32> to vector<8x32xf32>
    %61 = vector.extract_strided_slice %59 {offsets = [0, 32], sizes = [8, 32], strides = [1, 1]} : vector<8x64xf32> to vector<8x32xf32>
    %62 = vector.extract_strided_slice %49 {offsets = [0, 64], sizes = [8, 32], strides = [1, 1]} : vector<8x96xf32> to vector<8x32xf32>
    %63 = vector.extract_strided_slice %51 {offsets = [0, 64], sizes = [8, 32], strides = [1, 1]} : vector<8x96xf32> to vector<8x32xf32>
    %64 = vector.broadcast %16 : vector<1x32xf32> to vector<8x32xf32>
    %65 = arith.addf %63, %64 : vector<8x32xf32>
    %66 = arith.mulf %60, %65 : vector<8x32xf32>
    %67 = arith.addf %62, %66 : vector<8x32xf32>
    %68 = math.tanh %67 : vector<8x32xf32>
    %69 = arith.subf %18, %68 : vector<8x32xf32>
    %70 = arith.mulf %61, %69 : vector<8x32xf32>
    %71 = arith.addf %68, %70 : vector<8x32xf32>
    %72 = arith.sitofp %c0_i32 : i32 to f32
    %73 = vector.broadcast %72 : f32 to vector<8x1xf32>
    %74 = arith.cmpf ogt, %17, %73 : vector<8x1xf32>
    %75 = vector.shape_cast %74 : vector<8x1xi1> to vector<8x1xi1>
    %76 = vector.broadcast %75 : vector<8x1xi1> to vector<8x32xi1>
    %77 = arith.select %76, %47, %18 : vector<8x32xi1>, vector<8x32xf32>
    %78 = arith.sitofp %19 : i32 to f32
    %79 = vector.broadcast %78 : f32 to vector<8x1xf32>
    %80 = arith.cmpf ogt, %17, %79 : vector<8x1xf32>
    %81 = vector.shape_cast %80 : vector<8x1xi1> to vector<8x1xi1>
    %82 = vector.broadcast %81 : vector<8x1xi1> to vector<8x32xi1>
    %83 = arith.select %82, %71, %18 : vector<8x32xi1>, vector<8x32xf32>
    %84 = arith.index_cast %21 : i32 to index
    %c0_32 = arith.constant 0 : index
    %85 = vector.load %arg22[%84, %c0_32] : memref<64x32xf32, #tpu.memory_space<vmem>>, vector<8x32xf32>
    tpu.vector_store %arg22[%84, %c0_32], %77 {strides = array<i32>} : memref<64x32xf32, #tpu.memory_space<vmem>>, vector<8x32xf32>,
    %86 = arith.index_cast %23 : i32 to index
    %c0_33 = arith.constant 0 : index
    %87 = vector.load %arg23[%86, %c0_33] : memref<64x32xf32, #tpu.memory_space<vmem>>, vector<8x32xf32>
    tpu.vector_store %arg23[%86, %c0_33], %83 {strides = array<i32>} : memref<64x32xf32, #tpu.memory_space<vmem>>, vector<8x32xf32>,
    %c1_i32 = arith.constant 1 : i32
    %c7_i32_34 = arith.constant 7 : i32
    %88 = arith.subi %c7_i32_34, %c1_i32 : i32
    %c8_i32_35 = arith.constant 8 : i32
    %89 = arith.muli %c1_i32, %c8_i32_35 : i32
    %90 = tpu.assume_multiple %89, 8 : i32
    %c8_i32_36 = arith.constant 8 : i32
    %91 = arith.muli %88, %c8_i32_36 : i32
    %92 = tpu.assume_multiple %91, 8 : i32
    %93 = arith.index_cast %90 : i32 to index
    %c0_37 = arith.constant 0 : index
    %94 = vector.load %arg20[%93, %c0_37] : memref<64x96xf32, #tpu.memory_space<vmem>>, vector<8x96xf32>
    %95 = arith.truncf %77 : vector<8x32xf32> to vector<8x32xbf16>
    %cst_38 = arith.constant dense<0.000000e+00> : vector<8x96xf32>
    %96 = tpu.matmul %95, %13, %cst_38 {dimension_numbers = #tpu.dot_dimension_numbers<[1], [0], [0], [1], [0, 0, 1, 1], [], []>} : vector<8x32xbf16>, vector<32x96xbf16>, vector<8x96xf32> -> vector<8x96xf32>
    %97 = vector.extract_strided_slice %94 {offsets = [0, 0], sizes = [8, 64], strides = [1, 1]} : vector<8x96xf32> to vector<8x64xf32>
    %98 = vector.extract_strided_slice %96 {offsets = [0, 0], sizes = [8, 64], strides = [1, 1]} : vector<8x96xf32> to vector<8x64xf32>
    %99 = arith.addf %97, %98 : vector<8x64xf32>
    %100 = arith.negf %99 : vector<8x64xf32>
    %101 = math.exp %100 : vector<8x64xf32>
    %cst_39 = arith.constant 1.000000e+00 : f32
    %102 = vector.broadcast %cst_39 : f32 to vector<8x64xf32>
    %103 = arith.addf %102, %101 : vector<8x64xf32>
    %104 = arith.divf %102, %103 : vector<8x64xf32>
    %105 = vector.extract_strided_slice %104 {offsets = [0, 0], sizes = [8, 32], strides = [1, 1]} : vector<8x64xf32> to vector<8x32xf32>
    %106 = vector.extract_strided_slice %104 {offsets = [0, 32], sizes = [8, 32], strides = [1, 1]} : vector<8x64xf32> to vector<8x32xf32>
    %107 = vector.extract_strided_slice %94 {offsets = [0, 64], sizes = [8, 32], strides = [1, 1]} : vector<8x96xf32> to vector<8x32xf32>
    %108 = vector.extract_strided_slice %96 {offsets = [0, 64], sizes = [8, 32], strides = [1, 1]} : vector<8x96xf32> to vector<8x32xf32>
    %109 = vector.broadcast %15 : vector<1x32xf32> to vector<8x32xf32>
    %110 = arith.addf %108, %109 : vector<8x32xf32>
    %111 = arith.mulf %105, %110 : vector<8x32xf32>
    %112 = arith.addf %107, %111 : vector<8x32xf32>
    %113 = math.tanh %112 : vector<8x32xf32>
    %114 = arith.subf %77, %113 : vector<8x32xf32>
    %115 = arith.mulf %106, %114 : vector<8x32xf32>
    %116 = arith.addf %113, %115 : vector<8x32xf32>
    %117 = arith.index_cast %92 : i32 to index
    %c0_40 = arith.constant 0 : index
    %118 = vector.load %arg21[%117, %c0_40] : memref<64x96xf32, #tpu.memory_space<vmem>>, vector<8x96xf32>
    %119 = arith.truncf %83 : vector<8x32xf32> to vector<8x32xbf16>
    %cst_41 = arith.constant dense<0.000000e+00> : vector<8x96xf32>
    %120 = tpu.matmul %119, %14, %cst_41 {dimension_numbers = #tpu.dot_dimension_numbers<[1], [0], [0], [1], [0, 0, 1, 1], [], []>} : vector<8x32xbf16>, vector<32x96xbf16>, vector<8x96xf32> -> vector<8x96xf32>
    %121 = vector.extract_strided_slice %118 {offsets = [0, 0], sizes = [8, 64], strides = [1, 1]} : vector<8x96xf32> to vector<8x64xf32>
    %122 = vector.extract_strided_slice %120 {offsets = [0, 0], sizes = [8, 64], strides = [1, 1]} : vector<8x96xf32> to vector<8x64xf32>
    %123 = arith.addf %121, %122 : vector<8x64xf32>
    %124 = arith.negf %123 : vector<8x64xf32>
    %125 = math.exp %124 : vector<8x64xf32>
    %cst_42 = arith.constant 1.000000e+00 : f32
    %126 = vector.broadcast %cst_42 : f32 to vector<8x64xf32>
    %127 = arith.addf %126, %125 : vector<8x64xf32>
    %128 = arith.divf %126, %127 : vector<8x64xf32>
    %129 = vector.extract_strided_slice %128 {offsets = [0, 0], sizes = [8, 32], strides = [1, 1]} : vector<8x64xf32> to vector<8x32xf32>
    %130 = vector.extract_strided_slice %128 {offsets = [0, 32], sizes = [8, 32], strides = [1, 1]} : vector<8x64xf32> to vector<8x32xf32>
    %131 = vector.extract_strided_slice %118 {offsets = [0, 64], sizes = [8, 32], strides = [1, 1]} : vector<8x96xf32> to vector<8x32xf32>
    %132 = vector.extract_strided_slice %120 {offsets = [0, 64], sizes = [8, 32], strides = [1, 1]} : vector<8x96xf32> to vector<8x32xf32>
    %133 = vector.broadcast %16 : vector<1x32xf32> to vector<8x32xf32>
    %134 = arith.addf %132, %133 : vector<8x32xf32>
    %135 = arith.mulf %129, %134 : vector<8x32xf32>
    %136 = arith.addf %131, %135 : vector<8x32xf32>
    %137 = math.tanh %136 : vector<8x32xf32>
    %138 = arith.subf %83, %137 : vector<8x32xf32>
    %139 = arith.mulf %130, %138 : vector<8x32xf32>
    %140 = arith.addf %137, %139 : vector<8x32xf32>
    %141 = arith.sitofp %c1_i32 : i32 to f32
    %142 = vector.broadcast %141 : f32 to vector<8x1xf32>
    %143 = arith.cmpf ogt, %17, %142 : vector<8x1xf32>
    %144 = vector.shape_cast %143 : vector<8x1xi1> to vector<8x1xi1>
    %145 = vector.broadcast %144 : vector<8x1xi1> to vector<8x32xi1>
    %146 = arith.select %145, %116, %77 : vector<8x32xi1>, vector<8x32xf32>
    %147 = arith.sitofp %88 : i32 to f32
    %148 = vector.broadcast %147 : f32 to vector<8x1xf32>
    %149 = arith.cmpf ogt, %17, %148 : vector<8x1xf32>
    %150 = vector.shape_cast %149 : vector<8x1xi1> to vector<8x1xi1>
    %151 = vector.broadcast %150 : vector<8x1xi1> to vector<8x32xi1>
    %152 = arith.select %151, %140, %83 : vector<8x32xi1>, vector<8x32xf32>
    %153 = arith.index_cast %90 : i32 to index
    %c0_43 = arith.constant 0 : index
    %154 = vector.load %arg22[%153, %c0_43] : memref<64x32xf32, #tpu.memory_space<vmem>>, vector<8x32xf32>
    tpu.vector_store %arg22[%153, %c0_43], %146 {strides = array<i32>} : memref<64x32xf32, #tpu.memory_space<vmem>>, vector<8x32xf32>,
    %155 = arith.index_cast %92 : i32 to index
    %c0_44 = arith.constant 0 : index
    %156 = vector.load %arg23[%155, %c0_44] : memref<64x32xf32, #tpu.memory_space<vmem>>, vector<8x32xf32>
    tpu.vector_store %arg23[%155, %c0_44], %152 {strides = array<i32>} : memref<64x32xf32, #tpu.memory_space<vmem>>, vector<8x32xf32>,
    %c2_i32 = arith.constant 2 : i32
    %c7_i32_45 = arith.constant 7 : i32
    %157 = arith.subi %c7_i32_45, %c2_i32 : i32
    %c8_i32_46 = arith.constant 8 : i32
    %158 = arith.muli %c2_i32, %c8_i32_46 : i32
    %159 = tpu.assume_multiple %158, 8 : i32
    %c8_i32_47 = arith.constant 8 : i32
    %160 = arith.muli %157, %c8_i32_47 : i32
    %161 = tpu.assume_multiple %160, 8 : i32
    %162 = arith.index_cast %159 : i32 to index
    %c0_48 = arith.constant 0 : index
    %163 = vector.load %arg20[%162, %c0_48] : memref<64x96xf32, #tpu.memory_space<vmem>>, vector<8x96xf32>
    %164 = arith.truncf %146 : vector<8x32xf32> to vector<8x32xbf16>
    %cst_49 = arith.constant dense<0.000000e+00> : vector<8x96xf32>
    %165 = tpu.matmul %164, %13, %cst_49 {dimension_numbers = #tpu.dot_dimension_numbers<[1], [0], [0], [1], [0, 0, 1, 1], [], []>} : vector<8x32xbf16>, vector<32x96xbf16>, vector<8x96xf32> -> vector<8x96xf32>
    %166 = vector.extract_strided_slice %163 {offsets = [0, 0], sizes = [8, 64], strides = [1, 1]} : vector<8x96xf32> to vector<8x64xf32>
    %167 = vector.extract_strided_slice %165 {offsets = [0, 0], sizes = [8, 64], strides = [1, 1]} : vector<8x96xf32> to vector<8x64xf32>
    %168 = arith.addf %166, %167 : vector<8x64xf32>
    %169 = arith.negf %168 : vector<8x64xf32>
    %170 = math.exp %169 : vector<8x64xf32>
    %cst_50 = arith.constant 1.000000e+00 : f32
    %171 = vector.broadcast %cst_50 : f32 to vector<8x64xf32>
    %172 = arith.addf %171, %170 : vector<8x64xf32>
    %173 = arith.divf %171, %172 : vector<8x64xf32>
    %174 = vector.extract_strided_slice %173 {offsets = [0, 0], sizes = [8, 32], strides = [1, 1]} : vector<8x64xf32> to vector<8x32xf32>
    %175 = vector.extract_strided_slice %173 {offsets = [0, 32], sizes = [8, 32], strides = [1, 1]} : vector<8x64xf32> to vector<8x32xf32>
    %176 = vector.extract_strided_slice %163 {offsets = [0, 64], sizes = [8, 32], strides = [1, 1]} : vector<8x96xf32> to vector<8x32xf32>
    %177 = vector.extract_strided_slice %165 {offsets = [0, 64], sizes = [8, 32], strides = [1, 1]} : vector<8x96xf32> to vector<8x32xf32>
    %178 = vector.broadcast %15 : vector<1x32xf32> to vector<8x32xf32>
    %179 = arith.addf %177, %178 : vector<8x32xf32>
    %180 = arith.mulf %174, %179 : vector<8x32xf32>
    %181 = arith.addf %176, %180 : vector<8x32xf32>
    %182 = math.tanh %181 : vector<8x32xf32>
    %183 = arith.subf %146, %182 : vector<8x32xf32>
    %184 = arith.mulf %175, %183 : vector<8x32xf32>
    %185 = arith.addf %182, %184 : vector<8x32xf32>
    %186 = arith.index_cast %161 : i32 to index
    %c0_51 = arith.constant 0 : index
    %187 = vector.load %arg21[%186, %c0_51] : memref<64x96xf32, #tpu.memory_space<vmem>>, vector<8x96xf32>
    %188 = arith.truncf %152 : vector<8x32xf32> to vector<8x32xbf16>
    %cst_52 = arith.constant dense<0.000000e+00> : vector<8x96xf32>
    %189 = tpu.matmul %188, %14, %cst_52 {dimension_numbers = #tpu.dot_dimension_numbers<[1], [0], [0], [1], [0, 0, 1, 1], [], []>} : vector<8x32xbf16>, vector<32x96xbf16>, vector<8x96xf32> -> vector<8x96xf32>
    %190 = vector.extract_strided_slice %187 {offsets = [0, 0], sizes = [8, 64], strides = [1, 1]} : vector<8x96xf32> to vector<8x64xf32>
    %191 = vector.extract_strided_slice %189 {offsets = [0, 0], sizes = [8, 64], strides = [1, 1]} : vector<8x96xf32> to vector<8x64xf32>
    %192 = arith.addf %190, %191 : vector<8x64xf32>
    %193 = arith.negf %192 : vector<8x64xf32>
    %194 = math.exp %193 : vector<8x64xf32>
    %cst_53 = arith.constant 1.000000e+00 : f32
    %195 = vector.broadcast %cst_53 : f32 to vector<8x64xf32>
    %196 = arith.addf %195, %194 : vector<8x64xf32>
    %197 = arith.divf %195, %196 : vector<8x64xf32>
    %198 = vector.extract_strided_slice %197 {offsets = [0, 0], sizes = [8, 32], strides = [1, 1]} : vector<8x64xf32> to vector<8x32xf32>
    %199 = vector.extract_strided_slice %197 {offsets = [0, 32], sizes = [8, 32], strides = [1, 1]} : vector<8x64xf32> to vector<8x32xf32>
    %200 = vector.extract_strided_slice %187 {offsets = [0, 64], sizes = [8, 32], strides = [1, 1]} : vector<8x96xf32> to vector<8x32xf32>
    %201 = vector.extract_strided_slice %189 {offsets = [0, 64], sizes = [8, 32], strides = [1, 1]} : vector<8x96xf32> to vector<8x32xf32>
    %202 = vector.broadcast %16 : vector<1x32xf32> to vector<8x32xf32>
    %203 = arith.addf %201, %202 : vector<8x32xf32>
    %204 = arith.mulf %198, %203 : vector<8x32xf32>
    %205 = arith.addf %200, %204 : vector<8x32xf32>
    %206 = math.tanh %205 : vector<8x32xf32>
    %207 = arith.subf %152, %206 : vector<8x32xf32>
    %208 = arith.mulf %199, %207 : vector<8x32xf32>
    %209 = arith.addf %206, %208 : vector<8x32xf32>
    %210 = arith.sitofp %c2_i32 : i32 to f32
    %211 = vector.broadcast %210 : f32 to vector<8x1xf32>
    %212 = arith.cmpf ogt, %17, %211 : vector<8x1xf32>
    %213 = vector.shape_cast %212 : vector<8x1xi1> to vector<8x1xi1>
    %214 = vector.broadcast %213 : vector<8x1xi1> to vector<8x32xi1>
    %215 = arith.select %214, %185, %146 : vector<8x32xi1>, vector<8x32xf32>
    %216 = arith.sitofp %157 : i32 to f32
    %217 = vector.broadcast %216 : f32 to vector<8x1xf32>
    %218 = arith.cmpf ogt, %17, %217 : vector<8x1xf32>
    %219 = vector.shape_cast %218 : vector<8x1xi1> to vector<8x1xi1>
    %220 = vector.broadcast %219 : vector<8x1xi1> to vector<8x32xi1>
    %221 = arith.select %220, %209, %152 : vector<8x32xi1>, vector<8x32xf32>
    %222 = arith.index_cast %159 : i32 to index
    %c0_54 = arith.constant 0 : index
    %223 = vector.load %arg22[%222, %c0_54] : memref<64x32xf32, #tpu.memory_space<vmem>>, vector<8x32xf32>
    tpu.vector_store %arg22[%222, %c0_54], %215 {strides = array<i32>} : memref<64x32xf32, #tpu.memory_space<vmem>>, vector<8x32xf32>,
    %224 = arith.index_cast %161 : i32 to index
    %c0_55 = arith.constant 0 : index
    %225 = vector.load %arg23[%224, %c0_55] : memref<64x32xf32, #tpu.memory_space<vmem>>, vector<8x32xf32>
    tpu.vector_store %arg23[%224, %c0_55], %221 {strides = array<i32>} : memref<64x32xf32, #tpu.memory_space<vmem>>, vector<8x32xf32>,
    %c3_i32 = arith.constant 3 : i32
    %c7_i32_56 = arith.constant 7 : i32
    %226 = arith.subi %c7_i32_56, %c3_i32 : i32
    %c8_i32_57 = arith.constant 8 : i32
    %227 = arith.muli %c3_i32, %c8_i32_57 : i32
    %228 = tpu.assume_multiple %227, 8 : i32
    %c8_i32_58 = arith.constant 8 : i32
    %229 = arith.muli %226, %c8_i32_58 : i32
    %230 = tpu.assume_multiple %229, 8 : i32
    %231 = arith.index_cast %228 : i32 to index
    %c0_59 = arith.constant 0 : index
    %232 = vector.load %arg20[%231, %c0_59] : memref<64x96xf32, #tpu.memory_space<vmem>>, vector<8x96xf32>
    %233 = arith.truncf %215 : vector<8x32xf32> to vector<8x32xbf16>
    %cst_60 = arith.constant dense<0.000000e+00> : vector<8x96xf32>
    %234 = tpu.matmul %233, %13, %cst_60 {dimension_numbers = #tpu.dot_dimension_numbers<[1], [0], [0], [1], [0, 0, 1, 1], [], []>} : vector<8x32xbf16>, vector<32x96xbf16>, vector<8x96xf32> -> vector<8x96xf32>
    %235 = vector.extract_strided_slice %232 {offsets = [0, 0], sizes = [8, 64], strides = [1, 1]} : vector<8x96xf32> to vector<8x64xf32>
    %236 = vector.extract_strided_slice %234 {offsets = [0, 0], sizes = [8, 64], strides = [1, 1]} : vector<8x96xf32> to vector<8x64xf32>
    %237 = arith.addf %235, %236 : vector<8x64xf32>
    %238 = arith.negf %237 : vector<8x64xf32>
    %239 = math.exp %238 : vector<8x64xf32>
    %cst_61 = arith.constant 1.000000e+00 : f32
    %240 = vector.broadcast %cst_61 : f32 to vector<8x64xf32>
    %241 = arith.addf %240, %239 : vector<8x64xf32>
    %242 = arith.divf %240, %241 : vector<8x64xf32>
    %243 = vector.extract_strided_slice %242 {offsets = [0, 0], sizes = [8, 32], strides = [1, 1]} : vector<8x64xf32> to vector<8x32xf32>
    %244 = vector.extract_strided_slice %242 {offsets = [0, 32], sizes = [8, 32], strides = [1, 1]} : vector<8x64xf32> to vector<8x32xf32>
    %245 = vector.extract_strided_slice %232 {offsets = [0, 64], sizes = [8, 32], strides = [1, 1]} : vector<8x96xf32> to vector<8x32xf32>
    %246 = vector.extract_strided_slice %234 {offsets = [0, 64], sizes = [8, 32], strides = [1, 1]} : vector<8x96xf32> to vector<8x32xf32>
    %247 = vector.broadcast %15 : vector<1x32xf32> to vector<8x32xf32>
    %248 = arith.addf %246, %247 : vector<8x32xf32>
    %249 = arith.mulf %243, %248 : vector<8x32xf32>
    %250 = arith.addf %245, %249 : vector<8x32xf32>
    %251 = math.tanh %250 : vector<8x32xf32>
    %252 = arith.subf %215, %251 : vector<8x32xf32>
    %253 = arith.mulf %244, %252 : vector<8x32xf32>
    %254 = arith.addf %251, %253 : vector<8x32xf32>
    %255 = arith.index_cast %230 : i32 to index
    %c0_62 = arith.constant 0 : index
    %256 = vector.load %arg21[%255, %c0_62] : memref<64x96xf32, #tpu.memory_space<vmem>>, vector<8x96xf32>
    %257 = arith.truncf %221 : vector<8x32xf32> to vector<8x32xbf16>
    %cst_63 = arith.constant dense<0.000000e+00> : vector<8x96xf32>
    %258 = tpu.matmul %257, %14, %cst_63 {dimension_numbers = #tpu.dot_dimension_numbers<[1], [0], [0], [1], [0, 0, 1, 1], [], []>} : vector<8x32xbf16>, vector<32x96xbf16>, vector<8x96xf32> -> vector<8x96xf32>
    %259 = vector.extract_strided_slice %256 {offsets = [0, 0], sizes = [8, 64], strides = [1, 1]} : vector<8x96xf32> to vector<8x64xf32>
    %260 = vector.extract_strided_slice %258 {offsets = [0, 0], sizes = [8, 64], strides = [1, 1]} : vector<8x96xf32> to vector<8x64xf32>
    %261 = arith.addf %259, %260 : vector<8x64xf32>
    %262 = arith.negf %261 : vector<8x64xf32>
    %263 = math.exp %262 : vector<8x64xf32>
    %cst_64 = arith.constant 1.000000e+00 : f32
    %264 = vector.broadcast %cst_64 : f32 to vector<8x64xf32>
    %265 = arith.addf %264, %263 : vector<8x64xf32>
    %266 = arith.divf %264, %265 : vector<8x64xf32>
    %267 = vector.extract_strided_slice %266 {offsets = [0, 0], sizes = [8, 32], strides = [1, 1]} : vector<8x64xf32> to vector<8x32xf32>
    %268 = vector.extract_strided_slice %266 {offsets = [0, 32], sizes = [8, 32], strides = [1, 1]} : vector<8x64xf32> to vector<8x32xf32>
    %269 = vector.extract_strided_slice %256 {offsets = [0, 64], sizes = [8, 32], strides = [1, 1]} : vector<8x96xf32> to vector<8x32xf32>
    %270 = vector.extract_strided_slice %258 {offsets = [0, 64], sizes = [8, 32], strides = [1, 1]} : vector<8x96xf32> to vector<8x32xf32>
    %271 = vector.broadcast %16 : vector<1x32xf32> to vector<8x32xf32>
    %272 = arith.addf %270, %271 : vector<8x32xf32>
    %273 = arith.mulf %267, %272 : vector<8x32xf32>
    %274 = arith.addf %269, %273 : vector<8x32xf32>
    %275 = math.tanh %274 : vector<8x32xf32>
    %276 = arith.subf %221, %275 : vector<8x32xf32>
    %277 = arith.mulf %268, %276 : vector<8x32xf32>
    %278 = arith.addf %275, %277 : vector<8x32xf32>
    %279 = arith.sitofp %c3_i32 : i32 to f32
    %280 = vector.broadcast %279 : f32 to vector<8x1xf32>
    %281 = arith.cmpf ogt, %17, %280 : vector<8x1xf32>
    %282 = vector.shape_cast %281 : vector<8x1xi1> to vector<8x1xi1>
    %283 = vector.broadcast %282 : vector<8x1xi1> to vector<8x32xi1>
    %284 = arith.select %283, %254, %215 : vector<8x32xi1>, vector<8x32xf32>
    %285 = arith.sitofp %226 : i32 to f32
    %286 = vector.broadcast %285 : f32 to vector<8x1xf32>
    %287 = arith.cmpf ogt, %17, %286 : vector<8x1xf32>
    %288 = vector.shape_cast %287 : vector<8x1xi1> to vector<8x1xi1>
    %289 = vector.broadcast %288 : vector<8x1xi1> to vector<8x32xi1>
    %290 = arith.select %289, %278, %221 : vector<8x32xi1>, vector<8x32xf32>
    %291 = arith.index_cast %228 : i32 to index
    %c0_65 = arith.constant 0 : index
    %292 = vector.load %arg22[%291, %c0_65] : memref<64x32xf32, #tpu.memory_space<vmem>>, vector<8x32xf32>
    tpu.vector_store %arg22[%291, %c0_65], %284 {strides = array<i32>} : memref<64x32xf32, #tpu.memory_space<vmem>>, vector<8x32xf32>,
    %293 = arith.index_cast %230 : i32 to index
    %c0_66 = arith.constant 0 : index
    %294 = vector.load %arg23[%293, %c0_66] : memref<64x32xf32, #tpu.memory_space<vmem>>, vector<8x32xf32>
    tpu.vector_store %arg23[%293, %c0_66], %290 {strides = array<i32>} : memref<64x32xf32, #tpu.memory_space<vmem>>, vector<8x32xf32>,
    %c4_i32 = arith.constant 4 : i32
    %c7_i32_67 = arith.constant 7 : i32
    %295 = arith.subi %c7_i32_67, %c4_i32 : i32
    %c8_i32_68 = arith.constant 8 : i32
    %296 = arith.muli %c4_i32, %c8_i32_68 : i32
    %297 = tpu.assume_multiple %296, 8 : i32
    %c8_i32_69 = arith.constant 8 : i32
    %298 = arith.muli %295, %c8_i32_69 : i32
    %299 = tpu.assume_multiple %298, 8 : i32
    %300 = arith.index_cast %297 : i32 to index
    %c0_70 = arith.constant 0 : index
    %301 = vector.load %arg20[%300, %c0_70] : memref<64x96xf32, #tpu.memory_space<vmem>>, vector<8x96xf32>
    %302 = arith.truncf %284 : vector<8x32xf32> to vector<8x32xbf16>
    %cst_71 = arith.constant dense<0.000000e+00> : vector<8x96xf32>
    %303 = tpu.matmul %302, %13, %cst_71 {dimension_numbers = #tpu.dot_dimension_numbers<[1], [0], [0], [1], [0, 0, 1, 1], [], []>} : vector<8x32xbf16>, vector<32x96xbf16>, vector<8x96xf32> -> vector<8x96xf32>
    %304 = vector.extract_strided_slice %301 {offsets = [0, 0], sizes = [8, 64], strides = [1, 1]} : vector<8x96xf32> to vector<8x64xf32>
    %305 = vector.extract_strided_slice %303 {offsets = [0, 0], sizes = [8, 64], strides = [1, 1]} : vector<8x96xf32> to vector<8x64xf32>
    %306 = arith.addf %304, %305 : vector<8x64xf32>
    %307 = arith.negf %306 : vector<8x64xf32>
    %308 = math.exp %307 : vector<8x64xf32>
    %cst_72 = arith.constant 1.000000e+00 : f32
    %309 = vector.broadcast %cst_72 : f32 to vector<8x64xf32>
    %310 = arith.addf %309, %308 : vector<8x64xf32>
    %311 = arith.divf %309, %310 : vector<8x64xf32>
    %312 = vector.extract_strided_slice %311 {offsets = [0, 0], sizes = [8, 32], strides = [1, 1]} : vector<8x64xf32> to vector<8x32xf32>
    %313 = vector.extract_strided_slice %311 {offsets = [0, 32], sizes = [8, 32], strides = [1, 1]} : vector<8x64xf32> to vector<8x32xf32>
    %314 = vector.extract_strided_slice %301 {offsets = [0, 64], sizes = [8, 32], strides = [1, 1]} : vector<8x96xf32> to vector<8x32xf32>
    %315 = vector.extract_strided_slice %303 {offsets = [0, 64], sizes = [8, 32], strides = [1, 1]} : vector<8x96xf32> to vector<8x32xf32>
    %316 = vector.broadcast %15 : vector<1x32xf32> to vector<8x32xf32>
    %317 = arith.addf %315, %316 : vector<8x32xf32>
    %318 = arith.mulf %312, %317 : vector<8x32xf32>
    %319 = arith.addf %314, %318 : vector<8x32xf32>
    %320 = math.tanh %319 : vector<8x32xf32>
    %321 = arith.subf %284, %320 : vector<8x32xf32>
    %322 = arith.mulf %313, %321 : vector<8x32xf32>
    %323 = arith.addf %320, %322 : vector<8x32xf32>
    %324 = arith.index_cast %299 : i32 to index
    %c0_73 = arith.constant 0 : index
    %325 = vector.load %arg21[%324, %c0_73] : memref<64x96xf32, #tpu.memory_space<vmem>>, vector<8x96xf32>
    %326 = arith.truncf %290 : vector<8x32xf32> to vector<8x32xbf16>
    %cst_74 = arith.constant dense<0.000000e+00> : vector<8x96xf32>
    %327 = tpu.matmul %326, %14, %cst_74 {dimension_numbers = #tpu.dot_dimension_numbers<[1], [0], [0], [1], [0, 0, 1, 1], [], []>} : vector<8x32xbf16>, vector<32x96xbf16>, vector<8x96xf32> -> vector<8x96xf32>
    %328 = vector.extract_strided_slice %325 {offsets = [0, 0], sizes = [8, 64], strides = [1, 1]} : vector<8x96xf32> to vector<8x64xf32>
    %329 = vector.extract_strided_slice %327 {offsets = [0, 0], sizes = [8, 64], strides = [1, 1]} : vector<8x96xf32> to vector<8x64xf32>
    %330 = arith.addf %328, %329 : vector<8x64xf32>
    %331 = arith.negf %330 : vector<8x64xf32>
    %332 = math.exp %331 : vector<8x64xf32>
    %cst_75 = arith.constant 1.000000e+00 : f32
    %333 = vector.broadcast %cst_75 : f32 to vector<8x64xf32>
    %334 = arith.addf %333, %332 : vector<8x64xf32>
    %335 = arith.divf %333, %334 : vector<8x64xf32>
    %336 = vector.extract_strided_slice %335 {offsets = [0, 0], sizes = [8, 32], strides = [1, 1]} : vector<8x64xf32> to vector<8x32xf32>
    %337 = vector.extract_strided_slice %335 {offsets = [0, 32], sizes = [8, 32], strides = [1, 1]} : vector<8x64xf32> to vector<8x32xf32>
    %338 = vector.extract_strided_slice %325 {offsets = [0, 64], sizes = [8, 32], strides = [1, 1]} : vector<8x96xf32> to vector<8x32xf32>
    %339 = vector.extract_strided_slice %327 {offsets = [0, 64], sizes = [8, 32], strides = [1, 1]} : vector<8x96xf32> to vector<8x32xf32>
    %340 = vector.broadcast %16 : vector<1x32xf32> to vector<8x32xf32>
    %341 = arith.addf %339, %340 : vector<8x32xf32>
    %342 = arith.mulf %336, %341 : vector<8x32xf32>
    %343 = arith.addf %338, %342 : vector<8x32xf32>
    %344 = math.tanh %343 : vector<8x32xf32>
    %345 = arith.subf %290, %344 : vector<8x32xf32>
    %346 = arith.mulf %337, %345 : vector<8x32xf32>
    %347 = arith.addf %344, %346 : vector<8x32xf32>
    %348 = arith.sitofp %c4_i32 : i32 to f32
    %349 = vector.broadcast %348 : f32 to vector<8x1xf32>
    %350 = arith.cmpf ogt, %17, %349 : vector<8x1xf32>
    %351 = vector.shape_cast %350 : vector<8x1xi1> to vector<8x1xi1>
    %352 = vector.broadcast %351 : vector<8x1xi1> to vector<8x32xi1>
    %353 = arith.select %352, %323, %284 : vector<8x32xi1>, vector<8x32xf32>
    %354 = arith.sitofp %295 : i32 to f32
    %355 = vector.broadcast %354 : f32 to vector<8x1xf32>
    %356 = arith.cmpf ogt, %17, %355 : vector<8x1xf32>
    %357 = vector.shape_cast %356 : vector<8x1xi1> to vector<8x1xi1>
    %358 = vector.broadcast %357 : vector<8x1xi1> to vector<8x32xi1>
    %359 = arith.select %358, %347, %290 : vector<8x32xi1>, vector<8x32xf32>
    %360 = arith.index_cast %297 : i32 to index
    %c0_76 = arith.constant 0 : index
    %361 = vector.load %arg22[%360, %c0_76] : memref<64x32xf32, #tpu.memory_space<vmem>>, vector<8x32xf32>
    tpu.vector_store %arg22[%360, %c0_76], %353 {strides = array<i32>} : memref<64x32xf32, #tpu.memory_space<vmem>>, vector<8x32xf32>,
    %362 = arith.index_cast %299 : i32 to index
    %c0_77 = arith.constant 0 : index
    %363 = vector.load %arg23[%362, %c0_77] : memref<64x32xf32, #tpu.memory_space<vmem>>, vector<8x32xf32>
    tpu.vector_store %arg23[%362, %c0_77], %359 {strides = array<i32>} : memref<64x32xf32, #tpu.memory_space<vmem>>, vector<8x32xf32>,
    %c5_i32 = arith.constant 5 : i32
    %c7_i32_78 = arith.constant 7 : i32
    %364 = arith.subi %c7_i32_78, %c5_i32 : i32
    %c8_i32_79 = arith.constant 8 : i32
    %365 = arith.muli %c5_i32, %c8_i32_79 : i32
    %366 = tpu.assume_multiple %365, 8 : i32
    %c8_i32_80 = arith.constant 8 : i32
    %367 = arith.muli %364, %c8_i32_80 : i32
    %368 = tpu.assume_multiple %367, 8 : i32
    %369 = arith.index_cast %366 : i32 to index
    %c0_81 = arith.constant 0 : index
    %370 = vector.load %arg20[%369, %c0_81] : memref<64x96xf32, #tpu.memory_space<vmem>>, vector<8x96xf32>
    %371 = arith.truncf %353 : vector<8x32xf32> to vector<8x32xbf16>
    %cst_82 = arith.constant dense<0.000000e+00> : vector<8x96xf32>
    %372 = tpu.matmul %371, %13, %cst_82 {dimension_numbers = #tpu.dot_dimension_numbers<[1], [0], [0], [1], [0, 0, 1, 1], [], []>} : vector<8x32xbf16>, vector<32x96xbf16>, vector<8x96xf32> -> vector<8x96xf32>
    %373 = vector.extract_strided_slice %370 {offsets = [0, 0], sizes = [8, 64], strides = [1, 1]} : vector<8x96xf32> to vector<8x64xf32>
    %374 = vector.extract_strided_slice %372 {offsets = [0, 0], sizes = [8, 64], strides = [1, 1]} : vector<8x96xf32> to vector<8x64xf32>
    %375 = arith.addf %373, %374 : vector<8x64xf32>
    %376 = arith.negf %375 : vector<8x64xf32>
    %377 = math.exp %376 : vector<8x64xf32>
    %cst_83 = arith.constant 1.000000e+00 : f32
    %378 = vector.broadcast %cst_83 : f32 to vector<8x64xf32>
    %379 = arith.addf %378, %377 : vector<8x64xf32>
    %380 = arith.divf %378, %379 : vector<8x64xf32>
    %381 = vector.extract_strided_slice %380 {offsets = [0, 0], sizes = [8, 32], strides = [1, 1]} : vector<8x64xf32> to vector<8x32xf32>
    %382 = vector.extract_strided_slice %380 {offsets = [0, 32], sizes = [8, 32], strides = [1, 1]} : vector<8x64xf32> to vector<8x32xf32>
    %383 = vector.extract_strided_slice %370 {offsets = [0, 64], sizes = [8, 32], strides = [1, 1]} : vector<8x96xf32> to vector<8x32xf32>
    %384 = vector.extract_strided_slice %372 {offsets = [0, 64], sizes = [8, 32], strides = [1, 1]} : vector<8x96xf32> to vector<8x32xf32>
    %385 = vector.broadcast %15 : vector<1x32xf32> to vector<8x32xf32>
    %386 = arith.addf %384, %385 : vector<8x32xf32>
    %387 = arith.mulf %381, %386 : vector<8x32xf32>
    %388 = arith.addf %383, %387 : vector<8x32xf32>
    %389 = math.tanh %388 : vector<8x32xf32>
    %390 = arith.subf %353, %389 : vector<8x32xf32>
    %391 = arith.mulf %382, %390 : vector<8x32xf32>
    %392 = arith.addf %389, %391 : vector<8x32xf32>
    %393 = arith.index_cast %368 : i32 to index
    %c0_84 = arith.constant 0 : index
    %394 = vector.load %arg21[%393, %c0_84] : memref<64x96xf32, #tpu.memory_space<vmem>>, vector<8x96xf32>
    %395 = arith.truncf %359 : vector<8x32xf32> to vector<8x32xbf16>
    %cst_85 = arith.constant dense<0.000000e+00> : vector<8x96xf32>
    %396 = tpu.matmul %395, %14, %cst_85 {dimension_numbers = #tpu.dot_dimension_numbers<[1], [0], [0], [1], [0, 0, 1, 1], [], []>} : vector<8x32xbf16>, vector<32x96xbf16>, vector<8x96xf32> -> vector<8x96xf32>
    %397 = vector.extract_strided_slice %394 {offsets = [0, 0], sizes = [8, 64], strides = [1, 1]} : vector<8x96xf32> to vector<8x64xf32>
    %398 = vector.extract_strided_slice %396 {offsets = [0, 0], sizes = [8, 64], strides = [1, 1]} : vector<8x96xf32> to vector<8x64xf32>
    %399 = arith.addf %397, %398 : vector<8x64xf32>
    %400 = arith.negf %399 : vector<8x64xf32>
    %401 = math.exp %400 : vector<8x64xf32>
    %cst_86 = arith.constant 1.000000e+00 : f32
    %402 = vector.broadcast %cst_86 : f32 to vector<8x64xf32>
    %403 = arith.addf %402, %401 : vector<8x64xf32>
    %404 = arith.divf %402, %403 : vector<8x64xf32>
    %405 = vector.extract_strided_slice %404 {offsets = [0, 0], sizes = [8, 32], strides = [1, 1]} : vector<8x64xf32> to vector<8x32xf32>
    %406 = vector.extract_strided_slice %404 {offsets = [0, 32], sizes = [8, 32], strides = [1, 1]} : vector<8x64xf32> to vector<8x32xf32>
    %407 = vector.extract_strided_slice %394 {offsets = [0, 64], sizes = [8, 32], strides = [1, 1]} : vector<8x96xf32> to vector<8x32xf32>
    %408 = vector.extract_strided_slice %396 {offsets = [0, 64], sizes = [8, 32], strides = [1, 1]} : vector<8x96xf32> to vector<8x32xf32>
    %409 = vector.broadcast %16 : vector<1x32xf32> to vector<8x32xf32>
    %410 = arith.addf %408, %409 : vector<8x32xf32>
    %411 = arith.mulf %405, %410 : vector<8x32xf32>
    %412 = arith.addf %407, %411 : vector<8x32xf32>
    %413 = math.tanh %412 : vector<8x32xf32>
    %414 = arith.subf %359, %413 : vector<8x32xf32>
    %415 = arith.mulf %406, %414 : vector<8x32xf32>
    %416 = arith.addf %413, %415 : vector<8x32xf32>
    %417 = arith.sitofp %c5_i32 : i32 to f32
    %418 = vector.broadcast %417 : f32 to vector<8x1xf32>
    %419 = arith.cmpf ogt, %17, %418 : vector<8x1xf32>
    %420 = vector.shape_cast %419 : vector<8x1xi1> to vector<8x1xi1>
    %421 = vector.broadcast %420 : vector<8x1xi1> to vector<8x32xi1>
    %422 = arith.select %421, %392, %353 : vector<8x32xi1>, vector<8x32xf32>
    %423 = arith.sitofp %364 : i32 to f32
    %424 = vector.broadcast %423 : f32 to vector<8x1xf32>
    %425 = arith.cmpf ogt, %17, %424 : vector<8x1xf32>
    %426 = vector.shape_cast %425 : vector<8x1xi1> to vector<8x1xi1>
    %427 = vector.broadcast %426 : vector<8x1xi1> to vector<8x32xi1>
    %428 = arith.select %427, %416, %359 : vector<8x32xi1>, vector<8x32xf32>
    %429 = arith.index_cast %366 : i32 to index
    %c0_87 = arith.constant 0 : index
    %430 = vector.load %arg22[%429, %c0_87] : memref<64x32xf32, #tpu.memory_space<vmem>>, vector<8x32xf32>
    tpu.vector_store %arg22[%429, %c0_87], %422 {strides = array<i32>} : memref<64x32xf32, #tpu.memory_space<vmem>>, vector<8x32xf32>,
    %431 = arith.index_cast %368 : i32 to index
    %c0_88 = arith.constant 0 : index
    %432 = vector.load %arg23[%431, %c0_88] : memref<64x32xf32, #tpu.memory_space<vmem>>, vector<8x32xf32>
    tpu.vector_store %arg23[%431, %c0_88], %428 {strides = array<i32>} : memref<64x32xf32, #tpu.memory_space<vmem>>, vector<8x32xf32>,
    %c6_i32 = arith.constant 6 : i32
    %c7_i32_89 = arith.constant 7 : i32
    %433 = arith.subi %c7_i32_89, %c6_i32 : i32
    %c8_i32_90 = arith.constant 8 : i32
    %434 = arith.muli %c6_i32, %c8_i32_90 : i32
    %435 = tpu.assume_multiple %434, 8 : i32
    %c8_i32_91 = arith.constant 8 : i32
    %436 = arith.muli %433, %c8_i32_91 : i32
    %437 = tpu.assume_multiple %436, 8 : i32
    %438 = arith.index_cast %435 : i32 to index
    %c0_92 = arith.constant 0 : index
    %439 = vector.load %arg20[%438, %c0_92] : memref<64x96xf32, #tpu.memory_space<vmem>>, vector<8x96xf32>
    %440 = arith.truncf %422 : vector<8x32xf32> to vector<8x32xbf16>
    %cst_93 = arith.constant dense<0.000000e+00> : vector<8x96xf32>
    %441 = tpu.matmul %440, %13, %cst_93 {dimension_numbers = #tpu.dot_dimension_numbers<[1], [0], [0], [1], [0, 0, 1, 1], [], []>} : vector<8x32xbf16>, vector<32x96xbf16>, vector<8x96xf32> -> vector<8x96xf32>
    %442 = vector.extract_strided_slice %439 {offsets = [0, 0], sizes = [8, 64], strides = [1, 1]} : vector<8x96xf32> to vector<8x64xf32>
    %443 = vector.extract_strided_slice %441 {offsets = [0, 0], sizes = [8, 64], strides = [1, 1]} : vector<8x96xf32> to vector<8x64xf32>
    %444 = arith.addf %442, %443 : vector<8x64xf32>
    %445 = arith.negf %444 : vector<8x64xf32>
    %446 = math.exp %445 : vector<8x64xf32>
    %cst_94 = arith.constant 1.000000e+00 : f32
    %447 = vector.broadcast %cst_94 : f32 to vector<8x64xf32>
    %448 = arith.addf %447, %446 : vector<8x64xf32>
    %449 = arith.divf %447, %448 : vector<8x64xf32>
    %450 = vector.extract_strided_slice %449 {offsets = [0, 0], sizes = [8, 32], strides = [1, 1]} : vector<8x64xf32> to vector<8x32xf32>
    %451 = vector.extract_strided_slice %449 {offsets = [0, 32], sizes = [8, 32], strides = [1, 1]} : vector<8x64xf32> to vector<8x32xf32>
    %452 = vector.extract_strided_slice %439 {offsets = [0, 64], sizes = [8, 32], strides = [1, 1]} : vector<8x96xf32> to vector<8x32xf32>
    %453 = vector.extract_strided_slice %441 {offsets = [0, 64], sizes = [8, 32], strides = [1, 1]} : vector<8x96xf32> to vector<8x32xf32>
    %454 = vector.broadcast %15 : vector<1x32xf32> to vector<8x32xf32>
    %455 = arith.addf %453, %454 : vector<8x32xf32>
    %456 = arith.mulf %450, %455 : vector<8x32xf32>
    %457 = arith.addf %452, %456 : vector<8x32xf32>
    %458 = math.tanh %457 : vector<8x32xf32>
    %459 = arith.subf %422, %458 : vector<8x32xf32>
    %460 = arith.mulf %451, %459 : vector<8x32xf32>
    %461 = arith.addf %458, %460 : vector<8x32xf32>
    %462 = arith.index_cast %437 : i32 to index
    %c0_95 = arith.constant 0 : index
    %463 = vector.load %arg21[%462, %c0_95] : memref<64x96xf32, #tpu.memory_space<vmem>>, vector<8x96xf32>
    %464 = arith.truncf %428 : vector<8x32xf32> to vector<8x32xbf16>
    %cst_96 = arith.constant dense<0.000000e+00> : vector<8x96xf32>
    %465 = tpu.matmul %464, %14, %cst_96 {dimension_numbers = #tpu.dot_dimension_numbers<[1], [0], [0], [1], [0, 0, 1, 1], [], []>} : vector<8x32xbf16>, vector<32x96xbf16>, vector<8x96xf32> -> vector<8x96xf32>
    %466 = vector.extract_strided_slice %463 {offsets = [0, 0], sizes = [8, 64], strides = [1, 1]} : vector<8x96xf32> to vector<8x64xf32>
    %467 = vector.extract_strided_slice %465 {offsets = [0, 0], sizes = [8, 64], strides = [1, 1]} : vector<8x96xf32> to vector<8x64xf32>
    %468 = arith.addf %466, %467 : vector<8x64xf32>
    %469 = arith.negf %468 : vector<8x64xf32>
    %470 = math.exp %469 : vector<8x64xf32>
    %cst_97 = arith.constant 1.000000e+00 : f32
    %471 = vector.broadcast %cst_97 : f32 to vector<8x64xf32>
    %472 = arith.addf %471, %470 : vector<8x64xf32>
    %473 = arith.divf %471, %472 : vector<8x64xf32>
    %474 = vector.extract_strided_slice %473 {offsets = [0, 0], sizes = [8, 32], strides = [1, 1]} : vector<8x64xf32> to vector<8x32xf32>
    %475 = vector.extract_strided_slice %473 {offsets = [0, 32], sizes = [8, 32], strides = [1, 1]} : vector<8x64xf32> to vector<8x32xf32>
    %476 = vector.extract_strided_slice %463 {offsets = [0, 64], sizes = [8, 32], strides = [1, 1]} : vector<8x96xf32> to vector<8x32xf32>
    %477 = vector.extract_strided_slice %465 {offsets = [0, 64], sizes = [8, 32], strides = [1, 1]} : vector<8x96xf32> to vector<8x32xf32>
    %478 = vector.broadcast %16 : vector<1x32xf32> to vector<8x32xf32>
    %479 = arith.addf %477, %478 : vector<8x32xf32>
    %480 = arith.mulf %474, %479 : vector<8x32xf32>
    %481 = arith.addf %476, %480 : vector<8x32xf32>
    %482 = math.tanh %481 : vector<8x32xf32>
    %483 = arith.subf %428, %482 : vector<8x32xf32>
    %484 = arith.mulf %475, %483 : vector<8x32xf32>
    %485 = arith.addf %482, %484 : vector<8x32xf32>
    %486 = arith.sitofp %c6_i32 : i32 to f32
    %487 = vector.broadcast %486 : f32 to vector<8x1xf32>
    %488 = arith.cmpf ogt, %17, %487 : vector<8x1xf32>
    %489 = vector.shape_cast %488 : vector<8x1xi1> to vector<8x1xi1>
    %490 = vector.broadcast %489 : vector<8x1xi1> to vector<8x32xi1>
    %491 = arith.select %490, %461, %422 : vector<8x32xi1>, vector<8x32xf32>
    %492 = arith.sitofp %433 : i32 to f32
    %493 = vector.broadcast %492 : f32 to vector<8x1xf32>
    %494 = arith.cmpf ogt, %17, %493 : vector<8x1xf32>
    %495 = vector.shape_cast %494 : vector<8x1xi1> to vector<8x1xi1>
    %496 = vector.broadcast %495 : vector<8x1xi1> to vector<8x32xi1>
    %497 = arith.select %496, %485, %428 : vector<8x32xi1>, vector<8x32xf32>
    %498 = arith.index_cast %435 : i32 to index
    %c0_98 = arith.constant 0 : index
    %499 = vector.load %arg22[%498, %c0_98] : memref<64x32xf32, #tpu.memory_space<vmem>>, vector<8x32xf32>
    tpu.vector_store %arg22[%498, %c0_98], %491 {strides = array<i32>} : memref<64x32xf32, #tpu.memory_space<vmem>>, vector<8x32xf32>,
    %500 = arith.index_cast %437 : i32 to index
    %c0_99 = arith.constant 0 : index
    %501 = vector.load %arg23[%500, %c0_99] : memref<64x32xf32, #tpu.memory_space<vmem>>, vector<8x32xf32>
    tpu.vector_store %arg23[%500, %c0_99], %497 {strides = array<i32>} : memref<64x32xf32, #tpu.memory_space<vmem>>, vector<8x32xf32>,
    %c7_i32_100 = arith.constant 7 : i32
    %c7_i32_101 = arith.constant 7 : i32
    %502 = arith.subi %c7_i32_101, %c7_i32_100 : i32
    %c8_i32_102 = arith.constant 8 : i32
    %503 = arith.muli %c7_i32_100, %c8_i32_102 : i32
    %504 = tpu.assume_multiple %503, 8 : i32
    %c8_i32_103 = arith.constant 8 : i32
    %505 = arith.muli %502, %c8_i32_103 : i32
    %506 = tpu.assume_multiple %505, 8 : i32
    %507 = arith.index_cast %504 : i32 to index
    %c0_104 = arith.constant 0 : index
    %508 = vector.load %arg20[%507, %c0_104] : memref<64x96xf32, #tpu.memory_space<vmem>>, vector<8x96xf32>
    %509 = arith.truncf %491 : vector<8x32xf32> to vector<8x32xbf16>
    %cst_105 = arith.constant dense<0.000000e+00> : vector<8x96xf32>
    %510 = tpu.matmul %509, %13, %cst_105 {dimension_numbers = #tpu.dot_dimension_numbers<[1], [0], [0], [1], [0, 0, 1, 1], [], []>} : vector<8x32xbf16>, vector<32x96xbf16>, vector<8x96xf32> -> vector<8x96xf32>
    %511 = vector.extract_strided_slice %508 {offsets = [0, 0], sizes = [8, 64], strides = [1, 1]} : vector<8x96xf32> to vector<8x64xf32>
    %512 = vector.extract_strided_slice %510 {offsets = [0, 0], sizes = [8, 64], strides = [1, 1]} : vector<8x96xf32> to vector<8x64xf32>
    %513 = arith.addf %511, %512 : vector<8x64xf32>
    %514 = arith.negf %513 : vector<8x64xf32>
    %515 = math.exp %514 : vector<8x64xf32>
    %cst_106 = arith.constant 1.000000e+00 : f32
    %516 = vector.broadcast %cst_106 : f32 to vector<8x64xf32>
    %517 = arith.addf %516, %515 : vector<8x64xf32>
    %518 = arith.divf %516, %517 : vector<8x64xf32>
    %519 = vector.extract_strided_slice %518 {offsets = [0, 0], sizes = [8, 32], strides = [1, 1]} : vector<8x64xf32> to vector<8x32xf32>
    %520 = vector.extract_strided_slice %518 {offsets = [0, 32], sizes = [8, 32], strides = [1, 1]} : vector<8x64xf32> to vector<8x32xf32>
    %521 = vector.extract_strided_slice %508 {offsets = [0, 64], sizes = [8, 32], strides = [1, 1]} : vector<8x96xf32> to vector<8x32xf32>
    %522 = vector.extract_strided_slice %510 {offsets = [0, 64], sizes = [8, 32], strides = [1, 1]} : vector<8x96xf32> to vector<8x32xf32>
    %523 = vector.broadcast %15 : vector<1x32xf32> to vector<8x32xf32>
    %524 = arith.addf %522, %523 : vector<8x32xf32>
    %525 = arith.mulf %519, %524 : vector<8x32xf32>
    %526 = arith.addf %521, %525 : vector<8x32xf32>
    %527 = math.tanh %526 : vector<8x32xf32>
    %528 = arith.subf %491, %527 : vector<8x32xf32>
    %529 = arith.mulf %520, %528 : vector<8x32xf32>
    %530 = arith.addf %527, %529 : vector<8x32xf32>
    %531 = arith.index_cast %506 : i32 to index
    %c0_107 = arith.constant 0 : index
    %532 = vector.load %arg21[%531, %c0_107] : memref<64x96xf32, #tpu.memory_space<vmem>>, vector<8x96xf32>
    %533 = arith.truncf %497 : vector<8x32xf32> to vector<8x32xbf16>
    %cst_108 = arith.constant dense<0.000000e+00> : vector<8x96xf32>
    %534 = tpu.matmul %533, %14, %cst_108 {dimension_numbers = #tpu.dot_dimension_numbers<[1], [0], [0], [1], [0, 0, 1, 1], [], []>} : vector<8x32xbf16>, vector<32x96xbf16>, vector<8x96xf32> -> vector<8x96xf32>
    %535 = vector.extract_strided_slice %532 {offsets = [0, 0], sizes = [8, 64], strides = [1, 1]} : vector<8x96xf32> to vector<8x64xf32>
    %536 = vector.extract_strided_slice %534 {offsets = [0, 0], sizes = [8, 64], strides = [1, 1]} : vector<8x96xf32> to vector<8x64xf32>
    %537 = arith.addf %535, %536 : vector<8x64xf32>
    %538 = arith.negf %537 : vector<8x64xf32>
    %539 = math.exp %538 : vector<8x64xf32>
    %cst_109 = arith.constant 1.000000e+00 : f32
    %540 = vector.broadcast %cst_109 : f32 to vector<8x64xf32>
    %541 = arith.addf %540, %539 : vector<8x64xf32>
    %542 = arith.divf %540, %541 : vector<8x64xf32>
    %543 = vector.extract_strided_slice %542 {offsets = [0, 0], sizes = [8, 32], strides = [1, 1]} : vector<8x64xf32> to vector<8x32xf32>
    %544 = vector.extract_strided_slice %542 {offsets = [0, 32], sizes = [8, 32], strides = [1, 1]} : vector<8x64xf32> to vector<8x32xf32>
    %545 = vector.extract_strided_slice %532 {offsets = [0, 64], sizes = [8, 32], strides = [1, 1]} : vector<8x96xf32> to vector<8x32xf32>
    %546 = vector.extract_strided_slice %534 {offsets = [0, 64], sizes = [8, 32], strides = [1, 1]} : vector<8x96xf32> to vector<8x32xf32>
    %547 = vector.broadcast %16 : vector<1x32xf32> to vector<8x32xf32>
    %548 = arith.addf %546, %547 : vector<8x32xf32>
    %549 = arith.mulf %543, %548 : vector<8x32xf32>
    %550 = arith.addf %545, %549 : vector<8x32xf32>
    %551 = math.tanh %550 : vector<8x32xf32>
    %552 = arith.subf %497, %551 : vector<8x32xf32>
    %553 = arith.mulf %544, %552 : vector<8x32xf32>
    %554 = arith.addf %551, %553 : vector<8x32xf32>
    %555 = arith.sitofp %c7_i32_100 : i32 to f32
    %556 = vector.broadcast %555 : f32 to vector<8x1xf32>
    %557 = arith.cmpf ogt, %17, %556 : vector<8x1xf32>
    %558 = vector.shape_cast %557 : vector<8x1xi1> to vector<8x1xi1>
    %559 = vector.broadcast %558 : vector<8x1xi1> to vector<8x32xi1>
    %560 = arith.select %559, %530, %491 : vector<8x32xi1>, vector<8x32xf32>
    %561 = arith.sitofp %502 : i32 to f32
    %562 = vector.broadcast %561 : f32 to vector<8x1xf32>
    %563 = arith.cmpf ogt, %17, %562 : vector<8x1xf32>
    %564 = vector.shape_cast %563 : vector<8x1xi1> to vector<8x1xi1>
    %565 = vector.broadcast %564 : vector<8x1xi1> to vector<8x32xi1>
    %566 = arith.select %565, %554, %497 : vector<8x32xi1>, vector<8x32xf32>
    %567 = arith.index_cast %504 : i32 to index
    %c0_110 = arith.constant 0 : index
    %568 = vector.load %arg22[%567, %c0_110] : memref<64x32xf32, #tpu.memory_space<vmem>>, vector<8x32xf32>
    tpu.vector_store %arg22[%567, %c0_110], %560 {strides = array<i32>} : memref<64x32xf32, #tpu.memory_space<vmem>>, vector<8x32xf32>,
    %569 = arith.index_cast %506 : i32 to index
    %c0_111 = arith.constant 0 : index
    %570 = vector.load %arg23[%569, %c0_111] : memref<64x32xf32, #tpu.memory_space<vmem>>, vector<8x32xf32>
    tpu.vector_store %arg23[%569, %c0_111], %566 {strides = array<i32>} : memref<64x32xf32, #tpu.memory_space<vmem>>, vector<8x32xf32>,
    %c8_i32_112 = arith.constant 8 : i32
    %c0_113 = arith.constant 0 : index
    %c0_114 = arith.constant 0 : index
    %571 = vector.load %arg22[%c0_113, %c0_114] : memref<64x32xf32, #tpu.memory_space<vmem>>, vector<64x32xf32>
    %572 = arith.truncf %571 : vector<64x32xf32> to vector<64x32xbf16>
    %c0_115 = arith.constant 0 : index
    %c0_116 = arith.constant 0 : index
    %573 = vector.load %arg10[%c0_115, %c0_116] : memref<32x8xbf16, #tpu.memory_space<vmem>>, vector<32x8xbf16>
    %cst_117 = arith.constant dense<0.000000e+00> : vector<64x8xf32>
    %574 = tpu.matmul %572, %573, %cst_117 {dimension_numbers = #tpu.dot_dimension_numbers<[1], [0], [0], [1], [0, 0, 1, 1], [], []>} : vector<64x32xbf16>, vector<32x8xbf16>, vector<64x8xf32> -> vector<64x8xf32>
    %c0_118 = arith.constant 0 : index
    %c0_119 = arith.constant 0 : index
    %575 = vector.load %arg23[%c0_118, %c0_119] : memref<64x32xf32, #tpu.memory_space<vmem>>, vector<64x32xf32>
    %576 = arith.truncf %575 : vector<64x32xf32> to vector<64x32xbf16>
    %c0_120 = arith.constant 0 : index
    %c0_121 = arith.constant 0 : index
    %577 = vector.load %arg11[%c0_120, %c0_121] : memref<32x8xbf16, #tpu.memory_space<vmem>>, vector<32x8xbf16>
    %cst_122 = arith.constant dense<0.000000e+00> : vector<64x8xf32>
    %578 = tpu.matmul %576, %577, %cst_122 {dimension_numbers = #tpu.dot_dimension_numbers<[1], [0], [0], [1], [0, 0, 1, 1], [], []>} : vector<64x32xbf16>, vector<32x8xbf16>, vector<64x8xf32> -> vector<64x8xf32>
    %579 = arith.addf %574, %578 : vector<64x8xf32>
    %580 = vector.shape_cast %579 : vector<64x8xf32> to vector<8x8x8xf32>
    %581 = tpu.iota {dimensions = array<i32: 0>} : vector<8x8x1xi32>
    %582 = arith.sitofp %581 : vector<8x8x1xi32> to vector<8x8x1xf32>
    %583 = vector.shape_cast %17 : vector<8x1xf32> to vector<1x8x1xf32>
    %584 = vector.broadcast %583 : vector<1x8x1xf32> to vector<8x8x1xf32>
    %585 = arith.cmpf olt, %582, %584 : vector<8x8x1xf32>
    %cst_123 = arith.constant 0.000000e+00 : f32
    %586 = vector.shape_cast %585 : vector<8x8x1xi1> to vector<8x8x1xi1>
    %587 = vector.broadcast %586 : vector<8x8x1xi1> to vector<8x8x8xi1>
    %588 = vector.broadcast %cst_123 : f32 to vector<8x8x8xf32>
    %589 = arith.select %587, %580, %588 : vector<8x8x8xi1>, vector<8x8x8xf32>
    %c0_124 = arith.constant 0 : index
    %c0_125 = arith.constant 0 : index
    %590 = vector.load %arg12[%c0_124, %c0_125] : memref<1x8xf32, #tpu.memory_space<vmem>>, vector<1x8xf32>
    %591 = vector.shape_cast %590 : vector<1x8xf32> to vector<1x1x8xf32>
    %592 = vector.broadcast %591 : vector<1x1x8xf32> to vector<8x8x8xf32>
    %593 = arith.addf %589, %592 : vector<8x8x8xf32>
    %cst_126 = arith.constant 0.000000e+00 : f32
    %594 = vector.broadcast %cst_126 : f32 to vector<8x8x8xf32>
    %595 = arith.maximumf %593, %594 : vector<8x8x8xf32>
    %cst_127 = arith.constant dense<0xFF800000> : vector<8x8xf32>
    %596 = vector.multi_reduction <maximumf>, %595, %cst_127 [0] : vector<8x8x8xf32> to vector<8x8xf32>
    %597 = arith.truncf %560 : vector<8x32xf32> to vector<8x32xbf16>
    %c0_128 = arith.constant 0 : index
    %c0_129 = arith.constant 0 : index
    %598 = vector.load %arg13[%c0_128, %c0_129] : memref<32x64xbf16, #tpu.memory_space<vmem>>, vector<32x64xbf16>
    %cst_130 = arith.constant dense<0.000000e+00> : vector<8x64xf32>
    %599 = tpu.matmul %597, %598, %cst_130 {dimension_numbers = #tpu.dot_dimension_numbers<[1], [0], [0], [1], [0, 0, 1, 1], [], []>} : vector<8x32xbf16>, vector<32x64xbf16>, vector<8x64xf32> -> vector<8x64xf32>
    %600 = arith.truncf %566 : vector<8x32xf32> to vector<8x32xbf16>
    %c0_131 = arith.constant 0 : index
    %c0_132 = arith.constant 0 : index
    %601 = vector.load %arg14[%c0_131, %c0_132] : memref<32x64xbf16, #tpu.memory_space<vmem>>, vector<32x64xbf16>
    %cst_133 = arith.constant dense<0.000000e+00> : vector<8x64xf32>
    %602 = tpu.matmul %600, %601, %cst_133 {dimension_numbers = #tpu.dot_dimension_numbers<[1], [0], [0], [1], [0, 0, 1, 1], [], []>} : vector<8x32xbf16>, vector<32x64xbf16>, vector<8x64xf32> -> vector<8x64xf32>
    %603 = arith.addf %599, %602 : vector<8x64xf32>
    %604 = arith.truncf %596 : vector<8x8xf32> to vector<8x8xbf16>
    %c0_134 = arith.constant 0 : index
    %c0_135 = arith.constant 0 : index
    %605 = vector.load %arg15[%c0_134, %c0_135] : memref<8x64xbf16, #tpu.memory_space<vmem>>, vector<8x64xbf16>
    %cst_136 = arith.constant dense<0.000000e+00> : vector<8x64xf32>
    %606 = tpu.matmul %604, %605, %cst_136 {dimension_numbers = #tpu.dot_dimension_numbers<[1], [0], [0], [1], [0, 0, 1, 1], [], []>} : vector<8x8xbf16>, vector<8x64xbf16>, vector<8x64xf32> -> vector<8x64xf32>
    %607 = arith.addf %603, %606 : vector<8x64xf32>
    %c0_137 = arith.constant 0 : index
    %c0_138 = arith.constant 0 : index
    %608 = vector.load %arg16[%c0_137, %c0_138] : memref<1x64xf32, #tpu.memory_space<vmem>>, vector<1x64xf32>
    %609 = vector.broadcast %608 : vector<1x64xf32> to vector<8x64xf32>
    %610 = arith.addf %607, %609 : vector<8x64xf32>
    %cst_139 = arith.constant 0.000000e+00 : f32
    %611 = vector.broadcast %cst_139 : f32 to vector<8x64xf32>
    %612 = arith.maximumf %610, %611 : vector<8x64xf32>
    %613 = arith.truncf %612 : vector<8x64xf32> to vector<8x64xbf16>
    %c0_140 = arith.constant 0 : index
    %c0_141 = arith.constant 0 : index
    %614 = vector.load %arg17[%c0_140, %c0_141] : memref<64x4xbf16, #tpu.memory_space<vmem>>, vector<64x4xbf16>
    %cst_142 = arith.constant dense<0.000000e+00> : vector<8x4xf32>
    %615 = tpu.matmul %613, %614, %cst_142 {dimension_numbers = #tpu.dot_dimension_numbers<[1], [0], [0], [1], [0, 0, 1, 1], [], []>} : vector<8x64xbf16>, vector<64x4xbf16>, vector<8x4xf32> -> vector<8x4xf32>
    %c0_143 = arith.constant 0 : index
    %c0_144 = arith.constant 0 : index
    %616 = vector.load %arg18[%c0_143, %c0_144] : memref<1x4xf32, #tpu.memory_space<vmem>>, vector<1x4xf32>
    %617 = vector.broadcast %616 : vector<1x4xf32> to vector<8x4xf32>
    %618 = arith.addf %615, %617 : vector<8x4xf32>
    %c0_145 = arith.constant 0 : index
    %c0_146 = arith.constant 0 : index
    %619 = vector.load %arg19[%c0_145, %c0_146] : memref<8x4xf32, #tpu.memory_space<vmem>>, vector<8x4xf32>
    tpu.vector_store %arg19[%c0_145, %c0_146], %618 {strides = array<i32>} : memref<8x4xf32, #tpu.memory_space<vmem>>, vector<8x4xf32>,
    return
  }
}

</mosaic_0001>

<llo_original>
// kernel: tpu_custom_call.1
$region0: #{tpu_custom_call.1}
  #allocation0 [shape = 'u32[]', space=smem, size = 0x4, offset = 0x4, fixed_abs, tag = 'smem constant byte address 0x4 - core index']
  #allocation1 [shape = 'u32[144,128]{1,0:T(1,128)}', space=vmem, size = 0x12000, scoped, tag = 'internal scratch']
  #allocation2 [shape = 'f32[64,96]{1,0:T(8,128)}', space=vmem, size = 0x8000, scoped, tag = 'scratch operand']
  #allocation3 [shape = 'f32[64,96]{1,0:T(8,128)}', space=vmem, size = 0x8000, scoped, tag = 'scratch operand']
  #allocation4 [shape = 'f32[64,32]{1,0:T(8,128)}', space=vmem, size = 0x8000, scoped, tag = 'scratch operand']
  #allocation5 [shape = 'f32[64,32]{1,0:T(8,128)}', space=vmem, size = 0x8000, scoped, tag = 'scratch operand']
  %s0 = inlined_call_operand.vmem [shape: bf16[64,16], index: 0, kind: input, shape index: {}]
  %s1 = inlined_call_operand.vmem [shape: f32[8,1], index: 1, kind: input, shape index: {}]
  %s2 = inlined_call_operand.vmem [shape: bf16[16,96], index: 2, kind: input, shape index: {}]
  %s3 = inlined_call_operand.vmem [shape: bf16[16,96], index: 3, kind: input, shape index: {}]
  %s4 = inlined_call_operand.vmem [shape: f32[1,96], index: 4, kind: input, shape index: {}]
  %s5 = inlined_call_operand.vmem [shape: f32[1,96], index: 5, kind: input, shape index: {}]
  %s6 = inlined_call_operand.vmem [shape: bf16[32,96], index: 6, kind: input, shape index: {}]
  %s7 = inlined_call_operand.vmem [shape: bf16[32,96], index: 7, kind: input, shape index: {}]
  %s8 = inlined_call_operand.vmem [shape: f32[1,32], index: 8, kind: input, shape index: {}]
  %s9 = inlined_call_operand.vmem [shape: f32[1,32], index: 9, kind: input, shape index: {}]
  %s10 = inlined_call_operand.vmem [shape: bf16[32,8], index: 10, kind: input, shape index: {}]
  %s11 = inlined_call_operand.vmem [shape: bf16[32,8], index: 11, kind: input, shape index: {}]
  %s12 = inlined_call_operand.vmem [shape: f32[1,8], index: 12, kind: input, shape index: {}]
  %s13 = inlined_call_operand.vmem [shape: bf16[32,64], index: 13, kind: input, shape index: {}]
  %s14 = inlined_call_operand.vmem [shape: bf16[32,64], index: 14, kind: input, shape index: {}]
  %s15 = inlined_call_operand.vmem [shape: bf16[8,64], index: 15, kind: input, shape index: {}]
  %s16 = inlined_call_operand.vmem [shape: f32[1,64], index: 16, kind: input, shape index: {}]
  %s17 = inlined_call_operand.vmem [shape: bf16[64,4], index: 17, kind: input, shape index: {}]
  %s18 = inlined_call_operand.vmem [shape: f32[1,4], index: 18, kind: input, shape index: {}]
  %s19 = inlined_call_operand.vmem [shape: f32[8,4], index: 19, kind: output, shape index: {}]
  %s20 = sld [smem:[#allocation0]]
  $region86: #{tpu_custom_call.1} parent=0
    _
  %s22 = ssub.s32 1, %s20
  %s23 = scalar_select 0, %s22, %s20
  // Predicated region
  $region2: #{tpu_custom_call.1} parent=0 // pred_check
    _
  $region3: #{tpu_custom_call.1} parent=0 // pred_check_branch
    %25 = sbr.rel (0) target = $region5
  $region4: #{tpu_custom_call.1} parent=0 // pred_region
    _
  $region5: #{tpu_custom_call.1} parent=0 // pred_fallthru
    _
  // Predicated region
  $region6: #{tpu_custom_call.1} parent=0 // pred_check
    _
  $region7: #{tpu_custom_call.1} parent=0 // pred_check_branch
    %27 = sbr.rel (0) target = $region9
  $region8: #{tpu_custom_call.1} parent=0 // pred_region
    _
  $region9: #{tpu_custom_call.1} parent=0 // pred_fallthru
    _
  // Predicated region
  $region10: #{tpu_custom_call.1} parent=0 // pred_check
    _
  $region11: #{tpu_custom_call.1} parent=0 // pred_check_branch
    %29 = sbr.rel (0) target = $region13
  $region12: #{tpu_custom_call.1} parent=0 // pred_region
    _
  $region13: #{tpu_custom_call.1} parent=0 // pred_fallthru
    _
  // Predicated region
  $region14: #{tpu_custom_call.1} parent=0 // pred_check
    _
  $region15: #{tpu_custom_call.1} parent=0 // pred_check_branch
    %31 = sbr.rel (0) target = $region17
  $region16: #{tpu_custom_call.1} parent=0 // pred_region
    _
  $region17: #{tpu_custom_call.1} parent=0 // pred_fallthru
    _
  // Predicated region
  $region18: #{tpu_custom_call.1} parent=0 // pred_check
    _
  $region19: #{tpu_custom_call.1} parent=0 // pred_check_branch
    %33 = sbr.rel (0) target = $region21
  $region20: #{tpu_custom_call.1} parent=0 // pred_region
    _
  $region21: #{tpu_custom_call.1} parent=0 // pred_fallthru
    _
  // Predicated region
  $region22: #{tpu_custom_call.1} parent=0 // pred_check
    _
  $region23: #{tpu_custom_call.1} parent=0 // pred_check_branch
    %35 = sbr.rel (0) target = $region25
  $region24: #{tpu_custom_call.1} parent=0 // pred_region
    _
  $region25: #{tpu_custom_call.1} parent=0 // pred_fallthru
    _
  // Predicated region
  $region26: #{tpu_custom_call.1} parent=0 // pred_check
    _
  $region27: #{tpu_custom_call.1} parent=0 // pred_check_branch
    %37 = sbr.rel (0) target = $region29
  $region28: #{tpu_custom_call.1} parent=0 // pred_region
    _
  $region29: #{tpu_custom_call.1} parent=0 // pred_fallthru
    _
  // Predicated region
  $region30: #{tpu_custom_call.1} parent=0 // pred_check
    _
  $region31: #{tpu_custom_call.1} parent=0 // pred_check_branch
    %39 = sbr.rel (0) target = $region33
  $region32: #{tpu_custom_call.1} parent=0 // pred_region
    _
  $region33: #{tpu_custom_call.1} parent=0 // pred_fallthru
    _
  // Predicated region
  $region34: #{tpu_custom_call.1} parent=0 // pred_check
    _
  $region35: #{tpu_custom_call.1} parent=0 // pred_check_branch
    %41 = sbr.rel (0) target = $region37
  $region36: #{tpu_custom_call.1} parent=0 // pred_region
    _
  $region37: #{tpu_custom_call.1} parent=0 // pred_fallthru
    _
  // Predicated region
  $region38: #{tpu_custom_call.1} parent=0 // pred_check
    _
  $region39: #{tpu_custom_call.1} parent=0 // pred_check_branch
    %43 = sbr.rel (0) target = $region41
  $region40: #{tpu_custom_call.1} parent=0 // pred_region
    _
  $region41: #{tpu_custom_call.1} parent=0 // pred_fallthru
    _
  // Predicated region
  $region42: #{tpu_custom_call.1} parent=0 // pred_check
    _
  $region43: #{tpu_custom_call.1} parent=0 // pred_check_branch
    %45 = sbr.rel (0) target = $region45
  $region44: #{tpu_custom_call.1} parent=0 // pred_region
    _
  $region45: #{tpu_custom_call.1} parent=0 // pred_fallthru
    _
  // Predicated region
  $region46: #{tpu_custom_call.1} parent=0 // pred_check
    _
  $region47: #{tpu_custom_call.1} parent=0 // pred_check_branch
    %47 = sbr.rel (0) target = $region49
  $region48: #{tpu_custom_call.1} parent=0 // pred_region
    _
  $region49: #{tpu_custom_call.1} parent=0 // pred_fallthru
    _
  // Predicated region
  $region50: #{tpu_custom_call.1} parent=0 // pred_check
    _
  $region51: #{tpu_custom_call.1} parent=0 // pred_check_branch
    %49 = sbr.rel (0) target = $region53
  $region52: #{tpu_custom_call.1} parent=0 // pred_region
    _
  $region53: #{tpu_custom_call.1} parent=0 // pred_fallthru
    _
  // Predicated region
  $region54: #{tpu_custom_call.1} parent=0 // pred_check
    _
  $region55: #{tpu_custom_call.1} parent=0 // pred_check_branch
    %51 = sbr.rel (0) target = $region57
  $region56: #{tpu_custom_call.1} parent=0 // pred_region
    _
  $region57: #{tpu_custom_call.1} parent=0 // pred_fallthru
    _
  // Predicated region
  $region58: #{tpu_custom_call.1} parent=0 // pred_check
    _
  $region59: #{tpu_custom_call.1} parent=0 // pred_check_branch
    %53 = sbr.rel (0) target = $region61
  $region60: #{tpu_custom_call.1} parent=0 // pred_region
    _
  $region61: #{tpu_custom_call.1} parent=0 // pred_fallthru
    _
  // Predicated region
  $region62: #{tpu_custom_call.1} parent=0 // pred_check
    _
  $region63: #{tpu_custom_call.1} parent=0 // pred_check_branch
    %55 = sbr.rel (0) target = $region65
  $region64: #{tpu_custom_call.1} parent=0 // pred_region
    _
  $region65: #{tpu_custom_call.1} parent=0 // pred_fallthru
    _
  // Predicated region
  $region66: #{tpu_custom_call.1} parent=0 // pred_check
    _
  $region67: #{tpu_custom_call.1} parent=0 // pred_check_branch
    %57 = sbr.rel (0) target = $region69
  $region68: #{tpu_custom_call.1} parent=0 // pred_region
    _
  $region69: #{tpu_custom_call.1} parent=0 // pred_fallthru
    _
  // Predicated region
  $region70: #{tpu_custom_call.1} parent=0 // pred_check
    _
  $region71: #{tpu_custom_call.1} parent=0 // pred_check_branch
    %59 = sbr.rel (0) target = $region73
  $region72: #{tpu_custom_call.1} parent=0 // pred_region
    _
  $region73: #{tpu_custom_call.1} parent=0 // pred_fallthru
    _
  // Predicated region
  $region74: #{tpu_custom_call.1} parent=0 // pred_check
    _
  $region75: #{tpu_custom_call.1} parent=0 // pred_check_branch
    %61 = sbr.rel (0) target = $region77
  $region76: #{tpu_custom_call.1} parent=0 // pred_region
    _
  $region77: #{tpu_custom_call.1} parent=0 // pred_fallthru
    _
  %v63 = vld [vmem:[%s0] sm:$0xf]
  %v64 = vld [vmem:[%s0 + $0x4] sm:$0xf]
  %v65 = vld [vmem:[%s0 + $0x8] sm:$0xf]
  %v66 = vld [vmem:[%s0 + $0xc] sm:$0xf]
  %v67 = vld [vmem:[%s0 + $0x10] sm:$0xf]
  %v68 = vld [vmem:[%s0 + $0x14] sm:$0xf]
  %v69 = vld [vmem:[%s0 + $0x18] sm:$0xf]
  %v70 = vld [vmem:[%s0 + $0x1c] sm:$0xf]
  %v71 = vld [vmem:[%s2] sm:$0xf]
  %v72 = vld [vmem:[%s2 + $0x4] sm:$0xf]
  %v73 = vld [vmem:[%s4] sm:$0x1]
  %v75 = vlaneseq
  %v76 = vshrl.u32 %v75, 7
  %v77 = vsub.s32 0, %v76
  %v78 = vrot.slane %v73, %v77
  %v88 = vunpack.c.l.b16 %v63
  %v89 = vunpack.c.l.b16 %v64
  %v90 = vunpack.c.l.b16 %v65
  %v91 = vunpack.c.l.b16 %v66
  %v92 = vunpack.c.l.b16 %v67
  %v93 = vunpack.c.l.b16 %v68
  %v94 = vunpack.c.l.b16 %v69
  %v95 = vunpack.c.l.b16 %v70
  %v96 = vpack.c.b16 %v89, %v88
  %v97 = vpack.c.b16 %v91, %v90
  %v98 = vpack.c.b16 %v93, %v92
  %v99 = vpack.c.b16 %v95, %v94
  %v102 = vunpack.c.l.b16 %v71
  %v103 = vunpack.c.l.b16 %v72
  %v104 = vpack.c.b16 %v103, %v102
  %vm106 = vcmask 130048
  %v108 = vsel %vm106, %v96, 0
  %v111 = vsel %vm106, %v97, 0
  %v114 = vsel %vm106, %v98, 0
  %v117 = vsel %vm106, %v99, 0
  %119 = vmatprep.subr.bf16.mxu0 0
  %120 = vmatpush1.bf16.msra.mxu0 %v104
  %121 = vmatprep.subr.bf16.mxu0 0
  %122 = vmatpush1.bf16.msra.mxu0 0
  %123 = vmatprep.subr.bf16.mxu0 0
  %124 = vmatpush1.bf16.msra.mxu0 0
  %125 = vmatprep.subr.bf16.mxu0 0
  %126 = vmatpush1.bf16.msra.mxu0 0
  %127 = vmatprep.subr.bf16.mxu0 0
  %128 = vmatpush1.bf16.msra.mxu0 0
  %129 = vmatprep.subr.bf16.mxu0 0
  %130 = vmatpush1.bf16.msra.mxu0 0
  %131 = vmatprep.subr.bf16.mxu0 0
  %132 = vmatpush1.bf16.msra.mxu0 0
  %133 = vmatprep.subr.bf16.mxu0 0
  %134 = vmatpush1.bf16.msra.mxu0 0
  %135 = vmatprep.subr.bf16.mxu0 0
  %136 = vmatpush1.bf16.msra.mxu0 0
  %137 = vmatprep.subr.bf16.mxu0 0
  %138 = vmatpush1.bf16.msra.mxu0 0
  %139 = vmatprep.subr.bf16.mxu0 0
  %140 = vmatpush1.bf16.msra.mxu0 0
  %141 = vmatprep.subr.bf16.mxu0 0
  %142 = vmatpush1.bf16.msra.mxu0 0
  %143 = vmatprep.subr.bf16.mxu0 0
  %144 = vmatpush1.bf16.msra.mxu0 0
  %145 = vmatprep.subr.bf16.mxu0 0
  %146 = vmatpush1.bf16.msra.mxu0 0
  %147 = vmatprep.subr.bf16.mxu0 0
  %148 = vmatpush1.bf16.msra.mxu0 0
  %149 = vmatprep.subr.bf16.mxu0 0
  %150 = vmatpush1.bf16.msra.mxu0 0
  %151 = vmatprep.mubr.bf16.mxu0 0
  %152 = vmatmul.mubr.bf16.gmra.mrb[0].mxu0 %v108
  %v153 = vpop.f32.mrb[0].mxu0
  %v154 = vadd.f32 %v78, %v153
  %v155 = vpop.f32.mrb[0].mxu0
  %v156 = vpop.f32.mrb[0].mxu0
  %v157 = vadd.f32 %v78, %v156
  %v158 = vpop.f32.mrb[0].mxu0
  %159 = vmatprep.mubr.bf16.mxu0 0
  %160 = vmatmul.mubr.bf16.gmra.mrb[0].mxu0 %v111
  %v161 = vpop.f32.mrb[0].mxu0
  %v162 = vadd.f32 %v78, %v161
  %v163 = vpop.f32.mrb[0].mxu0
  %v164 = vpop.f32.mrb[0].mxu0
  %v165 = vadd.f32 %v78, %v164
  %v166 = vpop.f32.mrb[0].mxu0
  %167 = vmatprep.mubr.bf16.mxu0 0
  %168 = vmatmul.mubr.bf16.gmra.mrb[0].mxu0 %v114
  %v169 = vpop.f32.mrb[0].mxu0
  %v170 = vadd.f32 %v78, %v169
  %v171 = vpop.f32.mrb[0].mxu0
  %v172 = vpop.f32.mrb[0].mxu0
  %v173 = vadd.f32 %v78, %v172
  %v174 = vpop.f32.mrb[0].mxu0
  %175 = vmatprep.mubr.bf16.mxu0 0
  %176 = vmatmul.mubr.bf16.gmra.mrb[0].mxu0 %v117
  %v177 = vpop.f32.mrb[0].mxu0
  %v178 = vadd.f32 %v78, %v177
  %v179 = vpop.f32.mrb[0].mxu0
  %v180 = vpop.f32.mrb[0].mxu0
  %v181 = vadd.f32 %v78, %v180
  %v182 = vpop.f32.mrb[0].mxu0
  %183 = vdwg.mxu0
  %vm184 = vcmask 785408
  %185 = vst.msk [vmem:[#allocation2] sm:$0xff] %vm184, %v154
  %186 = vst.msk [vmem:[#allocation2 + $0x8] sm:$0xff] %vm184, %v157
  %187 = vst.msk [vmem:[#allocation2 + $0x10] sm:$0xff] %vm184, %v162
  %188 = vst.msk [vmem:[#allocation2 + $0x18] sm:$0xff] %vm184, %v165
  %189 = vst.msk [vmem:[#allocation2 + $0x20] sm:$0xff] %vm184, %v170
  %190 = vst.msk [vmem:[#allocation2 + $0x28] sm:$0xff] %vm184, %v173
  %191 = vst.msk [vmem:[#allocation2 + $0x30] sm:$0xff] %vm184, %v178
  %192 = vst.msk [vmem:[#allocation2 + $0x38] sm:$0xff] %vm184, %v181
  %v193 = vld [vmem:[%s3] sm:$0xf]
  %v194 = vld [vmem:[%s3 + $0x4] sm:$0xf]
  %v195 = vld [vmem:[%s5] sm:$0x1]
  %v197 = vlaneseq
  %v198 = vshrl.u32 %v197, 7
  %v199 = vsub.s32 0, %v198
  %v200 = vrot.slane %v195, %v199
  %v204 = vunpack.c.l.b16 %v193
  %v205 = vunpack.c.l.b16 %v194
  %v206 = vpack.c.b16 %v205, %v204
  %208 = vmatprep.subr.bf16.mxu0 0
  %209 = vmatpush1.bf16.msra.mxu0 %v206
  %210 = vmatprep.subr.bf16.mxu0 0
  %211 = vmatpush1.bf16.msra.mxu0 0
  %212 = vmatprep.subr.bf16.mxu0 0
  %213 = vmatpush1.bf16.msra.mxu0 0
  %214 = vmatprep.subr.bf16.mxu0 0
  %215 = vmatpush1.bf16.msra.mxu0 0
  %216 = vmatprep.subr.bf16.mxu0 0
  %217 = vmatpush1.bf16.msra.mxu0 0
  %218 = vmatprep.subr.bf16.mxu0 0
  %219 = vmatpush1.bf16.msra.mxu0 0
  %220 = vmatprep.subr.bf16.mxu0 0
  %221 = vmatpush1.bf16.msra.mxu0 0
  %222 = vmatprep.subr.bf16.mxu0 0
  %223 = vmatpush1.bf16.msra.mxu0 0
  %224 = vmatprep.subr.bf16.mxu0 0
  %225 = vmatpush1.bf16.msra.mxu0 0
  %226 = vmatprep.subr.bf16.mxu0 0
  %227 = vmatpush1.bf16.msra.mxu0 0
  %228 = vmatprep.subr.bf16.mxu0 0
  %229 = vmatpush1.bf16.msra.mxu0 0
  %230 = vmatprep.subr.bf16.mxu0 0
  %231 = vmatpush1.bf16.msra.mxu0 0
  %232 = vmatprep.subr.bf16.mxu0 0
  %233 = vmatpush1.bf16.msra.mxu0 0
  %234 = vmatprep.subr.bf16.mxu0 0
  %235 = vmatpush1.bf16.msra.mxu0 0
  %236 = vmatprep.subr.bf16.mxu0 0
  %237 = vmatpush1.bf16.msra.mxu0 0
  %238 = vmatprep.subr.bf16.mxu0 0
  %239 = vmatpush1.bf16.msra.mxu0 0
  %240 = vmatprep.mubr.bf16.mxu0 0
  %241 = vmatmul.mubr.bf16.gmra.mrb[0].mxu0 %v108
  %v242 = vpop.f32.mrb[0].mxu0
  %v243 = vadd.f32 %v200, %v242
  %v244 = vpop.f32.mrb[0].mxu0
  %v245 = vpop.f32.mrb[0].mxu0
  %v246 = vadd.f32 %v200, %v245
  %v247 = vpop.f32.mrb[0].mxu0
  %248 = vmatprep.mubr.bf16.mxu0 0
  %249 = vmatmul.mubr.bf16.gmra.mrb[0].mxu0 %v111
  %v250 = vpop.f32.mrb[0].mxu0
  %v251 = vadd.f32 %v200, %v250
  %v252 = vpop.f32.mrb[0].mxu0
  %v253 = vpop.f32.mrb[0].mxu0
  %v254 = vadd.f32 %v200, %v253
  %v255 = vpop.f32.mrb[0].mxu0
  %256 = vmatprep.mubr.bf16.mxu0 0
  %257 = vmatmul.mubr.bf16.gmra.mrb[0].mxu0 %v114
  %v258 = vpop.f32.mrb[0].mxu0
  %v259 = vadd.f32 %v200, %v258
  %v260 = vpop.f32.mrb[0].mxu0
  %v261 = vpop.f32.mrb[0].mxu0
  %v262 = vadd.f32 %v200, %v261
  %v263 = vpop.f32.mrb[0].mxu0
  %264 = vmatprep.mubr.bf16.mxu0 0
  %265 = vmatmul.mubr.bf16.gmra.mrb[0].mxu0 %v117
  %v266 = vpop.f32.mrb[0].mxu0
  %v267 = vadd.f32 %v200, %v266
  %v268 = vpop.f32.mrb[0].mxu0
  %v269 = vpop.f32.mrb[0].mxu0
  %v270 = vadd.f32 %v200, %v269
  %v271 = vpop.f32.mrb[0].mxu0
  %272 = vdwg.mxu0
  %273 = vst.msk [vmem:[#allocation3] sm:$0xff] %vm184, %v243
  %274 = vst.msk [vmem:[#allocation3 + $0x8] sm:$0xff] %vm184, %v246
  %275 = vst.msk [vmem:[#allocation3 + $0x10] sm:$0xff] %vm184, %v251
  %276 = vst.msk [vmem:[#allocation3 + $0x18] sm:$0xff] %vm184, %v254
  %277 = vst.msk [vmem:[#allocation3 + $0x20] sm:$0xff] %vm184, %v259
  %278 = vst.msk [vmem:[#allocation3 + $0x28] sm:$0xff] %vm184, %v262
  %279 = vst.msk [vmem:[#allocation3 + $0x30] sm:$0xff] %vm184, %v267
  %280 = vst.msk [vmem:[#allocation3 + $0x38] sm:$0xff] %vm184, %v270
  %v281 = vld [vmem:[%s6] sm:$0xf]
  %v282 = vld [vmem:[%s6 + $0x4] sm:$0xf]
  %v283 = vld [vmem:[%s6 + $0x8] sm:$0xf]
  %v284 = vld [vmem:[%s6 + $0xc] sm:$0xf]
  %v285 = vld [vmem:[%s7] sm:$0xf]
  %v286 = vld [vmem:[%s7 + $0x4] sm:$0xf]
  %v287 = vld [vmem:[%s7 + $0x8] sm:$0xf]
  %v288 = vld [vmem:[%s7 + $0xc] sm:$0xf]
  %v289 = vld [vmem:[%s8] sm:$0x1]
  %v290 = vld [vmem:[%s9] sm:$0x1]
  %v291 = vld [vmem:[%s1] sm:$0xff]
  %v292 = vld [vmem:[#allocation2] sm:$0xff]
  %v297 = vunpack.c.l.b16 %v281
  %v298 = vunpack.c.l.b16 %v282
  %v299 = vunpack.c.l.b16 %v283
  %v300 = vunpack.c.l.b16 %v284
  %v301 = vpack.c.b16 %v298, %v297
  %v302 = vpack.c.b16 %v300, %v299
  %vm305 = vcmask 261120
  %v307 = vsel %vm305, 0, 0
  %309 = vmatprep.subr.bf16.mxu0 0
  %310 = vmatpush1.bf16.msra.mxu0 %v301
  %311 = vmatprep.subr.bf16.mxu0 0
  %312 = vmatpush1.bf16.msra.mxu0 %v302
  %313 = vmatprep.subr.bf16.mxu0 0
  %314 = vmatpush1.bf16.msra.mxu0 0
  %315 = vmatprep.subr.bf16.mxu0 0
  %316 = vmatpush1.bf16.msra.mxu0 0
  %317 = vmatprep.subr.bf16.mxu0 0
  %318 = vmatpush1.bf16.msra.mxu0 0
  %319 = vmatprep.subr.bf16.mxu0 0
  %320 = vmatpush1.bf16.msra.mxu0 0
  %321 = vmatprep.subr.bf16.mxu0 0
  %322 = vmatpush1.bf16.msra.mxu0 0
  %323 = vmatprep.subr.bf16.mxu0 0
  %324 = vmatpush1.bf16.msra.mxu0 0
  %325 = vmatprep.subr.bf16.mxu0 0
  %326 = vmatpush1.bf16.msra.mxu0 0
  %327 = vmatprep.subr.bf16.mxu0 0
  %328 = vmatpush1.bf16.msra.mxu0 0
  %329 = vmatprep.subr.bf16.mxu0 0
  %330 = vmatpush1.bf16.msra.mxu0 0
  %331 = vmatprep.subr.bf16.mxu0 0
  %332 = vmatpush1.bf16.msra.mxu0 0
  %333 = vmatprep.subr.bf16.mxu0 0
  %334 = vmatpush1.bf16.msra.mxu0 0
  %335 = vmatprep.subr.bf16.mxu0 0
  %336 = vmatpush1.bf16.msra.mxu0 0
  %337 = vmatprep.subr.bf16.mxu0 0
  %338 = vmatpush1.bf16.msra.mxu0 0
  %339 = vmatprep.subr.bf16.mxu0 0
  %340 = vmatpush1.bf16.msra.mxu0 0
  %341 = vmatprep.mubr.bf16.mxu0 0
  %342 = vmatmul.mubr.bf16.gmra.mrb[0].mxu0 %v307
  %v343 = vpop.f32.mrb[0].mxu0
  %v344 = vadd.f32 0.0, %v343
  %v345 = vpop.f32.mrb[0].mxu0
  %v346 = vpop.f32.mrb[0].mxu0
  %v347 = vpop.f32.mrb[0].mxu0
  %348 = vdwg.mxu0
  %v349 = vadd.f32 %v292, %v344
  %v350 = vxor.u32 %v349, 2147483648
  %v351 = vmul.f32 %v350, 1.442695
  %v352 = vpow.pop %v351
  %v353 = vadd.f32 %v352, 1.0
  %v354 = vrcp.pop %v353
  %v355 = vmul.f32 1.0, %v354
  %v357 = vlaneseq
  %v358 = vshrl.u32 %v357, 7
  %v359 = vsub.s32 0, %v358
  %v360 = vrot.slane %v289, %v359
  %361 = vrot.lane.b32.xlu0 %v360, 64
  %v362 = vpop.permute.xlu0 %361
  %v364 = vadd.f32 %v344, %v362
  %366 = vrot.lane.b32.xlu0 %v364, 64
  %v367 = vpop.permute.xlu0 %366
  %v369 = vmul.f32 %v355, %v367
  %371 = vrot.lane.b32.xlu0 %v369, 64
  %v372 = vpop.permute.xlu0 %371
  %v374 = vadd.f32 %v292, %v372
  %v375 = vtanh.pop %v374
  %v376 = vsub.f32 0.0, %v375
  %378 = vrot.lane.b32.xlu0 %v376, 96
  %v379 = vpop.permute.xlu0 %378
  %v381 = vmul.f32 %v355, %v379
  %383 = vrot.lane.b32.xlu0 %v381, 32
  %v384 = vpop.permute.xlu0 %383
  %v386 = vadd.f32 %v375, %v384
  %s387 = scalar_lea.vmem [#allocation3], 56
  %v388 = vld [vmem:[%s387] sm:$0xff]
  %v393 = vunpack.c.l.b16 %v285
  %v394 = vunpack.c.l.b16 %v286
  %v395 = vunpack.c.l.b16 %v287
  %v396 = vunpack.c.l.b16 %v288
  %v397 = vpack.c.b16 %v394, %v393
  %v398 = vpack.c.b16 %v396, %v395
  %401 = vmatprep.subr.bf16.mxu0 0
  %402 = vmatpush1.bf16.msra.mxu0 %v397
  %403 = vmatprep.subr.bf16.mxu0 0
  %404 = vmatpush1.bf16.msra.mxu0 %v398
  %405 = vmatprep.subr.bf16.mxu0 0
  %406 = vmatpush1.bf16.msra.mxu0 0
  %407 = vmatprep.subr.bf16.mxu0 0
  %408 = vmatpush1.bf16.msra.mxu0 0
  %409 = vmatprep.subr.bf16.mxu0 0
  %410 = vmatpush1.bf16.msra.mxu0 0
  %411 = vmatprep.subr.bf16.mxu0 0
  %412 = vmatpush1.bf16.msra.mxu0 0
  %413 = vmatprep.subr.bf16.mxu0 0
  %414 = vmatpush1.bf16.msra.mxu0 0
  %415 = vmatprep.subr.bf16.mxu0 0
  %416 = vmatpush1.bf16.msra.mxu0 0
  %417 = vmatprep.subr.bf16.mxu0 0
  %418 = vmatpush1.bf16.msra.mxu0 0
  %419 = vmatprep.subr.bf16.mxu0 0
  %420 = vmatpush1.bf16.msra.mxu0 0
  %421 = vmatprep.subr.bf16.mxu0 0
  %422 = vmatpush1.bf16.msra.mxu0 0
  %423 = vmatprep.subr.bf16.mxu0 0
  %424 = vmatpush1.bf16.msra.mxu0 0
  %425 = vmatprep.subr.bf16.mxu0 0
  %426 = vmatpush1.bf16.msra.mxu0 0
  %427 = vmatprep.subr.bf16.mxu0 0
  %428 = vmatpush1.bf16.msra.mxu0 0
  %429 = vmatprep.subr.bf16.mxu0 0
  %430 = vmatpush1.bf16.msra.mxu0 0
  %431 = vmatprep.subr.bf16.mxu0 0
  %432 = vmatpush1.bf16.msra.mxu0 0
  %433 = vmatprep.mubr.bf16.mxu0 0
  %434 = vmatmul.mubr.bf16.gmra.mrb[0].mxu0 %v307
  %v435 = vpop.f32.mrb[0].mxu0
  %v436 = vadd.f32 0.0, %v435
  %v437 = vpop.f32.mrb[0].mxu0
  %v438 = vpop.f32.mrb[0].mxu0
  %v439 = vpop.f32.mrb[0].mxu0
  %440 = vdwg.mxu0
  %v441 = vadd.f32 %v388, %v436
  %v442 = vxor.u32 %v441, 2147483648
  %v443 = vmul.f32 %v442, 1.442695
  %v444 = vpow.pop %v443
  %v445 = vadd.f32 %v444, 1.0
  %v446 = vrcp.pop %v445
  %v447 = vmul.f32 1.0, %v446
  %v449 = vlaneseq
  %v450 = vshrl.u32 %v449, 7
  %v451 = vsub.s32 0, %v450
  %v452 = vrot.slane %v290, %v451
  %453 = vrot.lane.b32.xlu0 %v452, 64
  %v454 = vpop.permute.xlu0 %453
  %v456 = vadd.f32 %v436, %v454
  %458 = vrot.lane.b32.xlu0 %v456, 64
  %v459 = vpop.permute.xlu0 %458
  %v461 = vmul.f32 %v447, %v459
  %463 = vrot.lane.b32.xlu0 %v461, 64
  %v464 = vpop.permute.xlu0 %463
  %v466 = vadd.f32 %v388, %v464
  %v467 = vtanh.pop %v466
  %v468 = vsub.f32 0.0, %v467
  %470 = vrot.lane.b32.xlu0 %v468, 96
  %v471 = vpop.permute.xlu0 %470
  %v473 = vmul.f32 %v447, %v471
  %475 = vrot.lane.b32.xlu0 %v473, 32
  %v476 = vpop.permute.xlu0 %475
  %v478 = vadd.f32 %v467, %v476
  %vm479 = vcmp.gt.f32.partialorder %v291, 0.0
  %v480 = vsel %vm479, 1, 0
  %481 = vset.pattern.permute.xlu0 0
  %482 = vperm.xlu0 %481, %v480
  %v483 = vpop.permute.xlu0 %482
  %vm484 = vcmp.eq.s32.totalorder %v483, 1
  %v485 = vsel %vm484, %v386, 0.0
  %vm486 = vcmp.gt.f32.partialorder %v291, 7.0
  %v487 = vsel %vm486, 1, 0
  %488 = vset.pattern.permute.xlu0 0
  %489 = vperm.xlu0 %488, %v487
  %v490 = vpop.permute.xlu0 %489
  %vm491 = vcmp.eq.s32.totalorder %v490, 1
  %v492 = vsel %vm491, %v478, 0.0
  %494 = vrot.lane.b32.xlu0 %v485, 64
  %v495 = vpop.permute.xlu0 %494
  %497 = vst.msk [vmem:[#allocation4] sm:$0xff] %vm305, %v495
  %499 = vrot.lane.b32.xlu0 %v492, 64
  %v500 = vpop.permute.xlu0 %499
  %s502 = scalar_lea.vmem [#allocation5], 56
  %503 = vst.msk [vmem:[%s502] sm:$0xff] %vm305, %v500
  %s504 = scalar_lea.vmem [#allocation2], 8
  %v505 = vld [vmem:[%s504] sm:$0xff]
  %v506 = vpack.c.bf16 %v485, %v485
  %508 = vrot.lane.b32.xlu0 %v506, 64
  %v509 = vpop.permute.xlu0 %508
  %v511 = vsel %vm305, %v509, 0
  %513 = vmatprep.subr.bf16.mxu0 0
  %514 = vmatpush1.bf16.msra.mxu0 %v301
  %515 = vmatprep.subr.bf16.mxu0 0
  %516 = vmatpush1.bf16.msra.mxu0 %v302
  %517 = vmatprep.subr.bf16.mxu0 0
  %518 = vmatpush1.bf16.msra.mxu0 0
  %519 = vmatprep.subr.bf16.mxu0 0
  %520 = vmatpush1.bf16.msra.mxu0 0
  %521 = vmatprep.subr.bf16.mxu0 0
  %522 = vmatpush1.bf16.msra.mxu0 0
  %523 = vmatprep.subr.bf16.mxu0 0
  %524 = vmatpush1.bf16.msra.mxu0 0
  %525 = vmatprep.subr.bf16.mxu0 0
  %526 = vmatpush1.bf16.msra.mxu0 0
  %527 = vmatprep.subr.bf16.mxu0 0
  %528 = vmatpush1.bf16.msra.mxu0 0
  %529 = vmatprep.subr.bf16.mxu0 0
  %530 = vmatpush1.bf16.msra.mxu0 0
  %531 = vmatprep.subr.bf16.mxu0 0
  %532 = vmatpush1.bf16.msra.mxu0 0
  %533 = vmatprep.subr.bf16.mxu0 0
  %534 = vmatpush1.bf16.msra.mxu0 0
  %535 = vmatprep.subr.bf16.mxu0 0
  %536 = vmatpush1.bf16.msra.mxu0 0
  %537 = vmatprep.subr.bf16.mxu0 0
  %538 = vmatpush1.bf16.msra.mxu0 0
  %539 = vmatprep.subr.bf16.mxu0 0
  %540 = vmatpush1.bf16.msra.mxu0 0
  %541 = vmatprep.subr.bf16.mxu0 0
  %542 = vmatpush1.bf16.msra.mxu0 0
  %543 = vmatprep.subr.bf16.mxu0 0
  %544 = vmatpush1.bf16.msra.mxu0 0
  %545 = vmatprep.mubr.bf16.mxu0 0
  %546 = vmatmul.mubr.bf16.gmra.mrb[0].mxu0 %v511
  %v547 = vpop.f32.mrb[0].mxu0
  %v548 = vadd.f32 0.0, %v547
  %v549 = vpop.f32.mrb[0].mxu0
  %v550 = vpop.f32.mrb[0].mxu0
  %v551 = vpop.f32.mrb[0].mxu0
  %552 = vdwg.mxu0
  %v553 = vadd.f32 %v505, %v548
  %v554 = vxor.u32 %v553, 2147483648
  %v555 = vmul.f32 %v554, 1.442695
  %v556 = vpow.pop %v555
  %v557 = vadd.f32 %v556, 1.0
  %v558 = vrcp.pop %v557
  %v559 = vmul.f32 1.0, %v558
  %v560 = vadd.f32 %v548, %v362
  %562 = vrot.lane.b32.xlu0 %v560, 64
  %v563 = vpop.permute.xlu0 %562
  %v565 = vmul.f32 %v559, %v563
  %567 = vrot.lane.b32.xlu0 %v565, 64
  %v568 = vpop.permute.xlu0 %567
  %v570 = vadd.f32 %v505, %v568
  %v571 = vtanh.pop %v570
  %v572 = vsub.f32 %v485, %v571
  %574 = vrot.lane.b32.xlu0 %v572, 96
  %v575 = vpop.permute.xlu0 %574
  %v577 = vmul.f32 %v559, %v575
  %579 = vrot.lane.b32.xlu0 %v577, 32
  %v580 = vpop.permute.xlu0 %579
  %v582 = vadd.f32 %v571, %v580
  %s583 = scalar_lea.vmem [#allocation3], 48
  %v584 = vld [vmem:[%s583] sm:$0xff]
  %v585 = vpack.c.bf16 %v492, %v492
  %587 = vrot.lane.b32.xlu0 %v585, 64
  %v588 = vpop.permute.xlu0 %587
  %v590 = vsel %vm305, %v588, 0
  %592 = vmatprep.subr.bf16.mxu0 0
  %593 = vmatpush1.bf16.msra.mxu0 %v397
  %594 = vmatprep.subr.bf16.mxu0 0
  %595 = vmatpush1.bf16.msra.mxu0 %v398
  %596 = vmatprep.subr.bf16.mxu0 0
  %597 = vmatpush1.bf16.msra.mxu0 0
  %598 = vmatprep.subr.bf16.mxu0 0
  %599 = vmatpush1.bf16.msra.mxu0 0
  %600 = vmatprep.subr.bf16.mxu0 0
  %601 = vmatpush1.bf16.msra.mxu0 0
  %602 = vmatprep.subr.bf16.mxu0 0
  %603 = vmatpush1.bf16.msra.mxu0 0
  %604 = vmatprep.subr.bf16.mxu0 0
  %605 = vmatpush1.bf16.msra.mxu0 0
  %606 = vmatprep.subr.bf16.mxu0 0
  %607 = vmatpush1.bf16.msra.mxu0 0
  %608 = vmatprep.subr.bf16.mxu0 0
  %609 = vmatpush1.bf16.msra.mxu0 0
  %610 = vmatprep.subr.bf16.mxu0 0
  %611 = vmatpush1.bf16.msra.mxu0 0
  %612 = vmatprep.subr.bf16.mxu0 0
  %613 = vmatpush1.bf16.msra.mxu0 0
  %614 = vmatprep.subr.bf16.mxu0 0
  %615 = vmatpush1.bf16.msra.mxu0 0
  %616 = vmatprep.subr.bf16.mxu0 0
  %617 = vmatpush1.bf16.msra.mxu0 0
  %618 = vmatprep.subr.bf16.mxu0 0
  %619 = vmatpush1.bf16.msra.mxu0 0
  %620 = vmatprep.subr.bf16.mxu0 0
  %621 = vmatpush1.bf16.msra.mxu0 0
  %622 = vmatprep.subr.bf16.mxu0 0
  %623 = vmatpush1.bf16.msra.mxu0 0
  %624 = vmatprep.mubr.bf16.mxu0 0
  %625 = vmatmul.mubr.bf16.gmra.mrb[0].mxu0 %v590
  %v626 = vpop.f32.mrb[0].mxu0
  %v627 = vadd.f32 0.0, %v626
  %v628 = vpop.f32.mrb[0].mxu0
  %v629 = vpop.f32.mrb[0].mxu0
  %v630 = vpop.f32.mrb[0].mxu0
  %631 = vdwg.mxu0
  %v632 = vadd.f32 %v584, %v627
  %v633 = vxor.u32 %v632, 2147483648
  %v634 = vmul.f32 %v633, 1.442695
  %v635 = vpow.pop %v634
  %v636 = vadd.f32 %v635, 1.0
  %v637 = vrcp.pop %v636
  %v638 = vmul.f32 1.0, %v637
  %v639 = vadd.f32 %v627, %v454
  %641 = vrot.lane.b32.xlu0 %v639, 64
  %v642 = vpop.permute.xlu0 %641
  %v644 = vmul.f32 %v638, %v642
  %646 = vrot.lane.b32.xlu0 %v644, 64
  %v647 = vpop.permute.xlu0 %646
  %v649 = vadd.f32 %v584, %v647
  %v650 = vtanh.pop %v649
  %v651 = vsub.f32 %v492, %v650
  %653 = vrot.lane.b32.xlu0 %v651, 96
  %v654 = vpop.permute.xlu0 %653
  %v656 = vmul.f32 %v638, %v654
  %658 = vrot.lane.b32.xlu0 %v656, 32
  %v659 = vpop.permute.xlu0 %658
  %v661 = vadd.f32 %v650, %v659
  %vm662 = vcmp.gt.f32.partialorder %v291, 1.0
  %v663 = vsel %vm662, 1, 0
  %664 = vset.pattern.permute.xlu0 0
  %665 = vperm.xlu0 %664, %v663
  %v666 = vpop.permute.xlu0 %665
  %vm667 = vcmp.eq.s32.totalorder %v666, 1
  %v668 = vsel %vm667, %v582, %v485
  %vm669 = vcmp.gt.f32.partialorder %v291, 6.0
  %v670 = vsel %vm669, 1, 0
  %671 = vset.pattern.permute.xlu0 0
  %672 = vperm.xlu0 %671, %v670
  %v673 = vpop.permute.xlu0 %672
  %vm674 = vcmp.eq.s32.totalorder %v673, 1
  %v675 = vsel %vm674, %v661, %v492
  %677 = vrot.lane.b32.xlu0 %v668, 64
  %v678 = vpop.permute.xlu0 %677
  %s680 = scalar_lea.vmem [#allocation4], 8
  %681 = vst.msk [vmem:[%s680] sm:$0xff] %vm305, %v678
  %683 = vrot.lane.b32.xlu0 %v675, 64
  %v684 = vpop.permute.xlu0 %683
  %s686 = scalar_lea.vmem [#allocation5], 48
  %687 = vst.msk [vmem:[%s686] sm:$0xff] %vm305, %v684
  %s688 = scalar_lea.vmem [#allocation2], 16
  %v689 = vld [vmem:[%s688] sm:$0xff]
  %v690 = vpack.c.bf16 %v668, %v668
  %692 = vrot.lane.b32.xlu0 %v690, 64
  %v693 = vpop.permute.xlu0 %692
  %v695 = vsel %vm305, %v693, 0
  %697 = vmatprep.subr.bf16.mxu0 0
  %698 = vmatpush1.bf16.msra.mxu0 %v301
  %699 = vmatprep.subr.bf16.mxu0 0
  %700 = vmatpush1.bf16.msra.mxu0 %v302
  %701 = vmatprep.subr.bf16.mxu0 0
  %702 = vmatpush1.bf16.msra.mxu0 0
  %703 = vmatprep.subr.bf16.mxu0 0
  %704 = vmatpush1.bf16.msra.mxu0 0
  %705 = vmatprep.subr.bf16.mxu0 0
  %706 = vmatpush1.bf16.msra.mxu0 0
  %707 = vmatprep.subr.bf16.mxu0 0
  %708 = vmatpush1.bf16.msra.mxu0 0
  %709 = vmatprep.subr.bf16.mxu0 0
  %710 = vmatpush1.bf16.msra.mxu0 0
  %711 = vmatprep.subr.bf16.mxu0 0
  %712 = vmatpush1.bf16.msra.mxu0 0
  %713 = vmatprep.subr.bf16.mxu0 0
  %714 = vmatpush1.bf16.msra.mxu0 0
  %715 = vmatprep.subr.bf16.mxu0 0
  %716 = vmatpush1.bf16.msra.mxu0 0
  %717 = vmatprep.subr.bf16.mxu0 0
  %718 = vmatpush1.bf16.msra.mxu0 0
  %719 = vmatprep.subr.bf16.mxu0 0
  %720 = vmatpush1.bf16.msra.mxu0 0
  %721 = vmatprep.subr.bf16.mxu0 0
  %722 = vmatpush1.bf16.msra.mxu0 0
  %723 = vmatprep.subr.bf16.mxu0 0
  %724 = vmatpush1.bf16.msra.mxu0 0
  %725 = vmatprep.subr.bf16.mxu0 0
  %726 = vmatpush1.bf16.msra.mxu0 0
  %727 = vmatprep.subr.bf16.mxu0 0
  %728 = vmatpush1.bf16.msra.mxu0 0
  %729 = vmatprep.mubr.bf16.mxu0 0
  %730 = vmatmul.mubr.bf16.gmra.mrb[0].mxu0 %v695
  %v731 = vpop.f32.mrb[0].mxu0
  %v732 = vadd.f32 0.0, %v731
  %v733 = vpop.f32.mrb[0].mxu0
  %v734 = vpop.f32.mrb[0].mxu0
  %v735 = vpop.f32.mrb[0].mxu0
  %736 = vdwg.mxu0
  %v737 = vadd.f32 %v689, %v732
  %v738 = vxor.u32 %v737, 2147483648
  %v739 = vmul.f32 %v738, 1.442695
  %v740 = vpow.pop %v739
  %v741 = vadd.f32 %v740, 1.0
  %v742 = vrcp.pop %v741
  %v743 = vmul.f32 1.0, %v742
  %v744 = vadd.f32 %v732, %v362
  %746 = vrot.lane.b32.xlu0 %v744, 64
  %v747 = vpop.permute.xlu0 %746
  %v749 = vmul.f32 %v743, %v747
  %751 = vrot.lane.b32.xlu0 %v749, 64
  %v752 = vpop.permute.xlu0 %751
  %v754 = vadd.f32 %v689, %v752
  %v755 = vtanh.pop %v754
  %v756 = vsub.f32 %v668, %v755
  %758 = vrot.lane.b32.xlu0 %v756, 96
  %v759 = vpop.permute.xlu0 %758
  %v761 = vmul.f32 %v743, %v759
  %763 = vrot.lane.b32.xlu0 %v761, 32
  %v764 = vpop.permute.xlu0 %763
  %v766 = vadd.f32 %v755, %v764
  %s767 = scalar_lea.vmem [#allocation3], 40
  %v768 = vld [vmem:[%s767] sm:$0xff]
  %v769 = vpack.c.bf16 %v675, %v675
  %771 = vrot.lane.b32.xlu0 %v769, 64
  %v772 = vpop.permute.xlu0 %771
  %v774 = vsel %vm305, %v772, 0
  %776 = vmatprep.subr.bf16.mxu0 0
  %777 = vmatpush1.bf16.msra.mxu0 %v397
  %778 = vmatprep.subr.bf16.mxu0 0
  %779 = vmatpush1.bf16.msra.mxu0 %v398
  %780 = vmatprep.subr.bf16.mxu0 0
  %781 = vmatpush1.bf16.msra.mxu0 0
  %782 = vmatprep.subr.bf16.mxu0 0
  %783 = vmatpush1.bf16.msra.mxu0 0
  %784 = vmatprep.subr.bf16.mxu0 0
  %785 = vmatpush1.bf16.msra.mxu0 0
  %786 = vmatprep.subr.bf16.mxu0 0
  %787 = vmatpush1.bf16.msra.mxu0 0
  %788 = vmatprep.subr.bf16.mxu0 0
  %789 = vmatpush1.bf16.msra.mxu0 0
  %790 = vmatprep.subr.bf16.mxu0 0
  %791 = vmatpush1.bf16.msra.mxu0 0
  %792 = vmatprep.subr.bf16.mxu0 0
  %793 = vmatpush1.bf16.msra.mxu0 0
  %794 = vmatprep.subr.bf16.mxu0 0
  %795 = vmatpush1.bf16.msra.mxu0 0
  %796 = vmatprep.subr.bf16.mxu0 0
  %797 = vmatpush1.bf16.msra.mxu0 0
  %798 = vmatprep.subr.bf16.mxu0 0
  %799 = vmatpush1.bf16.msra.mxu0 0
  %800 = vmatprep.subr.bf16.mxu0 0
  %801 = vmatpush1.bf16.msra.mxu0 0
  %802 = vmatprep.subr.bf16.mxu0 0
  %803 = vmatpush1.bf16.msra.mxu0 0
  %804 = vmatprep.subr.bf16.mxu0 0
  %805 = vmatpush1.bf16.msra.mxu0 0
  %806 = vmatprep.subr.bf16.mxu0 0
  %807 = vmatpush1.bf16.msra.mxu0 0
  %808 = vmatprep.mubr.bf16.mxu0 0
  %809 = vmatmul.mubr.bf16.gmra.mrb[0].mxu0 %v774
  %v810 = vpop.f32.mrb[0].mxu0
  %v811 = vadd.f32 0.0, %v810
  %v812 = vpop.f32.mrb[0].mxu0
  %v813 = vpop.f32.mrb[0].mxu0
  %v814 = vpop.f32.mrb[0].mxu0
  %815 = vdwg.mxu0
  %v816 = vadd.f32 %v768, %v811
  %v817 = vxor.u32 %v816, 2147483648
  %v818 = vmul.f32 %v817, 1.442695
  %v819 = vpow.pop %v818
  %v820 = vadd.f32 %v819, 1.0
  %v821 = vrcp.pop %v820
  %v822 = vmul.f32 1.0, %v821
  %v823 = vadd.f32 %v811, %v454
  %825 = vrot.lane.b32.xlu0 %v823, 64
  %v826 = vpop.permute.xlu0 %825
  %v828 = vmul.f32 %v822, %v826
  %830 = vrot.lane.b32.xlu0 %v828, 64
  %v831 = vpop.permute.xlu0 %830
  %v833 = vadd.f32 %v768, %v831
  %v834 = vtanh.pop %v833
  %v835 = vsub.f32 %v675, %v834
  %837 = vrot.lane.b32.xlu0 %v835, 96
  %v838 = vpop.permute.xlu0 %837
  %v840 = vmul.f32 %v822, %v838
  %842 = vrot.lane.b32.xlu0 %v840, 32
  %v843 = vpop.permute.xlu0 %842
  %v845 = vadd.f32 %v834, %v843
  %vm846 = vcmp.gt.f32.partialorder %v291, 2.0
  %v847 = vsel %vm846, 1, 0
  %848 = vset.pattern.permute.xlu0 0
  %849 = vperm.xlu0 %848, %v847
  %v850 = vpop.permute.xlu0 %849
  %vm851 = vcmp.eq.s32.totalorder %v850, 1
  %v852 = vsel %vm851, %v766, %v668
  %vm853 = vcmp.gt.f32.partialorder %v291, 5.0
  %v854 = vsel %vm853, 1, 0
  %855 = vset.pattern.permute.xlu0 0
  %856 = vperm.xlu0 %855, %v854
  %v857 = vpop.permute.xlu0 %856
  %vm858 = vcmp.eq.s32.totalorder %v857, 1
  %v859 = vsel %vm858, %v845, %v675
  %861 = vrot.lane.b32.xlu0 %v852, 64
  %v862 = vpop.permute.xlu0 %861
  %s864 = scalar_lea.vmem [#allocation4], 16
  %865 = vst.msk [vmem:[%s864] sm:$0xff] %vm305, %v862
  %867 = vrot.lane.b32.xlu0 %v859, 64
  %v868 = vpop.permute.xlu0 %867
  %s870 = scalar_lea.vmem [#allocation5], 40
  %871 = vst.msk [vmem:[%s870] sm:$0xff] %vm305, %v868
  %s872 = scalar_lea.vmem [#allocation2], 24
  %v873 = vld [vmem:[%s872] sm:$0xff]
  %v874 = vpack.c.bf16 %v852, %v852
  %876 = vrot.lane.b32.xlu0 %v874, 64
  %v877 = vpop.permute.xlu0 %876
  %v879 = vsel %vm305, %v877, 0
  %881 = vmatprep.subr.bf16.mxu0 0
  %882 = vmatpush1.bf16.msra.mxu0 %v301
  %883 = vmatprep.subr.bf16.mxu0 0
  %884 = vmatpush1.bf16.msra.mxu0 %v302
  %885 = vmatprep.subr.bf16.mxu0 0
  %886 = vmatpush1.bf16.msra.mxu0 0
  %887 = vmatprep.subr.bf16.mxu0 0
  %888 = vmatpush1.bf16.msra.mxu0 0
  %889 = vmatprep.subr.bf16.mxu0 0
  %890 = vmatpush1.bf16.msra.mxu0 0
  %891 = vmatprep.subr.bf16.mxu0 0
  %892 = vmatpush1.bf16.msra.mxu0 0
  %893 = vmatprep.subr.bf16.mxu0 0
  %894 = vmatpush1.bf16.msra.mxu0 0
  %895 = vmatprep.subr.bf16.mxu0 0
  %896 = vmatpush1.bf16.msra.mxu0 0
  %897 = vmatprep.subr.bf16.mxu0 0
  %898 = vmatpush1.bf16.msra.mxu0 0
  %899 = vmatprep.subr.bf16.mxu0 0
  %900 = vmatpush1.bf16.msra.mxu0 0
  %901 = vmatprep.subr.bf16.mxu0 0
  %902 = vmatpush1.bf16.msra.mxu0 0
  %903 = vmatprep.subr.bf16.mxu0 0
  %904 = vmatpush1.bf16.msra.mxu0 0
  %905 = vmatprep.subr.bf16.mxu0 0
  %906 = vmatpush1.bf16.msra.mxu0 0
  %907 = vmatprep.subr.bf16.mxu0 0
  %908 = vmatpush1.bf16.msra.mxu0 0
  %909 = vmatprep.subr.bf16.mxu0 0
  %910 = vmatpush1.bf16.msra.mxu0 0
  %911 = vmatprep.subr.bf16.mxu0 0
  %912 = vmatpush1.bf16.msra.mxu0 0
  %913 = vmatprep.mubr.bf16.mxu0 0
  %914 = vmatmul.mubr.bf16.gmra.mrb[0].mxu0 %v879
  %v915 = vpop.f32.mrb[0].mxu0
  %v916 = vadd.f32 0.0, %v915
  %v917 = vpop.f32.mrb[0].mxu0
  %v918 = vpop.f32.mrb[0].mxu0
  %v919 = vpop.f32.mrb[0].mxu0
  %920 = vdwg.mxu0
  %v921 = vadd.f32 %v873, %v916
  %v922 = vxor.u32 %v921, 2147483648
  %v923 = vmul.f32 %v922, 1.442695
  %v924 = vpow.pop %v923
  %v925 = vadd.f32 %v924, 1.0
  %v926 = vrcp.pop %v925
  %v927 = vmul.f32 1.0, %v926
  %v928 = vadd.f32 %v916, %v362
  %930 = vrot.lane.b32.xlu0 %v928, 64
  %v931 = vpop.permute.xlu0 %930
  %v933 = vmul.f32 %v927, %v931
  %935 = vrot.lane.b32.xlu0 %v933, 64
  %v936 = vpop.permute.xlu0 %935
  %v938 = vadd.f32 %v873, %v936
  %v939 = vtanh.pop %v938
  %v940 = vsub.f32 %v852, %v939
  %942 = vrot.lane.b32.xlu0 %v940, 96
  %v943 = vpop.permute.xlu0 %942
  %v945 = vmul.f32 %v927, %v943
  %947 = vrot.lane.b32.xlu0 %v945, 32
  %v948 = vpop.permute.xlu0 %947
  %v950 = vadd.f32 %v939, %v948
  %s951 = scalar_lea.vmem [#allocation3], 32
  %v952 = vld [vmem:[%s951] sm:$0xff]
  %v953 = vpack.c.bf16 %v859, %v859
  %955 = vrot.lane.b32.xlu0 %v953, 64
  %v956 = vpop.permute.xlu0 %955
  %v958 = vsel %vm305, %v956, 0
  %960 = vmatprep.subr.bf16.mxu0 0
  %961 = vmatpush1.bf16.msra.mxu0 %v397
  %962 = vmatprep.subr.bf16.mxu0 0
  %963 = vmatpush1.bf16.msra.mxu0 %v398
  %964 = vmatprep.subr.bf16.mxu0 0
  %965 = vmatpush1.bf16.msra.mxu0 0
  %966 = vmatprep.subr.bf16.mxu0 0
  %967 = vmatpush1.bf16.msra.mxu0 0
  %968 = vmatprep.subr.bf16.mxu0 0
  %969 = vmatpush1.bf16.msra.mxu0 0
  %970 = vmatprep.subr.bf16.mxu0 0
  %971 = vmatpush1.bf16.msra.mxu0 0
  %972 = vmatprep.subr.bf16.mxu0 0
  %973 = vmatpush1.bf16.msra.mxu0 0
  %974 = vmatprep.subr.bf16.mxu0 0
  %975 = vmatpush1.bf16.msra.mxu0 0
  %976 = vmatprep.subr.bf16.mxu0 0
  %977 = vmatpush1.bf16.msra.mxu0 0
  %978 = vmatprep.subr.bf16.mxu0 0
  %979 = vmatpush1.bf16.msra.mxu0 0
  %980 = vmatprep.subr.bf16.mxu0 0
  %981 = vmatpush1.bf16.msra.mxu0 0
  %982 = vmatprep.subr.bf16.mxu0 0
  %983 = vmatpush1.bf16.msra.mxu0 0
  %984 = vmatprep.subr.bf16.mxu0 0
  %985 = vmatpush1.bf16.msra.mxu0 0
  %986 = vmatprep.subr.bf16.mxu0 0
  %987 = vmatpush1.bf16.msra.mxu0 0
  %988 = vmatprep.subr.bf16.mxu0 0
  %989 = vmatpush1.bf16.msra.mxu0 0
  %990 = vmatprep.subr.bf16.mxu0 0
  %991 = vmatpush1.bf16.msra.mxu0 0
  %992 = vmatprep.mubr.bf16.mxu0 0
  %993 = vmatmul.mubr.bf16.gmra.mrb[0].mxu0 %v958
  %v994 = vpop.f32.mrb[0].mxu0
  %v995 = vadd.f32 0.0, %v994
  %v996 = vpop.f32.mrb[0].mxu0
  %v997 = vpop.f32.mrb[0].mxu0
  %v998 = vpop.f32.mrb[0].mxu0
  %999 = vdwg.mxu0
  %v1000 = vadd.f32 %v952, %v995
  %v1001 = vxor.u32 %v1000, 2147483648
  %v1002 = vmul.f32 %v1001, 1.442695
  %v1003 = vpow.pop %v1002
  %v1004 = vadd.f32 %v1003, 1.0
  %v1005 = vrcp.pop %v1004
  %v1006 = vmul.f32 1.0, %v1005
  %v1007 = vadd.f32 %v995, %v454
  %1009 = vrot.lane.b32.xlu0 %v1007, 64
  %v1010 = vpop.permute.xlu0 %1009
  %v1012 = vmul.f32 %v1006, %v1010
  %1014 = vrot.lane.b32.xlu0 %v1012, 64
  %v1015 = vpop.permute.xlu0 %1014
  %v1017 = vadd.f32 %v952, %v1015
  %v1018 = vtanh.pop %v1017
  %v1019 = vsub.f32 %v859, %v1018
  %1021 = vrot.lane.b32.xlu0 %v1019, 96
  %v1022 = vpop.permute.xlu0 %1021
  %v1024 = vmul.f32 %v1006, %v1022
  %1026 = vrot.lane.b32.xlu0 %v1024, 32
  %v1027 = vpop.permute.xlu0 %1026
  %v1029 = vadd.f32 %v1018, %v1027
  %vm1030 = vcmp.gt.f32.partialorder %v291, 3.0
  %v1031 = vsel %vm1030, 1, 0
  %1032 = vset.pattern.permute.xlu0 0
  %1033 = vperm.xlu0 %1032, %v1031
  %v1034 = vpop.permute.xlu0 %1033
  %vm1035 = vcmp.eq.s32.totalorder %v1034, 1
  %v1036 = vsel %vm1035, %v950, %v852
  %vm1037 = vcmp.gt.f32.partialorder %v291, 4.0
  %v1038 = vsel %vm1037, 1, 0
  %1039 = vset.pattern.permute.xlu0 0
  %1040 = vperm.xlu0 %1039, %v1038
  %v1041 = vpop.permute.xlu0 %1040
  %vm1042 = vcmp.eq.s32.totalorder %v1041, 1
  %v1043 = vsel %vm1042, %v1029, %v859
  %1045 = vrot.lane.b32.xlu0 %v1036, 64
  %v1046 = vpop.permute.xlu0 %1045
  %s1048 = scalar_lea.vmem [#allocation4], 24
  %1049 = vst.msk [vmem:[%s1048] sm:$0xff] %vm305, %v1046
  %1051 = vrot.lane.b32.xlu0 %v1043, 64
  %v1052 = vpop.permute.xlu0 %1051
  %s1054 = scalar_lea.vmem [#allocation5], 32
  %1055 = vst.msk [vmem:[%s1054] sm:$0xff] %vm305, %v1052
  %s1056 = scalar_lea.vmem [#allocation2], 32
  %v1057 = vld [vmem:[%s1056] sm:$0xff]
  %v1058 = vpack.c.bf16 %v1036, %v1036
  %1060 = vrot.lane.b32.xlu0 %v1058, 64
  %v1061 = vpop.permute.xlu0 %1060
  %v1063 = vsel %vm305, %v1061, 0
  %1065 = vmatprep.subr.bf16.mxu0 0
  %1066 = vmatpush1.bf16.msra.mxu0 %v301
  %1067 = vmatprep.subr.bf16.mxu0 0
  %1068 = vmatpush1.bf16.msra.mxu0 %v302
  %1069 = vmatprep.subr.bf16.mxu0 0
  %1070 = vmatpush1.bf16.msra.mxu0 0
  %1071 = vmatprep.subr.bf16.mxu0 0
  %1072 = vmatpush1.bf16.msra.mxu0 0
  %1073 = vmatprep.subr.bf16.mxu0 0
  %1074 = vmatpush1.bf16.msra.mxu0 0
  %1075 = vmatprep.subr.bf16.mxu0 0
  %1076 = vmatpush1.bf16.msra.mxu0 0
  %1077 = vmatprep.subr.bf16.mxu0 0
  %1078 = vmatpush1.bf16.msra.mxu0 0
  %1079 = vmatprep.subr.bf16.mxu0 0
  %1080 = vmatpush1.bf16.msra.mxu0 0
  %1081 = vmatprep.subr.bf16.mxu0 0
  %1082 = vmatpush1.bf16.msra.mxu0 0
  %1083 = vmatprep.subr.bf16.mxu0 0
  %1084 = vmatpush1.bf16.msra.mxu0 0
  %1085 = vmatprep.subr.bf16.mxu0 0
  %1086 = vmatpush1.bf16.msra.mxu0 0
  %1087 = vmatprep.subr.bf16.mxu0 0
  %1088 = vmatpush1.bf16.msra.mxu0 0
  %1089 = vmatprep.subr.bf16.mxu0 0
  %1090 = vmatpush1.bf16.msra.mxu0 0
  %1091 = vmatprep.subr.bf16.mxu0 0
  %1092 = vmatpush1.bf16.msra.mxu0 0
  %1093 = vmatprep.subr.bf16.mxu0 0
  %1094 = vmatpush1.bf16.msra.mxu0 0
  %1095 = vmatprep.subr.bf16.mxu0 0
  %1096 = vmatpush1.bf16.msra.mxu0 0
  %1097 = vmatprep.mubr.bf16.mxu0 0
  %1098 = vmatmul.mubr.bf16.gmra.mrb[0].mxu0 %v1063
  %v1099 = vpop.f32.mrb[0].mxu0
  %v1100 = vadd.f32 0.0, %v1099
  %v1101 = vpop.f32.mrb[0].mxu0
  %v1102 = vpop.f32.mrb[0].mxu0
  %v1103 = vpop.f32.mrb[0].mxu0
  %1104 = vdwg.mxu0
  %v1105 = vadd.f32 %v1057, %v1100
  %v1106 = vxor.u32 %v1105, 2147483648
  %v1107 = vmul.f32 %v1106, 1.442695
  %v1108 = vpow.pop %v1107
  %v1109 = vadd.f32 %v1108, 1.0
  %v1110 = vrcp.pop %v1109
  %v1111 = vmul.f32 1.0, %v1110
  %v1112 = vadd.f32 %v1100, %v362
  %1114 = vrot.lane.b32.xlu0 %v1112, 64
  %v1115 = vpop.permute.xlu0 %1114
  %v1117 = vmul.f32 %v1111, %v1115
  %1119 = vrot.lane.b32.xlu0 %v1117, 64
  %v1120 = vpop.permute.xlu0 %1119
  %v1122 = vadd.f32 %v1057, %v1120
  %v1123 = vtanh.pop %v1122
  %v1124 = vsub.f32 %v1036, %v1123
  %1126 = vrot.lane.b32.xlu0 %v1124, 96
  %v1127 = vpop.permute.xlu0 %1126
  %v1129 = vmul.f32 %v1111, %v1127
  %1131 = vrot.lane.b32.xlu0 %v1129, 32
  %v1132 = vpop.permute.xlu0 %1131
  %v1134 = vadd.f32 %v1123, %v1132
  %s1135 = scalar_lea.vmem [#allocation3], 24
  %v1136 = vld [vmem:[%s1135] sm:$0xff]
  %v1137 = vpack.c.bf16 %v1043, %v1043
  %1139 = vrot.lane.b32.xlu0 %v1137, 64
  %v1140 = vpop.permute.xlu0 %1139
  %v1142 = vsel %vm305, %v1140, 0
  %1144 = vmatprep.subr.bf16.mxu0 0
  %1145 = vmatpush1.bf16.msra.mxu0 %v397
  %1146 = vmatprep.subr.bf16.mxu0 0
  %1147 = vmatpush1.bf16.msra.mxu0 %v398
  %1148 = vmatprep.subr.bf16.mxu0 0
  %1149 = vmatpush1.bf16.msra.mxu0 0
  %1150 = vmatprep.subr.bf16.mxu0 0
  %1151 = vmatpush1.bf16.msra.mxu0 0
  %1152 = vmatprep.subr.bf16.mxu0 0
  %1153 = vmatpush1.bf16.msra.mxu0 0
  %1154 = vmatprep.subr.bf16.mxu0 0
  %1155 = vmatpush1.bf16.msra.mxu0 0
  %1156 = vmatprep.subr.bf16.mxu0 0
  %1157 = vmatpush1.bf16.msra.mxu0 0
  %1158 = vmatprep.subr.bf16.mxu0 0
  %1159 = vmatpush1.bf16.msra.mxu0 0
  %1160 = vmatprep.subr.bf16.mxu0 0
  %1161 = vmatpush1.bf16.msra.mxu0 0
  %1162 = vmatprep.subr.bf16.mxu0 0
  %1163 = vmatpush1.bf16.msra.mxu0 0
  %1164 = vmatprep.subr.bf16.mxu0 0
  %1165 = vmatpush1.bf16.msra.mxu0 0
  %1166 = vmatprep.subr.bf16.mxu0 0
  %1167 = vmatpush1.bf16.msra.mxu0 0
  %1168 = vmatprep.subr.bf16.mxu0 0
  %1169 = vmatpush1.bf16.msra.mxu0 0
  %1170 = vmatprep.subr.bf16.mxu0 0
  %1171 = vmatpush1.bf16.msra.mxu0 0
  %1172 = vmatprep.subr.bf16.mxu0 0
  %1173 = vmatpush1.bf16.msra.mxu0 0
  %1174 = vmatprep.subr.bf16.mxu0 0
  %1175 = vmatpush1.bf16.msra.mxu0 0
  %1176 = vmatprep.mubr.bf16.mxu0 0
  %1177 = vmatmul.mubr.bf16.gmra.mrb[0].mxu0 %v1142
  %v1178 = vpop.f32.mrb[0].mxu0
  %v1179 = vadd.f32 0.0, %v1178
  %v1180 = vpop.f32.mrb[0].mxu0
  %v1181 = vpop.f32.mrb[0].mxu0
  %v1182 = vpop.f32.mrb[0].mxu0
  %1183 = vdwg.mxu0
  %v1184 = vadd.f32 %v1136, %v1179
  %v1185 = vxor.u32 %v1184, 2147483648
  %v1186 = vmul.f32 %v1185, 1.442695
  %v1187 = vpow.pop %v1186
  %v1188 = vadd.f32 %v1187, 1.0
  %v1189 = vrcp.pop %v1188
  %v1190 = vmul.f32 1.0, %v1189
  %v1191 = vadd.f32 %v1179, %v454
  %1193 = vrot.lane.b32.xlu0 %v1191, 64
  %v1194 = vpop.permute.xlu0 %1193
  %v1196 = vmul.f32 %v1190, %v1194
  %1198 = vrot.lane.b32.xlu0 %v1196, 64
  %v1199 = vpop.permute.xlu0 %1198
  %v1201 = vadd.f32 %v1136, %v1199
  %v1202 = vtanh.pop %v1201
  %v1203 = vsub.f32 %v1043, %v1202
  %1205 = vrot.lane.b32.xlu0 %v1203, 96
  %v1206 = vpop.permute.xlu0 %1205
  %v1208 = vmul.f32 %v1190, %v1206
  %1210 = vrot.lane.b32.xlu0 %v1208, 32
  %v1211 = vpop.permute.xlu0 %1210
  %v1213 = vadd.f32 %v1202, %v1211
  %v1214 = vsel %vm1042, %v1134, %v1036
  %v1215 = vsel %vm1035, %v1213, %v1043
  %1217 = vrot.lane.b32.xlu0 %v1214, 64
  %v1218 = vpop.permute.xlu0 %1217
  %s1220 = scalar_lea.vmem [#allocation4], 32
  %1221 = vst.msk [vmem:[%s1220] sm:$0xff] %vm305, %v1218
  %1223 = vrot.lane.b32.xlu0 %v1215, 64
  %v1224 = vpop.permute.xlu0 %1223
  %s1226 = scalar_lea.vmem [#allocation5], 24
  %1227 = vst.msk [vmem:[%s1226] sm:$0xff] %vm305, %v1224
  %s1228 = scalar_lea.vmem [#allocation2], 40
  %v1229 = vld [vmem:[%s1228] sm:$0xff]
  %v1230 = vpack.c.bf16 %v1214, %v1214
  %1232 = vrot.lane.b32.xlu0 %v1230, 64
  %v1233 = vpop.permute.xlu0 %1232
  %v1235 = vsel %vm305, %v1233, 0
  %1237 = vmatprep.subr.bf16.mxu0 0
  %1238 = vmatpush1.bf16.msra.mxu0 %v301
  %1239 = vmatprep.subr.bf16.mxu0 0
  %1240 = vmatpush1.bf16.msra.mxu0 %v302
  %1241 = vmatprep.subr.bf16.mxu0 0
  %1242 = vmatpush1.bf16.msra.mxu0 0
  %1243 = vmatprep.subr.bf16.mxu0 0
  %1244 = vmatpush1.bf16.msra.mxu0 0
  %1245 = vmatprep.subr.bf16.mxu0 0
  %1246 = vmatpush1.bf16.msra.mxu0 0
  %1247 = vmatprep.subr.bf16.mxu0 0
  %1248 = vmatpush1.bf16.msra.mxu0 0
  %1249 = vmatprep.subr.bf16.mxu0 0
  %1250 = vmatpush1.bf16.msra.mxu0 0
  %1251 = vmatprep.subr.bf16.mxu0 0
  %1252 = vmatpush1.bf16.msra.mxu0 0
  %1253 = vmatprep.subr.bf16.mxu0 0
  %1254 = vmatpush1.bf16.msra.mxu0 0
  %1255 = vmatprep.subr.bf16.mxu0 0
  %1256 = vmatpush1.bf16.msra.mxu0 0
  %1257 = vmatprep.subr.bf16.mxu0 0
  %1258 = vmatpush1.bf16.msra.mxu0 0
  %1259 = vmatprep.subr.bf16.mxu0 0
  %1260 = vmatpush1.bf16.msra.mxu0 0
  %1261 = vmatprep.subr.bf16.mxu0 0
  %1262 = vmatpush1.bf16.msra.mxu0 0
  %1263 = vmatprep.subr.bf16.mxu0 0
  %1264 = vmatpush1.bf16.msra.mxu0 0
  %1265 = vmatprep.subr.bf16.mxu0 0
  %1266 = vmatpush1.bf16.msra.mxu0 0
  %1267 = vmatprep.subr.bf16.mxu0 0
  %1268 = vmatpush1.bf16.msra.mxu0 0
  %1269 = vmatprep.mubr.bf16.mxu0 0
  %1270 = vmatmul.mubr.bf16.gmra.mrb[0].mxu0 %v1235
  %v1271 = vpop.f32.mrb[0].mxu0
  %v1272 = vadd.f32 0.0, %v1271
  %v1273 = vpop.f32.mrb[0].mxu0
  %v1274 = vpop.f32.mrb[0].mxu0
  %v1275 = vpop.f32.mrb[0].mxu0
  %1276 = vdwg.mxu0
  %v1277 = vadd.f32 %v1229, %v1272
  %v1278 = vxor.u32 %v1277, 2147483648
  %v1279 = vmul.f32 %v1278, 1.442695
  %v1280 = vpow.pop %v1279
  %v1281 = vadd.f32 %v1280, 1.0
  %v1282 = vrcp.pop %v1281
  %v1283 = vmul.f32 1.0, %v1282
  %v1284 = vadd.f32 %v1272, %v362
  %1286 = vrot.lane.b32.xlu0 %v1284, 64
  %v1287 = vpop.permute.xlu0 %1286
  %v1289 = vmul.f32 %v1283, %v1287
  %1291 = vrot.lane.b32.xlu0 %v1289, 64
  %v1292 = vpop.permute.xlu0 %1291
  %v1294 = vadd.f32 %v1229, %v1292
  %v1295 = vtanh.pop %v1294
  %v1296 = vsub.f32 %v1214, %v1295
  %1298 = vrot.lane.b32.xlu0 %v1296, 96
  %v1299 = vpop.permute.xlu0 %1298
  %v1301 = vmul.f32 %v1283, %v1299
  %1303 = vrot.lane.b32.xlu0 %v1301, 32
  %v1304 = vpop.permute.xlu0 %1303
  %v1306 = vadd.f32 %v1295, %v1304
  %s1307 = scalar_lea.vmem [#allocation3], 16
  %v1308 = vld [vmem:[%s1307] sm:$0xff]
  %v1309 = vpack.c.bf16 %v1215, %v1215
  %1311 = vrot.lane.b32.xlu0 %v1309, 64
  %v1312 = vpop.permute.xlu0 %1311
  %v1314 = vsel %vm305, %v1312, 0
  %1316 = vmatprep.subr.bf16.mxu0 0
  %1317 = vmatpush1.bf16.msra.mxu0 %v397
  %1318 = vmatprep.subr.bf16.mxu0 0
  %1319 = vmatpush1.bf16.msra.mxu0 %v398
  %1320 = vmatprep.subr.bf16.mxu0 0
  %1321 = vmatpush1.bf16.msra.mxu0 0
  %1322 = vmatprep.subr.bf16.mxu0 0
  %1323 = vmatpush1.bf16.msra.mxu0 0
  %1324 = vmatprep.subr.bf16.mxu0 0
  %1325 = vmatpush1.bf16.msra.mxu0 0
  %1326 = vmatprep.subr.bf16.mxu0 0
  %1327 = vmatpush1.bf16.msra.mxu0 0
  %1328 = vmatprep.subr.bf16.mxu0 0
  %1329 = vmatpush1.bf16.msra.mxu0 0
  %1330 = vmatprep.subr.bf16.mxu0 0
  %1331 = vmatpush1.bf16.msra.mxu0 0
  %1332 = vmatprep.subr.bf16.mxu0 0
  %1333 = vmatpush1.bf16.msra.mxu0 0
  %1334 = vmatprep.subr.bf16.mxu0 0
  %1335 = vmatpush1.bf16.msra.mxu0 0
  %1336 = vmatprep.subr.bf16.mxu0 0
  %1337 = vmatpush1.bf16.msra.mxu0 0
  %1338 = vmatprep.subr.bf16.mxu0 0
  %1339 = vmatpush1.bf16.msra.mxu0 0
  %1340 = vmatprep.subr.bf16.mxu0 0
  %1341 = vmatpush1.bf16.msra.mxu0 0
  %1342 = vmatprep.subr.bf16.mxu0 0
  %1343 = vmatpush1.bf16.msra.mxu0 0
  %1344 = vmatprep.subr.bf16.mxu0 0
  %1345 = vmatpush1.bf16.msra.mxu0 0
  %1346 = vmatprep.subr.bf16.mxu0 0
  %1347 = vmatpush1.bf16.msra.mxu0 0
  %1348 = vmatprep.mubr.bf16.mxu0 0
  %1349 = vmatmul.mubr.bf16.gmra.mrb[0].mxu0 %v1314
  %v1350 = vpop.f32.mrb[0].mxu0
  %v1351 = vadd.f32 0.0, %v1350
  %v1352 = vpop.f32.mrb[0].mxu0
  %v1353 = vpop.f32.mrb[0].mxu0
  %v1354 = vpop.f32.mrb[0].mxu0
  %1355 = vdwg.mxu0
  %v1356 = vadd.f32 %v1308, %v1351
  %v1357 = vxor.u32 %v1356, 2147483648
  %v1358 = vmul.f32 %v1357, 1.442695
  %v1359 = vpow.pop %v1358
  %v1360 = vadd.f32 %v1359, 1.0
  %v1361 = vrcp.pop %v1360
  %v1362 = vmul.f32 1.0, %v1361
  %v1363 = vadd.f32 %v1351, %v454
  %1365 = vrot.lane.b32.xlu0 %v1363, 64
  %v1366 = vpop.permute.xlu0 %1365
  %v1368 = vmul.f32 %v1362, %v1366
  %1370 = vrot.lane.b32.xlu0 %v1368, 64
  %v1371 = vpop.permute.xlu0 %1370
  %v1373 = vadd.f32 %v1308, %v1371
  %v1374 = vtanh.pop %v1373
  %v1375 = vsub.f32 %v1215, %v1374
  %1377 = vrot.lane.b32.xlu0 %v1375, 96
  %v1378 = vpop.permute.xlu0 %1377
  %v1380 = vmul.f32 %v1362, %v1378
  %1382 = vrot.lane.b32.xlu0 %v1380, 32
  %v1383 = vpop.permute.xlu0 %1382
  %v1385 = vadd.f32 %v1374, %v1383
  %v1386 = vsel %vm858, %v1306, %v1214
  %v1387 = vsel %vm851, %v1385, %v1215
  %1389 = vrot.lane.b32.xlu0 %v1386, 64
  %v1390 = vpop.permute.xlu0 %1389
  %s1392 = scalar_lea.vmem [#allocation4], 40
  %1393 = vst.msk [vmem:[%s1392] sm:$0xff] %vm305, %v1390
  %1395 = vrot.lane.b32.xlu0 %v1387, 64
  %v1396 = vpop.permute.xlu0 %1395
  %s1398 = scalar_lea.vmem [#allocation5], 16
  %1399 = vst.msk [vmem:[%s1398] sm:$0xff] %vm305, %v1396
  %s1400 = scalar_lea.vmem [#allocation2], 48
  %v1401 = vld [vmem:[%s1400] sm:$0xff]
  %v1402 = vpack.c.bf16 %v1386, %v1386
  %1404 = vrot.lane.b32.xlu0 %v1402, 64
  %v1405 = vpop.permute.xlu0 %1404
  %v1407 = vsel %vm305, %v1405, 0
  %1409 = vmatprep.subr.bf16.mxu0 0
  %1410 = vmatpush1.bf16.msra.mxu0 %v301
  %1411 = vmatprep.subr.bf16.mxu0 0
  %1412 = vmatpush1.bf16.msra.mxu0 %v302
  %1413 = vmatprep.subr.bf16.mxu0 0
  %1414 = vmatpush1.bf16.msra.mxu0 0
  %1415 = vmatprep.subr.bf16.mxu0 0
  %1416 = vmatpush1.bf16.msra.mxu0 0
  %1417 = vmatprep.subr.bf16.mxu0 0
  %1418 = vmatpush1.bf16.msra.mxu0 0
  %1419 = vmatprep.subr.bf16.mxu0 0
  %1420 = vmatpush1.bf16.msra.mxu0 0
  %1421 = vmatprep.subr.bf16.mxu0 0
  %1422 = vmatpush1.bf16.msra.mxu0 0
  %1423 = vmatprep.subr.bf16.mxu0 0
  %1424 = vmatpush1.bf16.msra.mxu0 0
  %1425 = vmatprep.subr.bf16.mxu0 0
  %1426 = vmatpush1.bf16.msra.mxu0 0
  %1427 = vmatprep.subr.bf16.mxu0 0
  %1428 = vmatpush1.bf16.msra.mxu0 0
  %1429 = vmatprep.subr.bf16.mxu0 0
  %1430 = vmatpush1.bf16.msra.mxu0 0
  %1431 = vmatprep.subr.bf16.mxu0 0
  %1432 = vmatpush1.bf16.msra.mxu0 0
  %1433 = vmatprep.subr.bf16.mxu0 0
  %1434 = vmatpush1.bf16.msra.mxu0 0
  %1435 = vmatprep.subr.bf16.mxu0 0
  %1436 = vmatpush1.bf16.msra.mxu0 0
  %1437 = vmatprep.subr.bf16.mxu0 0
  %1438 = vmatpush1.bf16.msra.mxu0 0
  %1439 = vmatprep.subr.bf16.mxu0 0
  %1440 = vmatpush1.bf16.msra.mxu0 0
  %1441 = vmatprep.mubr.bf16.mxu0 0
  %1442 = vmatmul.mubr.bf16.gmra.mrb[0].mxu0 %v1407
  %v1443 = vpop.f32.mrb[0].mxu0
  %v1444 = vadd.f32 0.0, %v1443
  %v1445 = vpop.f32.mrb[0].mxu0
  %v1446 = vpop.f32.mrb[0].mxu0
  %v1447 = vpop.f32.mrb[0].mxu0
  %1448 = vdwg.mxu0
  %v1449 = vadd.f32 %v1401, %v1444
  %v1450 = vxor.u32 %v1449, 2147483648
  %v1451 = vmul.f32 %v1450, 1.442695
  %v1452 = vpow.pop %v1451
  %v1453 = vadd.f32 %v1452, 1.0
  %v1454 = vrcp.pop %v1453
  %v1455 = vmul.f32 1.0, %v1454
  %v1456 = vadd.f32 %v1444, %v362
  %1458 = vrot.lane.b32.xlu0 %v1456, 64
  %v1459 = vpop.permute.xlu0 %1458
  %v1461 = vmul.f32 %v1455, %v1459
  %1463 = vrot.lane.b32.xlu0 %v1461, 64
  %v1464 = vpop.permute.xlu0 %1463
  %v1466 = vadd.f32 %v1401, %v1464
  %v1467 = vtanh.pop %v1466
  %v1468 = vsub.f32 %v1386, %v1467
  %1470 = vrot.lane.b32.xlu0 %v1468, 96
  %v1471 = vpop.permute.xlu0 %1470
  %v1473 = vmul.f32 %v1455, %v1471
  %1475 = vrot.lane.b32.xlu0 %v1473, 32
  %v1476 = vpop.permute.xlu0 %1475
  %v1478 = vadd.f32 %v1467, %v1476
  %s1479 = scalar_lea.vmem [#allocation3], 8
  %v1480 = vld [vmem:[%s1479] sm:$0xff]
  %v1481 = vpack.c.bf16 %v1387, %v1387
  %1483 = vrot.lane.b32.xlu0 %v1481, 64
  %v1484 = vpop.permute.xlu0 %1483
  %v1486 = vsel %vm305, %v1484, 0
  %1488 = vmatprep.subr.bf16.mxu0 0
  %1489 = vmatpush1.bf16.msra.mxu0 %v397
  %1490 = vmatprep.subr.bf16.mxu0 0
  %1491 = vmatpush1.bf16.msra.mxu0 %v398
  %1492 = vmatprep.subr.bf16.mxu0 0
  %1493 = vmatpush1.bf16.msra.mxu0 0
  %1494 = vmatprep.subr.bf16.mxu0 0
  %1495 = vmatpush1.bf16.msra.mxu0 0
  %1496 = vmatprep.subr.bf16.mxu0 0
  %1497 = vmatpush1.bf16.msra.mxu0 0
  %1498 = vmatprep.subr.bf16.mxu0 0
  %1499 = vmatpush1.bf16.msra.mxu0 0
  %1500 = vmatprep.subr.bf16.mxu0 0
  %1501 = vmatpush1.bf16.msra.mxu0 0
  %1502 = vmatprep.subr.bf16.mxu0 0
  %1503 = vmatpush1.bf16.msra.mxu0 0
  %1504 = vmatprep.subr.bf16.mxu0 0
  %1505 = vmatpush1.bf16.msra.mxu0 0
  %1506 = vmatprep.subr.bf16.mxu0 0
  %1507 = vmatpush1.bf16.msra.mxu0 0
  %1508 = vmatprep.subr.bf16.mxu0 0
  %1509 = vmatpush1.bf16.msra.mxu0 0
  %1510 = vmatprep.subr.bf16.mxu0 0
  %1511 = vmatpush1.bf16.msra.mxu0 0
  %1512 = vmatprep.subr.bf16.mxu0 0
  %1513 = vmatpush1.bf16.msra.mxu0 0
  %1514 = vmatprep.subr.bf16.mxu0 0
  %1515 = vmatpush1.bf16.msra.mxu0 0
  %1516 = vmatprep.subr.bf16.mxu0 0
  %1517 = vmatpush1.bf16.msra.mxu0 0
  %1518 = vmatprep.subr.bf16.mxu0 0
  %1519 = vmatpush1.bf16.msra.mxu0 0
  %1520 = vmatprep.mubr.bf16.mxu0 0
  %1521 = vmatmul.mubr.bf16.gmra.mrb[0].mxu0 %v1486
  %v1522 = vpop.f32.mrb[0].mxu0
  %v1523 = vadd.f32 0.0, %v1522
  %v1524 = vpop.f32.mrb[0].mxu0
  %v1525 = vpop.f32.mrb[0].mxu0
  %v1526 = vpop.f32.mrb[0].mxu0
  %1527 = vdwg.mxu0
  %v1528 = vadd.f32 %v1480, %v1523
  %v1529 = vxor.u32 %v1528, 2147483648
  %v1530 = vmul.f32 %v1529, 1.442695
  %v1531 = vpow.pop %v1530
  %v1532 = vadd.f32 %v1531, 1.0
  %v1533 = vrcp.pop %v1532
  %v1534 = vmul.f32 1.0, %v1533
  %v1535 = vadd.f32 %v1523, %v454
  %1537 = vrot.lane.b32.xlu0 %v1535, 64
  %v1538 = vpop.permute.xlu0 %1537
  %v1540 = vmul.f32 %v1534, %v1538
  %1542 = vrot.lane.b32.xlu0 %v1540, 64
  %v1543 = vpop.permute.xlu0 %1542
  %v1545 = vadd.f32 %v1480, %v1543
  %v1546 = vtanh.pop %v1545
  %v1547 = vsub.f32 %v1387, %v1546
  %1549 = vrot.lane.b32.xlu0 %v1547, 96
  %v1550 = vpop.permute.xlu0 %1549
  %v1552 = vmul.f32 %v1534, %v1550
  %1554 = vrot.lane.b32.xlu0 %v1552, 32
  %v1555 = vpop.permute.xlu0 %1554
  %v1557 = vadd.f32 %v1546, %v1555
  %v1558 = vsel %vm674, %v1478, %v1386
  %v1559 = vsel %vm667, %v1557, %v1387
  %1561 = vrot.lane.b32.xlu0 %v1558, 64
  %v1562 = vpop.permute.xlu0 %1561
  %s1564 = scalar_lea.vmem [#allocation4], 48
  %1565 = vst.msk [vmem:[%s1564] sm:$0xff] %vm305, %v1562
  %1567 = vrot.lane.b32.xlu0 %v1559, 64
  %v1568 = vpop.permute.xlu0 %1567
  %s1570 = scalar_lea.vmem [#allocation5], 8
  %1571 = vst.msk [vmem:[%s1570] sm:$0xff] %vm305, %v1568
  %s1572 = scalar_lea.vmem [#allocation2], 56
  %v1573 = vld [vmem:[%s1572] sm:$0xff]
  %v1574 = vpack.c.bf16 %v1558, %v1558
  %1576 = vrot.lane.b32.xlu0 %v1574, 64
  %v1577 = vpop.permute.xlu0 %1576
  %v1579 = vsel %vm305, %v1577, 0
  %1581 = vmatprep.subr.bf16.mxu0 0
  %1582 = vmatpush1.bf16.msra.mxu0 %v301
  %1583 = vmatprep.subr.bf16.mxu0 0
  %1584 = vmatpush1.bf16.msra.mxu0 %v302
  %1585 = vmatprep.subr.bf16.mxu0 0
  %1586 = vmatpush1.bf16.msra.mxu0 0
  %1587 = vmatprep.subr.bf16.mxu0 0
  %1588 = vmatpush1.bf16.msra.mxu0 0
  %1589 = vmatprep.subr.bf16.mxu0 0
  %1590 = vmatpush1.bf16.msra.mxu0 0
  %1591 = vmatprep.subr.bf16.mxu0 0
  %1592 = vmatpush1.bf16.msra.mxu0 0
  %1593 = vmatprep.subr.bf16.mxu0 0
  %1594 = vmatpush1.bf16.msra.mxu0 0
  %1595 = vmatprep.subr.bf16.mxu0 0
  %1596 = vmatpush1.bf16.msra.mxu0 0
  %1597 = vmatprep.subr.bf16.mxu0 0
  %1598 = vmatpush1.bf16.msra.mxu0 0
  %1599 = vmatprep.subr.bf16.mxu0 0
  %1600 = vmatpush1.bf16.msra.mxu0 0
  %1601 = vmatprep.subr.bf16.mxu0 0
  %1602 = vmatpush1.bf16.msra.mxu0 0
  %1603 = vmatprep.subr.bf16.mxu0 0
  %1604 = vmatpush1.bf16.msra.mxu0 0
  %1605 = vmatprep.subr.bf16.mxu0 0
  %1606 = vmatpush1.bf16.msra.mxu0 0
  %1607 = vmatprep.subr.bf16.mxu0 0
  %1608 = vmatpush1.bf16.msra.mxu0 0
  %1609 = vmatprep.subr.bf16.mxu0 0
  %1610 = vmatpush1.bf16.msra.mxu0 0
  %1611 = vmatprep.subr.bf16.mxu0 0
  %1612 = vmatpush1.bf16.msra.mxu0 0
  %1613 = vmatprep.mubr.bf16.mxu0 0
  %1614 = vmatmul.mubr.bf16.gmra.mrb[0].mxu0 %v1579
  %v1615 = vpop.f32.mrb[0].mxu0
  %v1616 = vadd.f32 0.0, %v1615
  %v1617 = vpop.f32.mrb[0].mxu0
  %v1618 = vpop.f32.mrb[0].mxu0
  %v1619 = vpop.f32.mrb[0].mxu0
  %1620 = vdwg.mxu0
  %v1621 = vadd.f32 %v1573, %v1616
  %v1622 = vxor.u32 %v1621, 2147483648
  %v1623 = vmul.f32 %v1622, 1.442695
  %v1624 = vpow.pop %v1623
  %v1625 = vadd.f32 %v1624, 1.0
  %v1626 = vrcp.pop %v1625
  %v1627 = vmul.f32 1.0, %v1626
  %v1628 = vadd.f32 %v1616, %v362
  %1630 = vrot.lane.b32.xlu0 %v1628, 64
  %v1631 = vpop.permute.xlu0 %1630
  %v1633 = vmul.f32 %v1627, %v1631
  %1635 = vrot.lane.b32.xlu0 %v1633, 64
  %v1636 = vpop.permute.xlu0 %1635
  %v1638 = vadd.f32 %v1573, %v1636
  %v1639 = vtanh.pop %v1638
  %v1640 = vsub.f32 %v1558, %v1639
  %1642 = vrot.lane.b32.xlu0 %v1640, 96
  %v1643 = vpop.permute.xlu0 %1642
  %v1645 = vmul.f32 %v1627, %v1643
  %1647 = vrot.lane.b32.xlu0 %v1645, 32
  %v1648 = vpop.permute.xlu0 %1647
  %v1650 = vadd.f32 %v1639, %v1648
  %v1651 = vld [vmem:[#allocation3] sm:$0xff]
  %v1652 = vpack.c.bf16 %v1559, %v1559
  %1654 = vrot.lane.b32.xlu0 %v1652, 64
  %v1655 = vpop.permute.xlu0 %1654
  %v1657 = vsel %vm305, %v1655, 0
  %1659 = vmatprep.subr.bf16.mxu0 0
  %1660 = vmatpush1.bf16.msra.mxu0 %v397
  %1661 = vmatprep.subr.bf16.mxu0 0
  %1662 = vmatpush1.bf16.msra.mxu0 %v398
  %1663 = vmatprep.subr.bf16.mxu0 0
  %1664 = vmatpush1.bf16.msra.mxu0 0
  %1665 = vmatprep.subr.bf16.mxu0 0
  %1666 = vmatpush1.bf16.msra.mxu0 0
  %1667 = vmatprep.subr.bf16.mxu0 0
  %1668 = vmatpush1.bf16.msra.mxu0 0
  %1669 = vmatprep.subr.bf16.mxu0 0
  %1670 = vmatpush1.bf16.msra.mxu0 0
  %1671 = vmatprep.subr.bf16.mxu0 0
  %1672 = vmatpush1.bf16.msra.mxu0 0
  %1673 = vmatprep.subr.bf16.mxu0 0
  %1674 = vmatpush1.bf16.msra.mxu0 0
  %1675 = vmatprep.subr.bf16.mxu0 0
  %1676 = vmatpush1.bf16.msra.mxu0 0
  %1677 = vmatprep.subr.bf16.mxu0 0
  %1678 = vmatpush1.bf16.msra.mxu0 0
  %1679 = vmatprep.subr.bf16.mxu0 0
  %1680 = vmatpush1.bf16.msra.mxu0 0
  %1681 = vmatprep.subr.bf16.mxu0 0
  %1682 = vmatpush1.bf16.msra.mxu0 0
  %1683 = vmatprep.subr.bf16.mxu0 0
  %1684 = vmatpush1.bf16.msra.mxu0 0
  %1685 = vmatprep.subr.bf16.mxu0 0
  %1686 = vmatpush1.bf16.msra.mxu0 0
  %1687 = vmatprep.subr.bf16.mxu0 0
  %1688 = vmatpush1.bf16.msra.mxu0 0
  %1689 = vmatprep.subr.bf16.mxu0 0
  %1690 = vmatpush1.bf16.msra.mxu0 0
  %1691 = vmatprep.mubr.bf16.mxu0 0
  %1692 = vmatmul.mubr.bf16.gmra.mrb[0].mxu0 %v1657
  %v1693 = vpop.f32.mrb[0].mxu0
  %v1694 = vadd.f32 0.0, %v1693
  %v1695 = vpop.f32.mrb[0].mxu0
  %v1696 = vpop.f32.mrb[0].mxu0
  %v1697 = vpop.f32.mrb[0].mxu0
  %1698 = vdwg.mxu0
  %v1699 = vadd.f32 %v1651, %v1694
  %v1700 = vxor.u32 %v1699, 2147483648
  %v1701 = vmul.f32 %v1700, 1.442695
  %v1702 = vpow.pop %v1701
  %v1703 = vadd.f32 %v1702, 1.0
  %v1704 = vrcp.pop %v1703
  %v1705 = vmul.f32 1.0, %v1704
  %v1706 = vadd.f32 %v1694, %v454
  %1708 = vrot.lane.b32.xlu0 %v1706, 64
  %v1709 = vpop.permute.xlu0 %1708
  %v1711 = vmul.f32 %v1705, %v1709
  %1713 = vrot.lane.b32.xlu0 %v1711, 64
  %v1714 = vpop.permute.xlu0 %1713
  %v1716 = vadd.f32 %v1651, %v1714
  %v1717 = vtanh.pop %v1716
  %v1718 = vsub.f32 %v1559, %v1717
  %1720 = vrot.lane.b32.xlu0 %v1718, 96
  %v1721 = vpop.permute.xlu0 %1720
  %v1723 = vmul.f32 %v1705, %v1721
  %1725 = vrot.lane.b32.xlu0 %v1723, 32
  %v1726 = vpop.permute.xlu0 %1725
  %v1728 = vadd.f32 %v1717, %v1726
  %v1729 = vsel %vm491, %v1650, %v1558
  %v1730 = vsel %vm484, %v1728, %v1559
  %1732 = vrot.lane.b32.xlu0 %v1729, 64
  %v1733 = vpop.permute.xlu0 %1732
  %s1735 = scalar_lea.vmem [#allocation4], 56
  %1736 = vst.msk [vmem:[%s1735] sm:$0xff] %vm305, %v1733
  %1738 = vrot.lane.b32.xlu0 %v1730, 64
  %v1739 = vpop.permute.xlu0 %1738
  %1741 = vst.msk [vmem:[#allocation5] sm:$0xff] %vm305, %v1739
  %v1742 = vld [vmem:[#allocation4] sm:$0xff]
  %v1743 = vld [vmem:[#allocation4 + $0x8] sm:$0xff]
  %v1744 = vld [vmem:[#allocation4 + $0x10] sm:$0xff]
  %v1745 = vld [vmem:[#allocation4 + $0x18] sm:$0xff]
  %v1746 = vld [vmem:[#allocation4 + $0x20] sm:$0xff]
  %v1747 = vld [vmem:[#allocation4 + $0x28] sm:$0xff]
  %v1748 = vld [vmem:[#allocation4 + $0x30] sm:$0xff]
  %v1749 = vld [vmem:[#allocation4 + $0x38] sm:$0xff]
  %v1750 = vpack.c.bf16 %v1743, %v1742
  %v1751 = vpack.c.bf16 %v1745, %v1744
  %v1752 = vpack.c.bf16 %v1747, %v1746
  %v1753 = vpack.c.bf16 %v1749, %v1748
  %v1754 = vld [vmem:[%s10] sm:$0xf]
  %v1755 = vld [vmem:[%s10 + $0x4] sm:$0xf]
  %v1756 = vld [vmem:[%s10 + $0x8] sm:$0xf]
  %v1757 = vld [vmem:[%s10 + $0xc] sm:$0xf]
  %v1758 = vld [vmem:[#allocation5] sm:$0xff]
  %v1759 = vld [vmem:[#allocation5 + $0x8] sm:$0xff]
  %v1760 = vld [vmem:[#allocation5 + $0x10] sm:$0xff]
  %v1761 = vld [vmem:[#allocation5 + $0x18] sm:$0xff]
  %v1762 = vld [vmem:[#allocation5 + $0x20] sm:$0xff]
  %v1763 = vld [vmem:[#allocation5 + $0x28] sm:$0xff]
  %v1764 = vld [vmem:[#allocation5 + $0x30] sm:$0xff]
  %v1765 = vld [vmem:[#allocation5 + $0x38] sm:$0xff]
  %v1766 = vpack.c.bf16 %v1759, %v1758
  %v1767 = vpack.c.bf16 %v1761, %v1760
  %v1768 = vpack.c.bf16 %v1763, %v1762
  %v1769 = vpack.c.bf16 %v1765, %v1764
  %v1770 = vld [vmem:[%s11] sm:$0xf]
  %v1771 = vld [vmem:[%s11 + $0x4] sm:$0xf]
  %v1772 = vld [vmem:[%s11 + $0x8] sm:$0xf]
  %v1773 = vld [vmem:[%s11 + $0xc] sm:$0xf]
  %v1778 = vunpack.c.l.b16 %v1770
  %v1779 = vunpack.c.l.b16 %v1771
  %v1780 = vunpack.c.l.b16 %v1772
  %v1781 = vunpack.c.l.b16 %v1773
  %v1782 = vpack.c.b16 %v1779, %v1778
  %v1783 = vpack.c.b16 %v1781, %v1780
  %v1787 = vsel %vm305, %v1766, 0
  %v1790 = vsel %vm305, %v1767, 0
  %v1793 = vsel %vm305, %v1768, 0
  %v1796 = vsel %vm305, %v1769, 0
  %1798 = vmatprep.subr.bf16.mxu0 0
  %1799 = vmatpush1.bf16.msra.mxu0 %v1782
  %1800 = vmatprep.subr.bf16.mxu0 0
  %1801 = vmatpush1.bf16.msra.mxu0 %v1783
  %1802 = vmatprep.subr.bf16.mxu0 0
  %1803 = vmatpush1.bf16.msra.mxu0 0
  %1804 = vmatprep.subr.bf16.mxu0 0
  %1805 = vmatpush1.bf16.msra.mxu0 0
  %1806 = vmatprep.subr.bf16.mxu0 0
  %1807 = vmatpush1.bf16.msra.mxu0 0
  %1808 = vmatprep.subr.bf16.mxu0 0
  %1809 = vmatpush1.bf16.msra.mxu0 0
  %1810 = vmatprep.subr.bf16.mxu0 0
  %1811 = vmatpush1.bf16.msra.mxu0 0
  %1812 = vmatprep.subr.bf16.mxu0 0
  %1813 = vmatpush1.bf16.msra.mxu0 0
  %1814 = vmatprep.subr.bf16.mxu0 0
  %1815 = vmatpush1.bf16.msra.mxu0 0
  %1816 = vmatprep.subr.bf16.mxu0 0
  %1817 = vmatpush1.bf16.msra.mxu0 0
  %1818 = vmatprep.subr.bf16.mxu0 0
  %1819 = vmatpush1.bf16.msra.mxu0 0
  %1820 = vmatprep.subr.bf16.mxu0 0
  %1821 = vmatpush1.bf16.msra.mxu0 0
  %1822 = vmatprep.subr.bf16.mxu0 0
  %1823 = vmatpush1.bf16.msra.mxu0 0
  %1824 = vmatprep.subr.bf16.mxu0 0
  %1825 = vmatpush1.bf16.msra.mxu0 0
  %1826 = vmatprep.subr.bf16.mxu0 0
  %1827 = vmatpush1.bf16.msra.mxu0 0
  %1828 = vmatprep.subr.bf16.mxu0 0
  %1829 = vmatpush1.bf16.msra.mxu0 0
  %1830 = vmatprep.mubr.bf16.mxu0 0
  %1831 = vmatmul.mubr.bf16.gmra.mrb[0].mxu0 %v1787
  %v1832 = vpop.f32.mrb[0].mxu0
  %v1833 = vadd.f32 0.0, %v1832
  %v1834 = vpop.f32.mrb[0].mxu0
  %v1835 = vpop.f32.mrb[0].mxu0
  %v1836 = vadd.f32 0.0, %v1835
  %v1837 = vpop.f32.mrb[0].mxu0
  %1838 = vmatprep.mubr.bf16.mxu0 0
  %1839 = vmatmul.mubr.bf16.gmra.mrb[0].mxu0 %v1790
  %v1840 = vpop.f32.mrb[0].mxu0
  %v1841 = vadd.f32 0.0, %v1840
  %v1842 = vpop.f32.mrb[0].mxu0
  %v1843 = vpop.f32.mrb[0].mxu0
  %v1844 = vadd.f32 0.0, %v1843
  %v1845 = vpop.f32.mrb[0].mxu0
  %1846 = vmatprep.mubr.bf16.mxu0 0
  %1847 = vmatmul.mubr.bf16.gmra.mrb[0].mxu0 %v1793
  %v1848 = vpop.f32.mrb[0].mxu0
  %v1849 = vadd.f32 0.0, %v1848
  %v1850 = vpop.f32.mrb[0].mxu0
  %v1851 = vpop.f32.mrb[0].mxu0
  %v1852 = vadd.f32 0.0, %v1851
  %v1853 = vpop.f32.mrb[0].mxu0
  %1854 = vmatprep.mubr.bf16.mxu0 0
  %1855 = vmatmul.mubr.bf16.gmra.mrb[0].mxu0 %v1796
  %v1856 = vpop.f32.mrb[0].mxu0
  %v1857 = vadd.f32 0.0, %v1856
  %v1858 = vpop.f32.mrb[0].mxu0
  %v1859 = vpop.f32.mrb[0].mxu0
  %v1860 = vadd.f32 0.0, %v1859
  %v1861 = vpop.f32.mrb[0].mxu0
  %1862 = vdwg.mxu0
  %v1867 = vunpack.c.l.b16 %v1754
  %v1868 = vunpack.c.l.b16 %v1755
  %v1869 = vunpack.c.l.b16 %v1756
  %v1870 = vunpack.c.l.b16 %v1757
  %v1871 = vpack.c.b16 %v1868, %v1867
  %v1872 = vpack.c.b16 %v1870, %v1869
  %v1876 = vsel %vm305, %v1750, 0
  %v1879 = vsel %vm305, %v1751, 0
  %v1882 = vsel %vm305, %v1752, 0
  %v1885 = vsel %vm305, %v1753, 0
  %1887 = vmatprep.subr.bf16.mxu0 0
  %1888 = vmatpush1.bf16.msra.mxu0 %v1871
  %1889 = vmatprep.subr.bf16.mxu0 0
  %1890 = vmatpush1.bf16.msra.mxu0 %v1872
  %1891 = vmatprep.subr.bf16.mxu0 0
  %1892 = vmatpush1.bf16.msra.mxu0 0
  %1893 = vmatprep.subr.bf16.mxu0 0
  %1894 = vmatpush1.bf16.msra.mxu0 0
  %1895 = vmatprep.subr.bf16.mxu0 0
  %1896 = vmatpush1.bf16.msra.mxu0 0
  %1897 = vmatprep.subr.bf16.mxu0 0
  %1898 = vmatpush1.bf16.msra.mxu0 0
  %1899 = vmatprep.subr.bf16.mxu0 0
  %1900 = vmatpush1.bf16.msra.mxu0 0
  %1901 = vmatprep.subr.bf16.mxu0 0
  %1902 = vmatpush1.bf16.msra.mxu0 0
  %1903 = vmatprep.subr.bf16.mxu0 0
  %1904 = vmatpush1.bf16.msra.mxu0 0
  %1905 = vmatprep.subr.bf16.mxu0 0
  %1906 = vmatpush1.bf16.msra.mxu0 0
  %1907 = vmatprep.subr.bf16.mxu0 0
  %1908 = vmatpush1.bf16.msra.mxu0 0
  %1909 = vmatprep.subr.bf16.mxu0 0
  %1910 = vmatpush1.bf16.msra.mxu0 0
  %1911 = vmatprep.subr.bf16.mxu0 0
  %1912 = vmatpush1.bf16.msra.mxu0 0
  %1913 = vmatprep.subr.bf16.mxu0 0
  %1914 = vmatpush1.bf16.msra.mxu0 0
  %1915 = vmatprep.subr.bf16.mxu0 0
  %1916 = vmatpush1.bf16.msra.mxu0 0
  %1917 = vmatprep.subr.bf16.mxu0 0
  %1918 = vmatpush1.bf16.msra.mxu0 0
  %1919 = vmatprep.mubr.bf16.mxu0 0
  %1920 = vmatmul.mubr.bf16.gmra.mrb[0].mxu0 %v1876
  %v1921 = vpop.f32.mrb[0].mxu0
  %v1922 = vadd.f32 %v1833, %v1921
  %v1923 = vpop.f32.mrb[0].mxu0
  %v1924 = vpop.f32.mrb[0].mxu0
  %v1925 = vadd.f32 %v1836, %v1924
  %v1926 = vpop.f32.mrb[0].mxu0
  %1927 = vmatprep.mubr.bf16.mxu0 0
  %1928 = vmatmul.mubr.bf16.gmra.mrb[0].mxu0 %v1879
  %v1929 = vpop.f32.mrb[0].mxu0
  %v1930 = vadd.f32 %v1841, %v1929
  %v1931 = vpop.f32.mrb[0].mxu0
  %v1932 = vpop.f32.mrb[0].mxu0
  %v1933 = vadd.f32 %v1844, %v1932
  %v1934 = vpop.f32.mrb[0].mxu0
  %1935 = vmatprep.mubr.bf16.mxu0 0
  %1936 = vmatmul.mubr.bf16.gmra.mrb[0].mxu0 %v1882
  %v1937 = vpop.f32.mrb[0].mxu0
  %v1938 = vadd.f32 %v1849, %v1937
  %v1939 = vpop.f32.mrb[0].mxu0
  %v1940 = vpop.f32.mrb[0].mxu0
  %v1941 = vadd.f32 %v1852, %v1940
  %v1942 = vpop.f32.mrb[0].mxu0
  %1943 = vmatprep.mubr.bf16.mxu0 0
  %1944 = vmatmul.mubr.bf16.gmra.mrb[0].mxu0 %v1885
  %v1945 = vpop.f32.mrb[0].mxu0
  %v1946 = vadd.f32 %v1857, %v1945
  %v1947 = vpop.f32.mrb[0].mxu0
  %v1948 = vpop.f32.mrb[0].mxu0
  %v1949 = vadd.f32 %v1860, %v1948
  %v1950 = vpop.f32.mrb[0].mxu0
  %1951 = vdwg.mxu0
  %v1952 = vcvt.s32.f32 0
  %v1953 = vcvt.s32.f32 1
  %v1954 = vcvt.s32.f32 2
  %v1955 = vcvt.s32.f32 3
  %v1956 = vcvt.s32.f32 4
  %v1957 = vcvt.s32.f32 5
  %v1958 = vcvt.s32.f32 6
  %v1959 = vcvt.s32.f32 7
  %vm1960 = vcmp.lt.f32.partialorder %v1952, %v291
  %vm1961 = vcmp.lt.f32.partialorder %v1953, %v291
  %vm1962 = vcmp.lt.f32.partialorder %v1954, %v291
  %vm1963 = vcmp.lt.f32.partialorder %v1955, %v291
  %vm1964 = vcmp.lt.f32.partialorder %v1956, %v291
  %vm1965 = vcmp.lt.f32.partialorder %v1957, %v291
  %vm1966 = vcmp.lt.f32.partialorder %v1958, %v291
  %vm1967 = vcmp.lt.f32.partialorder %v1959, %v291
  %v1968 = vsel %vm1960, 1, 0
  %v1969 = vsel %vm1961, 1, 0
  %v1970 = vsel %vm1962, 1, 0
  %v1971 = vsel %vm1963, 1, 0
  %v1972 = vsel %vm1964, 1, 0
  %v1973 = vsel %vm1965, 1, 0
  %v1974 = vsel %vm1966, 1, 0
  %v1975 = vsel %vm1967, 1, 0
  %1976 = vset.pattern.permute.xlu0 0
  %1977 = vperm.xlu0 %1976, %v1968
  %v1978 = vpop.permute.xlu0 %1977
  %1979 = vset.pattern.permute.xlu0 0
  %1980 = vperm.xlu0 %1979, %v1969
  %v1981 = vpop.permute.xlu0 %1980
  %1982 = vset.pattern.permute.xlu0 0
  %1983 = vperm.xlu0 %1982, %v1970
  %v1984 = vpop.permute.xlu0 %1983
  %1985 = vset.pattern.permute.xlu0 0
  %1986 = vperm.xlu0 %1985, %v1971
  %v1987 = vpop.permute.xlu0 %1986
  %1988 = vset.pattern.permute.xlu0 0
  %1989 = vperm.xlu0 %1988, %v1972
  %v1990 = vpop.permute.xlu0 %1989
  %1991 = vset.pattern.permute.xlu0 0
  %1992 = vperm.xlu0 %1991, %v1973
  %v1993 = vpop.permute.xlu0 %1992
  %1994 = vset.pattern.permute.xlu0 0
  %1995 = vperm.xlu0 %1994, %v1974
  %v1996 = vpop.permute.xlu0 %1995
  %1997 = vset.pattern.permute.xlu0 0
  %1998 = vperm.xlu0 %1997, %v1975
  %v1999 = vpop.permute.xlu0 %1998
  %vm2000 = vcmp.eq.s32.totalorder %v1978, 1
  %vm2001 = vcmp.eq.s32.totalorder %v1981, 1
  %vm2002 = vcmp.eq.s32.totalorder %v1984, 1
  %vm2003 = vcmp.eq.s32.totalorder %v1987, 1
  %vm2004 = vcmp.eq.s32.totalorder %v1990, 1
  %vm2005 = vcmp.eq.s32.totalorder %v1993, 1
  %vm2006 = vcmp.eq.s32.totalorder %v1996, 1
  %vm2007 = vcmp.eq.s32.totalorder %v1999, 1
  %v2008 = vsel %vm2000, %v1922, 0.0
  %v2009 = vsel %vm2001, %v1925, 0.0
  %v2010 = vsel %vm2002, %v1930, 0.0
  %v2011 = vsel %vm2003, %v1933, 0.0
  %v2012 = vsel %vm2004, %v1938, 0.0
  %v2013 = vsel %vm2005, %v1941, 0.0
  %v2014 = vsel %vm2006, %v1946, 0.0
  %v2015 = vsel %vm2007, %v1949, 0.0
  %v2016 = vld [vmem:[%s12] sm:$0x1]
  %v2018 = vlaneseq
  %v2019 = vshrl.u32 %v2018, 7
  %v2020 = vsub.s32 0, %v2019
  %v2021 = vrot.slane %v2016, %v2020
  %v2023 = vadd.f32 %v2008, %v2021
  %v2024 = vadd.f32 %v2009, %v2021
  %v2025 = vadd.f32 %v2010, %v2021
  %v2026 = vadd.f32 %v2011, %v2021
  %v2027 = vadd.f32 %v2012, %v2021
  %v2028 = vadd.f32 %v2013, %v2021
  %v2029 = vadd.f32 %v2014, %v2021
  %v2030 = vadd.f32 %v2015, %v2021
  %v2031 = vmax.f32 %v2023, 0.0
  %v2032 = vmax.f32 %v2024, 0.0
  %v2033 = vmax.f32 %v2025, 0.0
  %v2034 = vmax.f32 %v2026, 0.0
  %v2035 = vmax.f32 %v2027, 0.0
  %v2036 = vmax.f32 %v2028, 0.0
  %v2037 = vmax.f32 %v2029, 0.0
  %v2038 = vmax.f32 %v2030, 0.0
  %vm2039 = vcmask 64512
  %v2040 = vsel %vm2039, %v2031, -inf
  %v2041 = vsel %vm2039, %v2032, -inf
  %v2042 = vsel %vm2039, %v2033, -inf
  %v2043 = vsel %vm2039, %v2034, -inf
  %v2044 = vsel %vm2039, %v2035, -inf
  %v2045 = vmax.f32 %v2040, %v2044
  %v2046 = vsel %vm2039, %v2036, -inf
  %v2047 = vmax.f32 %v2041, %v2046
  %v2048 = vsel %vm2039, %v2037, -inf
  %v2049 = vmax.f32 %v2042, %v2048
  %v2050 = vsel %vm2039, %v2038, -inf
  %v2051 = vmax.f32 %v2043, %v2050
  %v2052 = vmax.f32 %v2045, %v2047
  %v2053 = vmax.f32 %v2049, %v2051
  %v2054 = vmax.f32 %v2052, %v2053
  %v2055 = vpack.c.bf16 %v1729, %v1729
  %v2056 = vld [vmem:[%s13] sm:$0xf]
  %v2057 = vld [vmem:[%s13 + $0x4] sm:$0xf]
  %v2058 = vld [vmem:[%s13 + $0x8] sm:$0xf]
  %v2059 = vld [vmem:[%s13 + $0xc] sm:$0xf]
  %v2060 = vpack.c.bf16 %v1730, %v1730
  %v2061 = vld [vmem:[%s14] sm:$0xf]
  %v2062 = vld [vmem:[%s14 + $0x4] sm:$0xf]
  %v2063 = vld [vmem:[%s14 + $0x8] sm:$0xf]
  %v2064 = vld [vmem:[%s14 + $0xc] sm:$0xf]
  %2066 = vrot.lane.b32.xlu0 %v2060, 64
  %v2067 = vpop.permute.xlu0 %2066
  %v2072 = vunpack.c.l.b16 %v2061
  %v2073 = vunpack.c.l.b16 %v2062
  %v2074 = vunpack.c.l.b16 %v2063
  %v2075 = vunpack.c.l.b16 %v2064
  %v2076 = vpack.c.b16 %v2073, %v2072
  %v2077 = vpack.c.b16 %v2075, %v2074
  %v2081 = vsel %vm305, %v2067, 0
  %2083 = vmatprep.subr.bf16.mxu0 0
  %2084 = vmatpush1.bf16.msra.mxu0 %v2076
  %2085 = vmatprep.subr.bf16.mxu0 0
  %2086 = vmatpush1.bf16.msra.mxu0 %v2077
  %2087 = vmatprep.subr.bf16.mxu0 0
  %2088 = vmatpush1.bf16.msra.mxu0 0
  %2089 = vmatprep.subr.bf16.mxu0 0
  %2090 = vmatpush1.bf16.msra.mxu0 0
  %2091 = vmatprep.subr.bf16.mxu0 0
  %2092 = vmatpush1.bf16.msra.mxu0 0
  %2093 = vmatprep.subr.bf16.mxu0 0
  %2094 = vmatpush1.bf16.msra.mxu0 0
  %2095 = vmatprep.subr.bf16.mxu0 0
  %2096 = vmatpush1.bf16.msra.mxu0 0
  %2097 = vmatprep.subr.bf16.mxu0 0
  %2098 = vmatpush1.bf16.msra.mxu0 0
  %2099 = vmatprep.subr.bf16.mxu0 0
  %2100 = vmatpush1.bf16.msra.mxu0 0
  %2101 = vmatprep.subr.bf16.mxu0 0
  %2102 = vmatpush1.bf16.msra.mxu0 0
  %2103 = vmatprep.subr.bf16.mxu0 0
  %2104 = vmatpush1.bf16.msra.mxu0 0
  %2105 = vmatprep.subr.bf16.mxu0 0
  %2106 = vmatpush1.bf16.msra.mxu0 0
  %2107 = vmatprep.subr.bf16.mxu0 0
  %2108 = vmatpush1.bf16.msra.mxu0 0
  %2109 = vmatprep.subr.bf16.mxu0 0
  %2110 = vmatpush1.bf16.msra.mxu0 0
  %2111 = vmatprep.subr.bf16.mxu0 0
  %2112 = vmatpush1.bf16.msra.mxu0 0
  %2113 = vmatprep.subr.bf16.mxu0 0
  %2114 = vmatpush1.bf16.msra.mxu0 0
  %2115 = vmatprep.mubr.bf16.mxu0 0
  %2116 = vmatmul.mubr.bf16.gmra.mrb[0].mxu0 %v2081
  %v2117 = vpop.f32.mrb[0].mxu0
  %v2118 = vadd.f32 0.0, %v2117
  %v2119 = vpop.f32.mrb[0].mxu0
  %v2120 = vpop.f32.mrb[0].mxu0
  %v2121 = vpop.f32.mrb[0].mxu0
  %2122 = vdwg.mxu0
  %2124 = vrot.lane.b32.xlu0 %v2055, 64
  %v2125 = vpop.permute.xlu0 %2124
  %v2130 = vunpack.c.l.b16 %v2056
  %v2131 = vunpack.c.l.b16 %v2057
  %v2132 = vunpack.c.l.b16 %v2058
  %v2133 = vunpack.c.l.b16 %v2059
  %v2134 = vpack.c.b16 %v2131, %v2130
  %v2135 = vpack.c.b16 %v2133, %v2132
  %v2139 = vsel %vm305, %v2125, 0
  %2141 = vmatprep.subr.bf16.mxu0 0
  %2142 = vmatpush1.bf16.msra.mxu0 %v2134
  %2143 = vmatprep.subr.bf16.mxu0 0
  %2144 = vmatpush1.bf16.msra.mxu0 %v2135
  %2145 = vmatprep.subr.bf16.mxu0 0
  %2146 = vmatpush1.bf16.msra.mxu0 0
  %2147 = vmatprep.subr.bf16.mxu0 0
  %2148 = vmatpush1.bf16.msra.mxu0 0
  %2149 = vmatprep.subr.bf16.mxu0 0
  %2150 = vmatpush1.bf16.msra.mxu0 0
  %2151 = vmatprep.subr.bf16.mxu0 0
  %2152 = vmatpush1.bf16.msra.mxu0 0
  %2153 = vmatprep.subr.bf16.mxu0 0
  %2154 = vmatpush1.bf16.msra.mxu0 0
  %2155 = vmatprep.subr.bf16.mxu0 0
  %2156 = vmatpush1.bf16.msra.mxu0 0
  %2157 = vmatprep.subr.bf16.mxu0 0
  %2158 = vmatpush1.bf16.msra.mxu0 0
  %2159 = vmatprep.subr.bf16.mxu0 0
  %2160 = vmatpush1.bf16.msra.mxu0 0
  %2161 = vmatprep.subr.bf16.mxu0 0
  %2162 = vmatpush1.bf16.msra.mxu0 0
  %2163 = vmatprep.subr.bf16.mxu0 0
  %2164 = vmatpush1.bf16.msra.mxu0 0
  %2165 = vmatprep.subr.bf16.mxu0 0
  %2166 = vmatpush1.bf16.msra.mxu0 0
  %2167 = vmatprep.subr.bf16.mxu0 0
  %2168 = vmatpush1.bf16.msra.mxu0 0
  %2169 = vmatprep.subr.bf16.mxu0 0
  %2170 = vmatpush1.bf16.msra.mxu0 0
  %2171 = vmatprep.subr.bf16.mxu0 0
  %2172 = vmatpush1.bf16.msra.mxu0 0
  %2173 = vmatprep.mubr.bf16.mxu0 0
  %2174 = vmatmul.mubr.bf16.gmra.mrb[0].mxu0 %v2139
  %v2175 = vpop.f32.mrb[0].mxu0
  %v2176 = vadd.f32 %v2118, %v2175
  %v2177 = vpop.f32.mrb[0].mxu0
  %v2178 = vpop.f32.mrb[0].mxu0
  %v2179 = vpop.f32.mrb[0].mxu0
  %2180 = vdwg.mxu0
  %v2181 = vpack.c.bf16 %v2054, %v2054
  %v2182 = vld [vmem:[%s15] sm:$0xf]
  %v2184 = vsel %vm2039, %v2181, 0
  %vm2186 = vcmask 1043456
  %v2188 = vsel %vm2186, %v2182, 0
  %2190 = vmatprep.subr.bf16.mxu0 0
  %2191 = vmatpush1.bf16.msra.mxu0 %v2188
  %2192 = vmatprep.subr.bf16.mxu0 0
  %2193 = vmatpush1.bf16.msra.mxu0 0
  %2194 = vmatprep.subr.bf16.mxu0 0
  %2195 = vmatpush1.bf16.msra.mxu0 0
  %2196 = vmatprep.subr.bf16.mxu0 0
  %2197 = vmatpush1.bf16.msra.mxu0 0
  %2198 = vmatprep.subr.bf16.mxu0 0
  %2199 = vmatpush1.bf16.msra.mxu0 0
  %2200 = vmatprep.subr.bf16.mxu0 0
  %2201 = vmatpush1.bf16.msra.mxu0 0
  %2202 = vmatprep.subr.bf16.mxu0 0
  %2203 = vmatpush1.bf16.msra.mxu0 0
  %2204 = vmatprep.subr.bf16.mxu0 0
  %2205 = vmatpush1.bf16.msra.mxu0 0
  %2206 = vmatprep.subr.bf16.mxu0 0
  %2207 = vmatpush1.bf16.msra.mxu0 0
  %2208 = vmatprep.subr.bf16.mxu0 0
  %2209 = vmatpush1.bf16.msra.mxu0 0
  %2210 = vmatprep.subr.bf16.mxu0 0
  %2211 = vmatpush1.bf16.msra.mxu0 0
  %2212 = vmatprep.subr.bf16.mxu0 0
  %2213 = vmatpush1.bf16.msra.mxu0 0
  %2214 = vmatprep.subr.bf16.mxu0 0
  %2215 = vmatpush1.bf16.msra.mxu0 0
  %2216 = vmatprep.subr.bf16.mxu0 0
  %2217 = vmatpush1.bf16.msra.mxu0 0
  %2218 = vmatprep.subr.bf16.mxu0 0
  %2219 = vmatpush1.bf16.msra.mxu0 0
  %2220 = vmatprep.subr.bf16.mxu0 0
  %2221 = vmatpush1.bf16.msra.mxu0 0
  %2222 = vmatprep.mubr.bf16.mxu0 0
  %2223 = vmatmul.mubr.bf16.gmra.mrb[0].mxu0 %v2184
  %v2224 = vpop.f32.mrb[0].mxu0
  %v2225 = vadd.f32 0.0, %v2224
  %v2226 = vpop.f32.mrb[0].mxu0
  %v2227 = vpop.f32.mrb[0].mxu0
  %v2228 = vpop.f32.mrb[0].mxu0
  %2229 = vdwg.mxu0
  %v2230 = vadd.f32 %v2176, %v2225
  %v2231 = vld [vmem:[%s16] sm:$0x1]
  %v2233 = vlaneseq
  %v2234 = vshrl.u32 %v2233, 7
  %v2235 = vsub.s32 0, %v2234
  %v2236 = vrot.slane %v2231, %v2235
  %v2238 = vadd.f32 %v2230, %v2236
  %v2239 = vmax.f32 %v2238, 0.0
  %v2240 = vpack.c.bf16 %v2239, %v2239
  %v2241 = vld [vmem:[%s17] sm:$0xf]
  %v2242 = vld [vmem:[%s17 + $0x4] sm:$0xf]
  %v2243 = vld [vmem:[%s17 + $0x8] sm:$0xf]
  %v2244 = vld [vmem:[%s17 + $0xc] sm:$0xf]
  %v2245 = vld [vmem:[%s17 + $0x10] sm:$0xf]
  %v2246 = vld [vmem:[%s17 + $0x14] sm:$0xf]
  %v2247 = vld [vmem:[%s17 + $0x18] sm:$0xf]
  %v2248 = vld [vmem:[%s17 + $0x1c] sm:$0xf]
  %v2249 = vld [vmem:[%s18] sm:$0x1]
  %v2251 = vlaneseq
  %v2252 = vshrl.u32 %v2251, 7
  %v2253 = vsub.s32 0, %v2252
  %v2254 = vrot.slane %v2249, %v2253
  %v2264 = vunpack.c.l.b16 %v2241
  %v2265 = vunpack.c.l.b16 %v2242
  %v2266 = vunpack.c.l.b16 %v2243
  %v2267 = vunpack.c.l.b16 %v2244
  %v2268 = vunpack.c.l.b16 %v2245
  %v2269 = vunpack.c.l.b16 %v2246
  %v2270 = vunpack.c.l.b16 %v2247
  %v2271 = vunpack.c.l.b16 %v2248
  %v2272 = vpack.c.b16 %v2265, %v2264
  %v2273 = vpack.c.b16 %v2267, %v2266
  %v2274 = vpack.c.b16 %v2269, %v2268
  %v2275 = vpack.c.b16 %v2271, %v2270
  %vm2280 = vcmask 523264
  %v2282 = vsel %vm2280, %v2240, 0
  %2284 = vmatprep.subr.bf16.mxu0 0
  %2285 = vmatpush1.bf16.msra.mxu0 %v2272
  %2286 = vmatprep.subr.bf16.mxu0 0
  %2287 = vmatpush1.bf16.msra.mxu0 %v2273
  %2288 = vmatprep.subr.bf16.mxu0 0
  %2289 = vmatpush1.bf16.msra.mxu0 %v2274
  %2290 = vmatprep.subr.bf16.mxu0 0
  %2291 = vmatpush1.bf16.msra.mxu0 %v2275
  %2292 = vmatprep.subr.bf16.mxu0 0
  %2293 = vmatpush1.bf16.msra.mxu0 0
  %2294 = vmatprep.subr.bf16.mxu0 0
  %2295 = vmatpush1.bf16.msra.mxu0 0
  %2296 = vmatprep.subr.bf16.mxu0 0
  %2297 = vmatpush1.bf16.msra.mxu0 0
  %2298 = vmatprep.subr.bf16.mxu0 0
  %2299 = vmatpush1.bf16.msra.mxu0 0
  %2300 = vmatprep.subr.bf16.mxu0 0
  %2301 = vmatpush1.bf16.msra.mxu0 0
  %2302 = vmatprep.subr.bf16.mxu0 0
  %2303 = vmatpush1.bf16.msra.mxu0 0
  %2304 = vmatprep.subr.bf16.mxu0 0
  %2305 = vmatpush1.bf16.msra.mxu0 0
  %2306 = vmatprep.subr.bf16.mxu0 0
  %2307 = vmatpush1.bf16.msra.mxu0 0
  %2308 = vmatprep.subr.bf16.mxu0 0
  %2309 = vmatpush1.bf16.msra.mxu0 0
  %2310 = vmatprep.subr.bf16.mxu0 0
  %2311 = vmatpush1.bf16.msra.mxu0 0
  %2312 = vmatprep.subr.bf16.mxu0 0
  %2313 = vmatpush1.bf16.msra.mxu0 0
  %2314 = vmatprep.subr.bf16.mxu0 0
  %2315 = vmatpush1.bf16.msra.mxu0 0
  %2316 = vmatprep.mubr.bf16.mxu0 0
  %2317 = vmatmul.mubr.bf16.gmra.mrb[0].mxu0 %v2282
  %v2318 = vpop.f32.mrb[0].mxu0
  %v2319 = vadd.f32 %v2254, %v2318
  %v2320 = vpop.f32.mrb[0].mxu0
  %v2321 = vpop.f32.mrb[0].mxu0
  %v2322 = vpop.f32.mrb[0].mxu0
  %2323 = vdwg.mxu0
  %vm2324 = vcmask 31744
  %2325 = vst.msk [vmem:[%s19] sm:$0xff] %vm2324, %v2319
  // Predicated region
  $region78: #{tpu_custom_call.1} parent=0 // pred_check
    _
  $region79: #{tpu_custom_call.1} parent=0 // pred_check_branch
    %2327 = sbr.rel (0) target = $region81
  $region80: #{tpu_custom_call.1} parent=0 // pred_region
    _
  $region81: #{tpu_custom_call.1} parent=0 // pred_fallthru
    _
  // Predicated region
  $region82: #{tpu_custom_call.1} parent=0 // pred_check
    _
  $region83: #{tpu_custom_call.1} parent=0 // pred_check_branch
    %2329 = sbr.rel (0) target = $region85
  $region84: #{tpu_custom_call.1} parent=0 // pred_region
    _
  $region85: #{tpu_custom_call.1} parent=0 // pred_fallthru
    _

</llo_original>
